<compile_context>
chip_gen: v7x
topology: tpu7x:2x2x1
jax: 0.10.0
libtpu: 0.0.40
codegen_flags: <defaults>
</compile_context>

<pallas_src>
import math
import numpy as np

import jax
import jax.numpy as jnp
from jax import lax
from jax.experimental import pallas as pl
from jax.experimental.pallas import tpu as pltpu

# ----------------------------- configuration --------------------------------
VOCAB      = 50
EMBED_DIM  = 16
D_MODEL    = 32
N_HEAD     = 4
HEAD_DIM   = D_MODEL // N_HEAD
DIM_FF     = 64
NUM_LAYERS = 2
LN_EPS     = 1e-5                      # torch.nn.LayerNorm default
SCALING    = HEAD_DIM ** -0.5          # fastNLP MultiHeadAttention scaling
MASK_NEG   = -1e30                     # finite "-inf": avoids NaN if a row is fully masked

# TODO(synk): training-mode dropout (stateful RNG masks) is not implemented;
# forward here matches module.eval() semantics. pos_embed=None (ctor default).

# ------------------------------ small helpers -------------------------------
def _ln(x, g, b):
    mu = jnp.mean(x, axis=-1, keepdims=True)
    var = jnp.mean((x - mu) ** 2, axis=-1, keepdims=True)
    return (x - mu) * lax.rsqrt(var + LN_EPS) * g + b


def _default_num_blocks(batch_size):
    """Grid width: 2-way 'parallel' batch split on dual-TC chips (v7x); a single
    fused step on single-TC chips (v5e/v6e) so B*L rows fill sublane groups and
    per-grid-step overhead is paid once. Safe fallback = 1."""
    try:
        kind = jax.devices()[0].device_kind.lower()
    except Exception:
        kind = ""
    dual_tc = ("v7" in kind) or ("tpu7" in kind)
    if dual_tc and batch_size >= 2 and batch_size % 2 == 0:
        return 2
    return 1


# ------------------------------ fused Pallas kernel --------------------------
def _fused_forward_kernel(xp_ref, fc_w_ref, fc_b_ref,
                          w_qkv_ref, b_qkv_ref, w_o_ref, w1_ref, w2_ref,
                          b1_ref, vec_ref, lng_ref, lnb_ref, o_ref):
    """Full encoder forward for BB batch elements (one grid step).

    xp_ref    : (BB, L+1, E)   rows [:L] = embedded+scaled tokens,
                               row L lanes [:L] = additive key-mask bias
    fc_w/fc_b : (E, D), (1, D)                 input_fc
    w_qkv_ref : (NUM_LAYERS, D, 3D)            fused Q|K|V (Q third pre-scaled)
    b_qkv_ref : (NUM_LAYERS, 1, 3D)            fused QKV bias (Q third pre-scaled)
    w_o_ref   : (NUM_LAYERS, D, D)             attention output projection
    w1_ref    : (NUM_LAYERS, D, FF)            FFN first linear
    w2_ref    : (NUM_LAYERS, FF, D)            FFN second linear
    b1_ref    : (NUM_LAYERS, 1, FF)            FFN first bias
    vec_ref   : (NUM_LAYERS, 6, D)  rows = [ln1_g, ln1_b, bo, ln2_g, ln2_b, b2]
    lng/lnb   : (1, D)                         final LayerNorm
    o_ref     : (BB, L, D)
    """
    BB, L, _ = o_ref.shape

    # Unpack the fused activation slab (single DMA per grid step).
    emb_rows = [xp_ref[b, :L, :] for b in range(BB)]
    x_emb = emb_rows[0] if BB == 1 else jnp.concatenate(emb_rows, axis=0)   # (BB*L, E)
    mbias = [xp_ref[b, L:L + 1, :L] for b in range(BB)]                     # BB x (1, L)

    # input_fc (dropout after it is identity in eval mode)
    x = jnp.dot(x_emb, fc_w_ref[...],
                preferred_element_type=jnp.float32) + fc_b_ref[...]         # (BB*L, D)

    for l in range(NUM_LAYERS):            # static unroll: weights stay resident
        w_qkv = w_qkv_ref[l]               # (D, 3D)
        b_qkv = b_qkv_ref[l]               # (1, 3D)
        w_o   = w_o_ref[l]                 # (D, D)
        w1    = w1_ref[l]                  # (D, FF)
        w2    = w2_ref[l]                  # (FF, D)
        b1    = b1_ref[l]                  # (1, FF)
        vec   = vec_ref[l]                 # (6, D)
        ln1_g, ln1_b, bo = vec[0:1], vec[1:2], vec[2:3]
        ln2_g, ln2_b, b2 = vec[3:4], vec[4:5], vec[5:6]

        # ---------------- self-attention sub-block (pre-LN) ----------------
        residual = x
        xn = _ln(x, ln1_g, ln1_b)
        # single fused QKV matmul; scaling + biases already folded into slabs
        qkv = jnp.dot(xn, w_qkv, preferred_element_type=jnp.float32) + b_qkv  # (BB*L, 3D)
        q = qkv[:, 0 * D_MODEL:1 * D_MODEL]
        k = qkv[:, 1 * D_MODEL:2 * D_MODEL]
        v = qkv[:, 2 * D_MODEL:3 * D_MODEL]

        attn_blocks = []
        for b in range(BB):                       # static per-element attention
            rs = slice(b * L, (b + 1) * L)
            acc = jnp.zeros((L, D_MODEL), jnp.float32)
            for h in range(N_HEAD):
                cs = slice(h * HEAD_DIM, (h + 1) * HEAD_DIM)
                qh, kh, vh = q[rs, cs], k[rs, cs], v[rs, cs]
                # q @ k^T without materializing an explicit transpose
                scores = lax.dot_general(
                    qh, kh, (((1,), (1,)), ((), ())),
                    preferred_element_type=jnp.float32) + mbias[b]
                m = jnp.max(scores, axis=-1, keepdims=True)
                e = jnp.exp(scores - m)
                p = e * pl.reciprocal(jnp.sum(e, axis=-1, keepdims=True), approx=True)
                ho = jnp.dot(p, vh, preferred_element_type=jnp.float32)     # (L, HD)
                # accumulate the output projection per head (no lane concat)
                acc = acc + jnp.dot(ho, w_o[cs, :], preferred_element_type=jnp.float32)
            attn_blocks.append(acc)
        attn = attn_blocks[0] if BB == 1 else jnp.concatenate(attn_blocks, axis=0)
        x = residual + attn + bo

        # ---------------- feed-forward sub-block (pre-LN) -------------------
        residual = x
        xn = _ln(x, ln2_g, ln2_b)
        h1 = jnp.maximum(jnp.dot(xn, w1, preferred_element_type=jnp.float32) + b1, 0.0)
        x = residual + jnp.dot(h1, w2, preferred_element_type=jnp.float32) + b2

    # final LayerNorm, store per batch element (aligned 8-row sublane slices)
    y = _ln(x, lng_ref[...], lnb_ref[...])
    for b in range(BB):
        o_ref[b] = y[b * L:(b + 1) * L, :]


# ------------------------------ full forward ---------------------------------
def transformer_encoder_forward(tokens, seq_len, params, num_blocks=None):
    """tokens: (B, L) int32, seq_len: (B,) int32 -> ((B, L, D_MODEL), (B, L) bool)."""
    B, L = tokens.shape
    # TODO(synk): mask-row packing assumes L <= EMBED_DIM (holds here: 8 <= 16);
    # for longer sequences ship the mask bias as a separate (B,1,L) input.
    assert L <= EMBED_DIM, "mask row is packed into the embedding slab"
    if num_blocks is None:
        num_blocks = _default_num_blocks(B)
    assert B % num_blocks == 0
    BB = B // num_blocks

    # embedding lookup + scale: left to XLA (fuses with the HBM gather)
    x_emb = params['embed'][tokens] * math.sqrt(D_MODEL)                 # (B, L, E)
    # seq_len_to_mask
    mask = jnp.arange(L, dtype=jnp.int32)[None, :] < seq_len[:, None]    # (B, L)
    mbias = jnp.where(mask, 0.0, MASK_NEG).astype(jnp.float32)           # (B, L)
    # pack mask bias as one extra row of the activation slab (one DMA per step)
    mask_row = jnp.zeros((B, 1, EMBED_DIM), jnp.float32).at[:, 0, :L].set(mbias)
    x_packed = jnp.concatenate([x_emb, mask_row], axis=1)                # (B, L+1, E)

    stk = params['stacked']
    in_arrays = [x_packed, params['fc_w'], params['fc_b'],
                 stk['w_qkv'], stk['b_qkv'], stk['w_o'], stk['w1'], stk['w2'],
                 stk['b1'], stk['vec'], params['ln_g'], params['ln_b']]

    def act_map(i):   return (i, 0, 0)     # batch-chunk-sliced activations
    def const2(i):    return (0, 0)        # resident 2-D params
    def const3(i):    return (0, 0, 0)     # resident stacked 3-D params

    in_specs = [
        pl.BlockSpec((BB, L + 1, EMBED_DIM), act_map),
        pl.BlockSpec(params['fc_w'].shape, const2),
        pl.BlockSpec(params['fc_b'].shape, const2),
        pl.BlockSpec(stk['w_qkv'].shape, const3),
        pl.BlockSpec(stk['b_qkv'].shape, const3),
        pl.BlockSpec(stk['w_o'].shape, const3),
        pl.BlockSpec(stk['w1'].shape, const3),
        pl.BlockSpec(stk['w2'].shape, const3),
        pl.BlockSpec(stk['b1'].shape, const3),
        pl.BlockSpec(stk['vec'].shape, const3),
        pl.BlockSpec(params['ln_g'].shape, const2),
        pl.BlockSpec(params['ln_b'].shape, const2),
    ]

    out = pl.pallas_call(
        _fused_forward_kernel,
        out_shape=jax.ShapeDtypeStruct((B, L, D_MODEL), jnp.float32),
        grid=(num_blocks,),
        in_specs=in_specs,
        out_specs=pl.BlockSpec((BB, L, D_MODEL), act_map),
        compiler_params=pltpu.CompilerParams(dimension_semantics=("parallel",)),
    )(*in_arrays)
    return out, mask


# ---------------------------- pure-JAX reference -----------------------------
def ref_forward(tokens, seq_len, params):
    x = params['embed'][tokens] * math.sqrt(D_MODEL)
    B, L, _ = x.shape
    x = x @ params['fc_w'] + params['fc_b']
    mask = jnp.arange(L, dtype=jnp.int32)[None, :] < seq_len[:, None]
    bias = jnp.where(mask, 0.0, MASK_NEG)[:, None, None, :]              # (B,1,1,L)
    for p in params['layers']:
        res = x
        xn = _ln(x, p['ln1_g'], p['ln1_b'])
        q = (xn @ p['wq'] + p['bq']) * SCALING
        k = xn @ p['wk'] + p['bk']
        v = xn @ p['wv'] + p['bv']
        q = q.reshape(B, L, N_HEAD, HEAD_DIM)
        k = k.reshape(B, L, N_HEAD, HEAD_DIM)
        v = v.reshape(B, L, N_HEAD, HEAD_DIM)
        scores = jnp.einsum('bqnh,bknh->bnqk', q, k) + bias
        attn = jax.nn.softmax(scores, axis=-1)
        out = jnp.einsum('bnqk,bknh->bqnh', attn, v).reshape(B, L, D_MODEL)
        x = res + (out @ p['wo'] + p['bo'])
        res = x
        xn = _ln(x, p['ln2_g'], p['ln2_b'])
        ff = jnp.maximum(xn @ p['w1'] + p['b1'], 0.0) @ p['w2'] + p['b2']
        x = res + ff
    x = _ln(x, params['ln_g'], params['ln_b'])
    return x, mask


# ------------------------------- param init ----------------------------------
def init_params(key):
    def nrm(k, shape, scale=0.05):
        return jax.random.normal(k, shape, jnp.float32) * scale

    keys = jax.random.split(key, 3 + NUM_LAYERS)
    params = {
        'embed': nrm(keys[0], (VOCAB, EMBED_DIM), 0.1),
        'fc_w':  nrm(keys[1], (EMBED_DIM, D_MODEL)),
        'fc_b':  nrm(keys[2], (1, D_MODEL)),
        'ln_g':  jnp.ones((1, D_MODEL), jnp.float32),
        'ln_b':  jnp.zeros((1, D_MODEL), jnp.float32),
        'layers': [],
    }
    for i in range(NUM_LAYERS):
        lk = jax.random.split(keys[3 + i], 16)   # distinct key per parameter
        params['layers'].append({
            'ln1_g': 1.0 + nrm(lk[0], (1, D_MODEL)),
            'ln1_b': nrm(lk[1], (1, D_MODEL)),
            'wq': nrm(lk[2], (D_MODEL, D_MODEL)), 'bq': nrm(lk[3], (1, D_MODEL)),
            'wk': nrm(lk[4], (D_MODEL, D_MODEL)), 'bk': nrm(lk[5], (1, D_MODEL)),
            'wv': nrm(lk[6], (D_MODEL, D_MODEL)), 'bv': nrm(lk[7], (1, D_MODEL)),
            'wo': nrm(lk[8], (D_MODEL, D_MODEL)), 'bo': nrm(lk[9], (1, D_MODEL)),
            'ln2_g': 1.0 + nrm(lk[10], (1, D_MODEL)),
            'ln2_b': nrm(lk[11], (1, D_MODEL)),
            'w1': nrm(lk[12], (D_MODEL, DIM_FF)), 'b1': nrm(lk[13], (1, DIM_FF)),
            'w2': nrm(lk[14], (DIM_FF, D_MODEL)), 'b2': nrm(lk[15], (1, D_MODEL)),
        })
    # stack per-layer params into contiguous slabs; fold SCALING into the Q
    # third of the fused QKV weight/bias (exact algebraic equivalence).
    L_ = params['layers']
    params['stacked'] = {
        'w_qkv': jnp.stack([jnp.concatenate(
                    [p['wq'] * SCALING, p['wk'], p['wv']], axis=1)
                    for p in L_]),                               # (NL, D, 3D)
        'b_qkv': jnp.stack([jnp.concatenate(
                    [p['bq'] * SCALING, p['bk'], p['bv']], axis=1)
                    for p in L_]),                               # (NL, 1, 3D)
        'w_o':   jnp.stack([p['wo'] for p in L_]),               # (NL, D, D)
        'w1':    jnp.stack([p['w1'] for p in L_]),               # (NL, D, FF)
        'w2':    jnp.stack([p['w2'] for p in L_]),               # (NL, FF, D)
        'b1':    jnp.stack([p['b1'] for p in L_]),               # (NL, 1, FF)
        'vec':   jnp.stack([jnp.concatenate(
                    [p['ln1_g'], p['ln1_b'], p['bo'],
                     p['ln2_g'], p['ln2_b'], p['b2']], axis=0)
                    for p in L_]),                               # (NL, 6, D)
    }
    return params


# ---------------------------------- main --------------------------------------
if __name__ == "__main__":
    key = jax.random.PRNGKey(0)
    k_param, k_tok = jax.random.split(key)

    B, L = 2, 8
    params = init_params(k_param)
    tokens = jax.random.randint(k_tok, (B, L), 0, VOCAB, dtype=jnp.int32)
    seq_len = jnp.array([8, 5], dtype=jnp.int32)

    out, mask = transformer_encoder_forward(tokens, seq_len, params)
    out = jax.block_until_ready(out)
    mask = jax.block_until_ready(mask)

    ref_out, ref_mask = ref_forward(tokens, seq_len, params)
    # tolerance loosened slightly vs. exact-divide version: the softmax uses the
    # EUP approximate reciprocal (pl.reciprocal(approx=True)).
    np.testing.assert_allclose(np.asarray(out), np.asarray(ref_out),
                               rtol=3e-3, atol=2e-3)
    assert np.array_equal(np.asarray(mask), np.asarray(ref_mask))
    assert out.shape == (B, L, D_MODEL) and mask.shape == (B, L)

    print("KERNEL_OK")
</pallas_src>

<mosaic_0001>
module attributes {stable_mosaic.version = 11 : i64} {
  func.func @_fused_forward_kernel(%arg0: i32, %arg1: memref<2x9x16xf32, #tpu.memory_space<vmem>>, %arg2: memref<16x32xf32, #tpu.memory_space<vmem>>, %arg3: memref<1x32xf32, #tpu.memory_space<vmem>>, %arg4: memref<2x32x96xf32, #tpu.memory_space<vmem>>, %arg5: memref<2x1x96xf32, #tpu.memory_space<vmem>>, %arg6: memref<2x32x32xf32, #tpu.memory_space<vmem>>, %arg7: memref<2x32x64xf32, #tpu.memory_space<vmem>>, %arg8: memref<2x64x32xf32, #tpu.memory_space<vmem>>, %arg9: memref<2x1x64xf32, #tpu.memory_space<vmem>>, %arg10: memref<2x6x32xf32, #tpu.memory_space<vmem>>, %arg11: memref<1x32xf32, #tpu.memory_space<vmem>>, %arg12: memref<1x32xf32, #tpu.memory_space<vmem>>, %arg13: memref<2x8x32xf32, #tpu.memory_space<vmem>>) attributes {dimension_semantics = [#tpu.dimension_semantics<parallel>], iteration_bounds = array<i64: 1>, scalar_prefetch = 0 : i64, scratch_operands = 0 : i64, tpu.core_type = #tpu.core_type<tc>, window_params = [{transform_indices = @transform_0, window_bounds = array<i64: 2, 9, 16>}, {pipeline_mode = #tpu.pipeline_mode<synchronous>, transform_indices = @transform_1, window_bounds = array<i64: 16, 32>}, {pipeline_mode = #tpu.pipeline_mode<synchronous>, transform_indices = @transform_2, window_bounds = array<i64: 1, 32>}, {pipeline_mode = #tpu.pipeline_mode<synchronous>, transform_indices = @transform_3, window_bounds = array<i64: 2, 32, 96>}, {pipeline_mode = #tpu.pipeline_mode<synchronous>, transform_indices = @transform_4, window_bounds = array<i64: 2, 1, 96>}, {pipeline_mode = #tpu.pipeline_mode<synchronous>, transform_indices = @transform_5, window_bounds = array<i64: 2, 32, 32>}, {pipeline_mode = #tpu.pipeline_mode<synchronous>, transform_indices = @transform_6, window_bounds = array<i64: 2, 32, 64>}, {pipeline_mode = #tpu.pipeline_mode<synchronous>, transform_indices = @transform_7, window_bounds = array<i64: 2, 64, 32>}, {pipeline_mode = #tpu.pipeline_mode<synchronous>, transform_indices = @transform_8, window_bounds = array<i64: 2, 1, 64>}, {pipeline_mode = #tpu.pipeline_mode<synchronous>, transform_indices = @transform_9, window_bounds = array<i64: 2, 6, 32>}, {pipeline_mode = #tpu.pipeline_mode<synchronous>, transform_indices = @transform_10, window_bounds = array<i64: 1, 32>}, {pipeline_mode = #tpu.pipeline_mode<synchronous>, transform_indices = @transform_11, window_bounds = array<i64: 1, 32>}, {transform_indices = @transform_12, window_bounds = array<i64: 2, 8, 32>}]} {
    %c0 = arith.constant 0 : index
    %c0_0 = arith.constant 0 : index
    %c0_1 = arith.constant 0 : index
    %0 = vector.load %arg1[%c0, %c0_0, %c0_1] : memref<2x9x16xf32, #tpu.memory_space<vmem>>, vector<1x8x16xf32>
    %1 = vector.shape_cast %0 : vector<1x8x16xf32> to vector<8x16xf32>
    %c1 = arith.constant 1 : index
    %c0_2 = arith.constant 0 : index
    %c0_3 = arith.constant 0 : index
    %2 = vector.load %arg1[%c1, %c0_2, %c0_3] : memref<2x9x16xf32, #tpu.memory_space<vmem>>, vector<1x8x16xf32>
    %3 = vector.shape_cast %2 : vector<1x8x16xf32> to vector<8x16xf32>
    %4 = tpu.concatenate %1, %3 in 0 : vector<8x16xf32>, vector<8x16xf32> -> vector<16x16xf32>
    %c0_4 = arith.constant 0 : index
    %c8 = arith.constant 8 : index
    %c0_5 = arith.constant 0 : index
    %5 = vector.load %arg1[%c0_4, %c8, %c0_5] : memref<2x9x16xf32, #tpu.memory_space<vmem>>, vector<1x1x8xf32>
    %6 = vector.shape_cast %5 : vector<1x1x8xf32> to vector<1x8xf32>
    %c1_6 = arith.constant 1 : index
    %c8_7 = arith.constant 8 : index
    %c0_8 = arith.constant 0 : index
    %7 = vector.load %arg1[%c1_6, %c8_7, %c0_8] : memref<2x9x16xf32, #tpu.memory_space<vmem>>, vector<1x1x8xf32>
    %8 = vector.shape_cast %7 : vector<1x1x8xf32> to vector<1x8xf32>
    %c0_9 = arith.constant 0 : index
    %c0_10 = arith.constant 0 : index
    %9 = vector.load %arg2[%c0_9, %c0_10] : memref<16x32xf32, #tpu.memory_space<vmem>>, vector<16x32xf32>
    %cst = arith.constant dense<0.000000e+00> : vector<16x32xf32>
    %10 = tpu.matmul %4, %9, %cst {dimension_numbers = #tpu.dot_dimension_numbers<[1], [0], [0], [1], [0, 0, 1, 1], [], []>} : vector<16x16xf32>, vector<16x32xf32>, vector<16x32xf32> -> vector<16x32xf32>
    %c0_11 = arith.constant 0 : index
    %c0_12 = arith.constant 0 : index
    %11 = vector.load %arg3[%c0_11, %c0_12] : memref<1x32xf32, #tpu.memory_space<vmem>>, vector<1x32xf32>
    %12 = vector.broadcast %11 : vector<1x32xf32> to vector<16x32xf32>
    %13 = arith.addf %10, %12 : vector<16x32xf32>
    %c0_13 = arith.constant 0 : index
    %c0_14 = arith.constant 0 : index
    %c0_15 = arith.constant 0 : index
    %14 = vector.load %arg4[%c0_13, %c0_14, %c0_15] : memref<2x32x96xf32, #tpu.memory_space<vmem>>, vector<1x32x96xf32>
    %15 = vector.shape_cast %14 : vector<1x32x96xf32> to vector<32x96xf32>
    %c0_16 = arith.constant 0 : index
    %c0_17 = arith.constant 0 : index
    %c0_18 = arith.constant 0 : index
    %16 = vector.load %arg5[%c0_16, %c0_17, %c0_18] : memref<2x1x96xf32, #tpu.memory_space<vmem>>, vector<1x1x96xf32>
    %17 = vector.shape_cast %16 : vector<1x1x96xf32> to vector<1x96xf32>
    %c0_19 = arith.constant 0 : index
    %c0_20 = arith.constant 0 : index
    %c0_21 = arith.constant 0 : index
    %18 = vector.load %arg6[%c0_19, %c0_20, %c0_21] : memref<2x32x32xf32, #tpu.memory_space<vmem>>, vector<1x32x32xf32>
    %19 = vector.shape_cast %18 : vector<1x32x32xf32> to vector<32x32xf32>
    %c0_22 = arith.constant 0 : index
    %c0_23 = arith.constant 0 : index
    %c0_24 = arith.constant 0 : index
    %20 = vector.load %arg7[%c0_22, %c0_23, %c0_24] : memref<2x32x64xf32, #tpu.memory_space<vmem>>, vector<1x32x64xf32>
    %21 = vector.shape_cast %20 : vector<1x32x64xf32> to vector<32x64xf32>
    %c0_25 = arith.constant 0 : index
    %c0_26 = arith.constant 0 : index
    %c0_27 = arith.constant 0 : index
    %22 = vector.load %arg8[%c0_25, %c0_26, %c0_27] : memref<2x64x32xf32, #tpu.memory_space<vmem>>, vector<1x64x32xf32>
    %23 = vector.shape_cast %22 : vector<1x64x32xf32> to vector<64x32xf32>
    %c0_28 = arith.constant 0 : index
    %c0_29 = arith.constant 0 : index
    %c0_30 = arith.constant 0 : index
    %24 = vector.load %arg9[%c0_28, %c0_29, %c0_30] : memref<2x1x64xf32, #tpu.memory_space<vmem>>, vector<1x1x64xf32>
    %25 = vector.shape_cast %24 : vector<1x1x64xf32> to vector<1x64xf32>
    %c0_31 = arith.constant 0 : index
    %c0_32 = arith.constant 0 : index
    %c0_33 = arith.constant 0 : index
    %26 = vector.load %arg10[%c0_31, %c0_32, %c0_33] : memref<2x6x32xf32, #tpu.memory_space<vmem>>, vector<1x6x32xf32>
    %27 = vector.shape_cast %26 : vector<1x6x32xf32> to vector<6x32xf32>
    %28 = vector.extract_strided_slice %27 {offsets = [0, 0], sizes = [1, 32], strides = [1, 1]} : vector<6x32xf32> to vector<1x32xf32>
    %29 = vector.extract_strided_slice %27 {offsets = [1, 0], sizes = [1, 32], strides = [1, 1]} : vector<6x32xf32> to vector<1x32xf32>
    %30 = vector.extract_strided_slice %27 {offsets = [2, 0], sizes = [1, 32], strides = [1, 1]} : vector<6x32xf32> to vector<1x32xf32>
    %31 = vector.extract_strided_slice %27 {offsets = [3, 0], sizes = [1, 32], strides = [1, 1]} : vector<6x32xf32> to vector<1x32xf32>
    %32 = vector.extract_strided_slice %27 {offsets = [4, 0], sizes = [1, 32], strides = [1, 1]} : vector<6x32xf32> to vector<1x32xf32>
    %33 = vector.extract_strided_slice %27 {offsets = [5, 0], sizes = [1, 32], strides = [1, 1]} : vector<6x32xf32> to vector<1x32xf32>
    %cst_34 = arith.constant dense<0.000000e+00> : vector<16xf32>
    %34 = vector.multi_reduction <add>, %13, %cst_34 [1] : vector<16x32xf32> to vector<16xf32>
    %35 = vector.shape_cast %34 : vector<16xf32> to vector<16x1xf32>
    %cst_35 = arith.constant 3.200000e+01 : f32
    %36 = vector.broadcast %cst_35 : f32 to vector<16x1xf32>
    %37 = arith.divf %35, %36 : vector<16x1xf32>
    %38 = vector.broadcast %37 : vector<16x1xf32> to vector<16x32xf32>
    %39 = arith.subf %13, %38 : vector<16x32xf32>
    %40 = arith.mulf %39, %39 : vector<16x32xf32>
    %cst_36 = arith.constant dense<0.000000e+00> : vector<16xf32>
    %41 = vector.multi_reduction <add>, %40, %cst_36 [1] : vector<16x32xf32> to vector<16xf32>
    %42 = vector.shape_cast %41 : vector<16xf32> to vector<16x1xf32>
    %cst_37 = arith.constant 3.200000e+01 : f32
    %43 = vector.broadcast %cst_37 : f32 to vector<16x1xf32>
    %44 = arith.divf %42, %43 : vector<16x1xf32>
    %45 = vector.broadcast %37 : vector<16x1xf32> to vector<16x32xf32>
    %46 = arith.subf %13, %45 : vector<16x32xf32>
    %cst_38 = arith.constant 9.99999974E-6 : f32
    %47 = vector.broadcast %cst_38 : f32 to vector<16x1xf32>
    %48 = arith.addf %44, %47 : vector<16x1xf32>
    %49 = math.rsqrt %48 : vector<16x1xf32>
    %50 = vector.broadcast %49 : vector<16x1xf32> to vector<16x32xf32>
    %51 = arith.mulf %46, %50 : vector<16x32xf32>
    %52 = vector.broadcast %28 : vector<1x32xf32> to vector<16x32xf32>
    %53 = arith.mulf %51, %52 : vector<16x32xf32>
    %54 = vector.broadcast %29 : vector<1x32xf32> to vector<16x32xf32>
    %55 = arith.addf %53, %54 : vector<16x32xf32>
    %cst_39 = arith.constant dense<0.000000e+00> : vector<16x96xf32>
    %56 = tpu.matmul %55, %15, %cst_39 {dimension_numbers = #tpu.dot_dimension_numbers<[1], [0], [0], [1], [0, 0, 1, 1], [], []>} : vector<16x32xf32>, vector<32x96xf32>, vector<16x96xf32> -> vector<16x96xf32>
    %57 = vector.broadcast %17 : vector<1x96xf32> to vector<16x96xf32>
    %58 = arith.addf %56, %57 : vector<16x96xf32>
    %59 = vector.extract_strided_slice %58 {offsets = [0, 0], sizes = [16, 32], strides = [1, 1]} : vector<16x96xf32> to vector<16x32xf32>
    %60 = vector.extract_strided_slice %58 {offsets = [0, 32], sizes = [16, 32], strides = [1, 1]} : vector<16x96xf32> to vector<16x32xf32>
    %61 = vector.extract_strided_slice %58 {offsets = [0, 64], sizes = [16, 32], strides = [1, 1]} : vector<16x96xf32> to vector<16x32xf32>
    %cst_40 = arith.constant 0.000000e+00 : f32
    %62 = vector.broadcast %cst_40 : f32 to vector<8x32xf32>
    %63 = vector.extract_strided_slice %59 {offsets = [0, 0], sizes = [8, 8], strides = [1, 1]} : vector<16x32xf32> to vector<8x8xf32>
    %64 = vector.extract_strided_slice %60 {offsets = [0, 0], sizes = [8, 8], strides = [1, 1]} : vector<16x32xf32> to vector<8x8xf32>
    %65 = vector.extract_strided_slice %61 {offsets = [0, 0], sizes = [8, 8], strides = [1, 1]} : vector<16x32xf32> to vector<8x8xf32>
    %cst_41 = arith.constant dense<0.000000e+00> : vector<8x8xf32>
    %66 = tpu.matmul %63, %64, %cst_41 {dimension_numbers = #tpu.dot_dimension_numbers<[1], [1], [0], [0], [0, 0, 1, 0], [], []>} : vector<8x8xf32>, vector<8x8xf32>, vector<8x8xf32> -> vector<8x8xf32>
    %67 = vector.broadcast %6 : vector<1x8xf32> to vector<8x8xf32>
    %68 = arith.addf %66, %67 : vector<8x8xf32>
    %cst_42 = arith.constant dense<0xFF800000> : vector<8xf32>
    %69 = vector.multi_reduction <maximumf>, %68, %cst_42 [1] : vector<8x8xf32> to vector<8xf32>
    %70 = vector.shape_cast %69 : vector<8xf32> to vector<8x1xf32>
    %71 = vector.broadcast %70 : vector<8x1xf32> to vector<8x8xf32>
    %72 = arith.subf %68, %71 : vector<8x8xf32>
    %73 = math.exp %72 : vector<8x8xf32>
    %cst_43 = arith.constant dense<0.000000e+00> : vector<8xf32>
    %74 = vector.multi_reduction <add>, %73, %cst_43 [1] : vector<8x8xf32> to vector<8xf32>
    %75 = vector.shape_cast %74 : vector<8xf32> to vector<8x1xf32>
    %76 = tpu.reciprocal %75 {approx = true} : vector<8x1xf32> -> vector<8x1xf32>
    %77 = vector.broadcast %76 : vector<8x1xf32> to vector<8x8xf32>
    %78 = arith.mulf %73, %77 : vector<8x8xf32>
    %cst_44 = arith.constant dense<0.000000e+00> : vector<8x8xf32>
    %79 = tpu.matmul %78, %65, %cst_44 {dimension_numbers = #tpu.dot_dimension_numbers<[1], [0], [0], [1], [0, 0, 1, 1], [], []>} : vector<8x8xf32>, vector<8x8xf32>, vector<8x8xf32> -> vector<8x8xf32>
    %80 = vector.extract_strided_slice %19 {offsets = [0, 0], sizes = [8, 32], strides = [1, 1]} : vector<32x32xf32> to vector<8x32xf32>
    %cst_45 = arith.constant dense<0.000000e+00> : vector<8x32xf32>
    %81 = tpu.matmul %79, %80, %cst_45 {dimension_numbers = #tpu.dot_dimension_numbers<[1], [0], [0], [1], [0, 0, 1, 1], [], []>} : vector<8x8xf32>, vector<8x32xf32>, vector<8x32xf32> -> vector<8x32xf32>
    %82 = arith.addf %62, %81 : vector<8x32xf32>
    %83 = vector.extract_strided_slice %59 {offsets = [0, 8], sizes = [8, 8], strides = [1, 1]} : vector<16x32xf32> to vector<8x8xf32>
    %84 = vector.extract_strided_slice %60 {offsets = [0, 8], sizes = [8, 8], strides = [1, 1]} : vector<16x32xf32> to vector<8x8xf32>
    %85 = vector.extract_strided_slice %61 {offsets = [0, 8], sizes = [8, 8], strides = [1, 1]} : vector<16x32xf32> to vector<8x8xf32>
    %cst_46 = arith.constant dense<0.000000e+00> : vector<8x8xf32>
    %86 = tpu.matmul %83, %84, %cst_46 {dimension_numbers = #tpu.dot_dimension_numbers<[1], [1], [0], [0], [0, 0, 1, 0], [], []>} : vector<8x8xf32>, vector<8x8xf32>, vector<8x8xf32> -> vector<8x8xf32>
    %87 = vector.broadcast %6 : vector<1x8xf32> to vector<8x8xf32>
    %88 = arith.addf %86, %87 : vector<8x8xf32>
    %cst_47 = arith.constant dense<0xFF800000> : vector<8xf32>
    %89 = vector.multi_reduction <maximumf>, %88, %cst_47 [1] : vector<8x8xf32> to vector<8xf32>
    %90 = vector.shape_cast %89 : vector<8xf32> to vector<8x1xf32>
    %91 = vector.broadcast %90 : vector<8x1xf32> to vector<8x8xf32>
    %92 = arith.subf %88, %91 : vector<8x8xf32>
    %93 = math.exp %92 : vector<8x8xf32>
    %cst_48 = arith.constant dense<0.000000e+00> : vector<8xf32>
    %94 = vector.multi_reduction <add>, %93, %cst_48 [1] : vector<8x8xf32> to vector<8xf32>
    %95 = vector.shape_cast %94 : vector<8xf32> to vector<8x1xf32>
    %96 = tpu.reciprocal %95 {approx = true} : vector<8x1xf32> -> vector<8x1xf32>
    %97 = vector.broadcast %96 : vector<8x1xf32> to vector<8x8xf32>
    %98 = arith.mulf %93, %97 : vector<8x8xf32>
    %cst_49 = arith.constant dense<0.000000e+00> : vector<8x8xf32>
    %99 = tpu.matmul %98, %85, %cst_49 {dimension_numbers = #tpu.dot_dimension_numbers<[1], [0], [0], [1], [0, 0, 1, 1], [], []>} : vector<8x8xf32>, vector<8x8xf32>, vector<8x8xf32> -> vector<8x8xf32>
    %100 = vector.extract_strided_slice %19 {offsets = [8, 0], sizes = [8, 32], strides = [1, 1]} : vector<32x32xf32> to vector<8x32xf32>
    %cst_50 = arith.constant dense<0.000000e+00> : vector<8x32xf32>
    %101 = tpu.matmul %99, %100, %cst_50 {dimension_numbers = #tpu.dot_dimension_numbers<[1], [0], [0], [1], [0, 0, 1, 1], [], []>} : vector<8x8xf32>, vector<8x32xf32>, vector<8x32xf32> -> vector<8x32xf32>
    %102 = arith.addf %82, %101 : vector<8x32xf32>
    %103 = vector.extract_strided_slice %59 {offsets = [0, 16], sizes = [8, 8], strides = [1, 1]} : vector<16x32xf32> to vector<8x8xf32>
    %104 = vector.extract_strided_slice %60 {offsets = [0, 16], sizes = [8, 8], strides = [1, 1]} : vector<16x32xf32> to vector<8x8xf32>
    %105 = vector.extract_strided_slice %61 {offsets = [0, 16], sizes = [8, 8], strides = [1, 1]} : vector<16x32xf32> to vector<8x8xf32>
    %cst_51 = arith.constant dense<0.000000e+00> : vector<8x8xf32>
    %106 = tpu.matmul %103, %104, %cst_51 {dimension_numbers = #tpu.dot_dimension_numbers<[1], [1], [0], [0], [0, 0, 1, 0], [], []>} : vector<8x8xf32>, vector<8x8xf32>, vector<8x8xf32> -> vector<8x8xf32>
    %107 = vector.broadcast %6 : vector<1x8xf32> to vector<8x8xf32>
    %108 = arith.addf %106, %107 : vector<8x8xf32>
    %cst_52 = arith.constant dense<0xFF800000> : vector<8xf32>
    %109 = vector.multi_reduction <maximumf>, %108, %cst_52 [1] : vector<8x8xf32> to vector<8xf32>
    %110 = vector.shape_cast %109 : vector<8xf32> to vector<8x1xf32>
    %111 = vector.broadcast %110 : vector<8x1xf32> to vector<8x8xf32>
    %112 = arith.subf %108, %111 : vector<8x8xf32>
    %113 = math.exp %112 : vector<8x8xf32>
    %cst_53 = arith.constant dense<0.000000e+00> : vector<8xf32>
    %114 = vector.multi_reduction <add>, %113, %cst_53 [1] : vector<8x8xf32> to vector<8xf32>
    %115 = vector.shape_cast %114 : vector<8xf32> to vector<8x1xf32>
    %116 = tpu.reciprocal %115 {approx = true} : vector<8x1xf32> -> vector<8x1xf32>
    %117 = vector.broadcast %116 : vector<8x1xf32> to vector<8x8xf32>
    %118 = arith.mulf %113, %117 : vector<8x8xf32>
    %cst_54 = arith.constant dense<0.000000e+00> : vector<8x8xf32>
    %119 = tpu.matmul %118, %105, %cst_54 {dimension_numbers = #tpu.dot_dimension_numbers<[1], [0], [0], [1], [0, 0, 1, 1], [], []>} : vector<8x8xf32>, vector<8x8xf32>, vector<8x8xf32> -> vector<8x8xf32>
    %120 = vector.extract_strided_slice %19 {offsets = [16, 0], sizes = [8, 32], strides = [1, 1]} : vector<32x32xf32> to vector<8x32xf32>
    %cst_55 = arith.constant dense<0.000000e+00> : vector<8x32xf32>
    %121 = tpu.matmul %119, %120, %cst_55 {dimension_numbers = #tpu.dot_dimension_numbers<[1], [0], [0], [1], [0, 0, 1, 1], [], []>} : vector<8x8xf32>, vector<8x32xf32>, vector<8x32xf32> -> vector<8x32xf32>
    %122 = arith.addf %102, %121 : vector<8x32xf32>
    %123 = vector.extract_strided_slice %59 {offsets = [0, 24], sizes = [8, 8], strides = [1, 1]} : vector<16x32xf32> to vector<8x8xf32>
    %124 = vector.extract_strided_slice %60 {offsets = [0, 24], sizes = [8, 8], strides = [1, 1]} : vector<16x32xf32> to vector<8x8xf32>
    %125 = vector.extract_strided_slice %61 {offsets = [0, 24], sizes = [8, 8], strides = [1, 1]} : vector<16x32xf32> to vector<8x8xf32>
    %cst_56 = arith.constant dense<0.000000e+00> : vector<8x8xf32>
    %126 = tpu.matmul %123, %124, %cst_56 {dimension_numbers = #tpu.dot_dimension_numbers<[1], [1], [0], [0], [0, 0, 1, 0], [], []>} : vector<8x8xf32>, vector<8x8xf32>, vector<8x8xf32> -> vector<8x8xf32>
    %127 = vector.broadcast %6 : vector<1x8xf32> to vector<8x8xf32>
    %128 = arith.addf %126, %127 : vector<8x8xf32>
    %cst_57 = arith.constant dense<0xFF800000> : vector<8xf32>
    %129 = vector.multi_reduction <maximumf>, %128, %cst_57 [1] : vector<8x8xf32> to vector<8xf32>
    %130 = vector.shape_cast %129 : vector<8xf32> to vector<8x1xf32>
    %131 = vector.broadcast %130 : vector<8x1xf32> to vector<8x8xf32>
    %132 = arith.subf %128, %131 : vector<8x8xf32>
    %133 = math.exp %132 : vector<8x8xf32>
    %cst_58 = arith.constant dense<0.000000e+00> : vector<8xf32>
    %134 = vector.multi_reduction <add>, %133, %cst_58 [1] : vector<8x8xf32> to vector<8xf32>
    %135 = vector.shape_cast %134 : vector<8xf32> to vector<8x1xf32>
    %136 = tpu.reciprocal %135 {approx = true} : vector<8x1xf32> -> vector<8x1xf32>
    %137 = vector.broadcast %136 : vector<8x1xf32> to vector<8x8xf32>
    %138 = arith.mulf %133, %137 : vector<8x8xf32>
    %cst_59 = arith.constant dense<0.000000e+00> : vector<8x8xf32>
    %139 = tpu.matmul %138, %125, %cst_59 {dimension_numbers = #tpu.dot_dimension_numbers<[1], [0], [0], [1], [0, 0, 1, 1], [], []>} : vector<8x8xf32>, vector<8x8xf32>, vector<8x8xf32> -> vector<8x8xf32>
    %140 = vector.extract_strided_slice %19 {offsets = [24, 0], sizes = [8, 32], strides = [1, 1]} : vector<32x32xf32> to vector<8x32xf32>
    %cst_60 = arith.constant dense<0.000000e+00> : vector<8x32xf32>
    %141 = tpu.matmul %139, %140, %cst_60 {dimension_numbers = #tpu.dot_dimension_numbers<[1], [0], [0], [1], [0, 0, 1, 1], [], []>} : vector<8x8xf32>, vector<8x32xf32>, vector<8x32xf32> -> vector<8x32xf32>
    %142 = arith.addf %122, %141 : vector<8x32xf32>
    %cst_61 = arith.constant 0.000000e+00 : f32
    %143 = vector.broadcast %cst_61 : f32 to vector<8x32xf32>
    %144 = vector.extract_strided_slice %59 {offsets = [8, 0], sizes = [8, 8], strides = [1, 1]} : vector<16x32xf32> to vector<8x8xf32>
    %145 = vector.extract_strided_slice %60 {offsets = [8, 0], sizes = [8, 8], strides = [1, 1]} : vector<16x32xf32> to vector<8x8xf32>
    %146 = vector.extract_strided_slice %61 {offsets = [8, 0], sizes = [8, 8], strides = [1, 1]} : vector<16x32xf32> to vector<8x8xf32>
    %cst_62 = arith.constant dense<0.000000e+00> : vector<8x8xf32>
    %147 = tpu.matmul %144, %145, %cst_62 {dimension_numbers = #tpu.dot_dimension_numbers<[1], [1], [0], [0], [0, 0, 1, 0], [], []>} : vector<8x8xf32>, vector<8x8xf32>, vector<8x8xf32> -> vector<8x8xf32>
    %148 = vector.broadcast %8 : vector<1x8xf32> to vector<8x8xf32>
    %149 = arith.addf %147, %148 : vector<8x8xf32>
    %cst_63 = arith.constant dense<0xFF800000> : vector<8xf32>
    %150 = vector.multi_reduction <maximumf>, %149, %cst_63 [1] : vector<8x8xf32> to vector<8xf32>
    %151 = vector.shape_cast %150 : vector<8xf32> to vector<8x1xf32>
    %152 = vector.broadcast %151 : vector<8x1xf32> to vector<8x8xf32>
    %153 = arith.subf %149, %152 : vector<8x8xf32>
    %154 = math.exp %153 : vector<8x8xf32>
    %cst_64 = arith.constant dense<0.000000e+00> : vector<8xf32>
    %155 = vector.multi_reduction <add>, %154, %cst_64 [1] : vector<8x8xf32> to vector<8xf32>
    %156 = vector.shape_cast %155 : vector<8xf32> to vector<8x1xf32>
    %157 = tpu.reciprocal %156 {approx = true} : vector<8x1xf32> -> vector<8x1xf32>
    %158 = vector.broadcast %157 : vector<8x1xf32> to vector<8x8xf32>
    %159 = arith.mulf %154, %158 : vector<8x8xf32>
    %cst_65 = arith.constant dense<0.000000e+00> : vector<8x8xf32>
    %160 = tpu.matmul %159, %146, %cst_65 {dimension_numbers = #tpu.dot_dimension_numbers<[1], [0], [0], [1], [0, 0, 1, 1], [], []>} : vector<8x8xf32>, vector<8x8xf32>, vector<8x8xf32> -> vector<8x8xf32>
    %161 = vector.extract_strided_slice %19 {offsets = [0, 0], sizes = [8, 32], strides = [1, 1]} : vector<32x32xf32> to vector<8x32xf32>
    %cst_66 = arith.constant dense<0.000000e+00> : vector<8x32xf32>
    %162 = tpu.matmul %160, %161, %cst_66 {dimension_numbers = #tpu.dot_dimension_numbers<[1], [0], [0], [1], [0, 0, 1, 1], [], []>} : vector<8x8xf32>, vector<8x32xf32>, vector<8x32xf32> -> vector<8x32xf32>
    %163 = arith.addf %143, %162 : vector<8x32xf32>
    %164 = vector.extract_strided_slice %59 {offsets = [8, 8], sizes = [8, 8], strides = [1, 1]} : vector<16x32xf32> to vector<8x8xf32>
    %165 = vector.extract_strided_slice %60 {offsets = [8, 8], sizes = [8, 8], strides = [1, 1]} : vector<16x32xf32> to vector<8x8xf32>
    %166 = vector.extract_strided_slice %61 {offsets = [8, 8], sizes = [8, 8], strides = [1, 1]} : vector<16x32xf32> to vector<8x8xf32>
    %cst_67 = arith.constant dense<0.000000e+00> : vector<8x8xf32>
    %167 = tpu.matmul %164, %165, %cst_67 {dimension_numbers = #tpu.dot_dimension_numbers<[1], [1], [0], [0], [0, 0, 1, 0], [], []>} : vector<8x8xf32>, vector<8x8xf32>, vector<8x8xf32> -> vector<8x8xf32>
    %168 = vector.broadcast %8 : vector<1x8xf32> to vector<8x8xf32>
    %169 = arith.addf %167, %168 : vector<8x8xf32>
    %cst_68 = arith.constant dense<0xFF800000> : vector<8xf32>
    %170 = vector.multi_reduction <maximumf>, %169, %cst_68 [1] : vector<8x8xf32> to vector<8xf32>
    %171 = vector.shape_cast %170 : vector<8xf32> to vector<8x1xf32>
    %172 = vector.broadcast %171 : vector<8x1xf32> to vector<8x8xf32>
    %173 = arith.subf %169, %172 : vector<8x8xf32>
    %174 = math.exp %173 : vector<8x8xf32>
    %cst_69 = arith.constant dense<0.000000e+00> : vector<8xf32>
    %175 = vector.multi_reduction <add>, %174, %cst_69 [1] : vector<8x8xf32> to vector<8xf32>
    %176 = vector.shape_cast %175 : vector<8xf32> to vector<8x1xf32>
    %177 = tpu.reciprocal %176 {approx = true} : vector<8x1xf32> -> vector<8x1xf32>
    %178 = vector.broadcast %177 : vector<8x1xf32> to vector<8x8xf32>
    %179 = arith.mulf %174, %178 : vector<8x8xf32>
    %cst_70 = arith.constant dense<0.000000e+00> : vector<8x8xf32>
    %180 = tpu.matmul %179, %166, %cst_70 {dimension_numbers = #tpu.dot_dimension_numbers<[1], [0], [0], [1], [0, 0, 1, 1], [], []>} : vector<8x8xf32>, vector<8x8xf32>, vector<8x8xf32> -> vector<8x8xf32>
    %181 = vector.extract_strided_slice %19 {offsets = [8, 0], sizes = [8, 32], strides = [1, 1]} : vector<32x32xf32> to vector<8x32xf32>
    %cst_71 = arith.constant dense<0.000000e+00> : vector<8x32xf32>
    %182 = tpu.matmul %180, %181, %cst_71 {dimension_numbers = #tpu.dot_dimension_numbers<[1], [0], [0], [1], [0, 0, 1, 1], [], []>} : vector<8x8xf32>, vector<8x32xf32>, vector<8x32xf32> -> vector<8x32xf32>
    %183 = arith.addf %163, %182 : vector<8x32xf32>
    %184 = vector.extract_strided_slice %59 {offsets = [8, 16], sizes = [8, 8], strides = [1, 1]} : vector<16x32xf32> to vector<8x8xf32>
    %185 = vector.extract_strided_slice %60 {offsets = [8, 16], sizes = [8, 8], strides = [1, 1]} : vector<16x32xf32> to vector<8x8xf32>
    %186 = vector.extract_strided_slice %61 {offsets = [8, 16], sizes = [8, 8], strides = [1, 1]} : vector<16x32xf32> to vector<8x8xf32>
    %cst_72 = arith.constant dense<0.000000e+00> : vector<8x8xf32>
    %187 = tpu.matmul %184, %185, %cst_72 {dimension_numbers = #tpu.dot_dimension_numbers<[1], [1], [0], [0], [0, 0, 1, 0], [], []>} : vector<8x8xf32>, vector<8x8xf32>, vector<8x8xf32> -> vector<8x8xf32>
    %188 = vector.broadcast %8 : vector<1x8xf32> to vector<8x8xf32>
    %189 = arith.addf %187, %188 : vector<8x8xf32>
    %cst_73 = arith.constant dense<0xFF800000> : vector<8xf32>
    %190 = vector.multi_reduction <maximumf>, %189, %cst_73 [1] : vector<8x8xf32> to vector<8xf32>
    %191 = vector.shape_cast %190 : vector<8xf32> to vector<8x1xf32>
    %192 = vector.broadcast %191 : vector<8x1xf32> to vector<8x8xf32>
    %193 = arith.subf %189, %192 : vector<8x8xf32>
    %194 = math.exp %193 : vector<8x8xf32>
    %cst_74 = arith.constant dense<0.000000e+00> : vector<8xf32>
    %195 = vector.multi_reduction <add>, %194, %cst_74 [1] : vector<8x8xf32> to vector<8xf32>
    %196 = vector.shape_cast %195 : vector<8xf32> to vector<8x1xf32>
    %197 = tpu.reciprocal %196 {approx = true} : vector<8x1xf32> -> vector<8x1xf32>
    %198 = vector.broadcast %197 : vector<8x1xf32> to vector<8x8xf32>
    %199 = arith.mulf %194, %198 : vector<8x8xf32>
    %cst_75 = arith.constant dense<0.000000e+00> : vector<8x8xf32>
    %200 = tpu.matmul %199, %186, %cst_75 {dimension_numbers = #tpu.dot_dimension_numbers<[1], [0], [0], [1], [0, 0, 1, 1], [], []>} : vector<8x8xf32>, vector<8x8xf32>, vector<8x8xf32> -> vector<8x8xf32>
    %201 = vector.extract_strided_slice %19 {offsets = [16, 0], sizes = [8, 32], strides = [1, 1]} : vector<32x32xf32> to vector<8x32xf32>
    %cst_76 = arith.constant dense<0.000000e+00> : vector<8x32xf32>
    %202 = tpu.matmul %200, %201, %cst_76 {dimension_numbers = #tpu.dot_dimension_numbers<[1], [0], [0], [1], [0, 0, 1, 1], [], []>} : vector<8x8xf32>, vector<8x32xf32>, vector<8x32xf32> -> vector<8x32xf32>
    %203 = arith.addf %183, %202 : vector<8x32xf32>
    %204 = vector.extract_strided_slice %59 {offsets = [8, 24], sizes = [8, 8], strides = [1, 1]} : vector<16x32xf32> to vector<8x8xf32>
    %205 = vector.extract_strided_slice %60 {offsets = [8, 24], sizes = [8, 8], strides = [1, 1]} : vector<16x32xf32> to vector<8x8xf32>
    %206 = vector.extract_strided_slice %61 {offsets = [8, 24], sizes = [8, 8], strides = [1, 1]} : vector<16x32xf32> to vector<8x8xf32>
    %cst_77 = arith.constant dense<0.000000e+00> : vector<8x8xf32>
    %207 = tpu.matmul %204, %205, %cst_77 {dimension_numbers = #tpu.dot_dimension_numbers<[1], [1], [0], [0], [0, 0, 1, 0], [], []>} : vector<8x8xf32>, vector<8x8xf32>, vector<8x8xf32> -> vector<8x8xf32>
    %208 = vector.broadcast %8 : vector<1x8xf32> to vector<8x8xf32>
    %209 = arith.addf %207, %208 : vector<8x8xf32>
    %cst_78 = arith.constant dense<0xFF800000> : vector<8xf32>
    %210 = vector.multi_reduction <maximumf>, %209, %cst_78 [1] : vector<8x8xf32> to vector<8xf32>
    %211 = vector.shape_cast %210 : vector<8xf32> to vector<8x1xf32>
    %212 = vector.broadcast %211 : vector<8x1xf32> to vector<8x8xf32>
    %213 = arith.subf %209, %212 : vector<8x8xf32>
    %214 = math.exp %213 : vector<8x8xf32>
    %cst_79 = arith.constant dense<0.000000e+00> : vector<8xf32>
    %215 = vector.multi_reduction <add>, %214, %cst_79 [1] : vector<8x8xf32> to vector<8xf32>
    %216 = vector.shape_cast %215 : vector<8xf32> to vector<8x1xf32>
    %217 = tpu.reciprocal %216 {approx = true} : vector<8x1xf32> -> vector<8x1xf32>
    %218 = vector.broadcast %217 : vector<8x1xf32> to vector<8x8xf32>
    %219 = arith.mulf %214, %218 : vector<8x8xf32>
    %cst_80 = arith.constant dense<0.000000e+00> : vector<8x8xf32>
    %220 = tpu.matmul %219, %206, %cst_80 {dimension_numbers = #tpu.dot_dimension_numbers<[1], [0], [0], [1], [0, 0, 1, 1], [], []>} : vector<8x8xf32>, vector<8x8xf32>, vector<8x8xf32> -> vector<8x8xf32>
    %221 = vector.extract_strided_slice %19 {offsets = [24, 0], sizes = [8, 32], strides = [1, 1]} : vector<32x32xf32> to vector<8x32xf32>
    %cst_81 = arith.constant dense<0.000000e+00> : vector<8x32xf32>
    %222 = tpu.matmul %220, %221, %cst_81 {dimension_numbers = #tpu.dot_dimension_numbers<[1], [0], [0], [1], [0, 0, 1, 1], [], []>} : vector<8x8xf32>, vector<8x32xf32>, vector<8x32xf32> -> vector<8x32xf32>
    %223 = arith.addf %203, %222 : vector<8x32xf32>
    %224 = tpu.concatenate %142, %223 in 0 : vector<8x32xf32>, vector<8x32xf32> -> vector<16x32xf32>
    %225 = arith.addf %13, %224 : vector<16x32xf32>
    %226 = vector.broadcast %30 : vector<1x32xf32> to vector<16x32xf32>
    %227 = arith.addf %225, %226 : vector<16x32xf32>
    %cst_82 = arith.constant dense<0.000000e+00> : vector<16xf32>
    %228 = vector.multi_reduction <add>, %227, %cst_82 [1] : vector<16x32xf32> to vector<16xf32>
    %229 = vector.shape_cast %228 : vector<16xf32> to vector<16x1xf32>
    %cst_83 = arith.constant 3.200000e+01 : f32
    %230 = vector.broadcast %cst_83 : f32 to vector<16x1xf32>
    %231 = arith.divf %229, %230 : vector<16x1xf32>
    %232 = vector.broadcast %231 : vector<16x1xf32> to vector<16x32xf32>
    %233 = arith.subf %227, %232 : vector<16x32xf32>
    %234 = arith.mulf %233, %233 : vector<16x32xf32>
    %cst_84 = arith.constant dense<0.000000e+00> : vector<16xf32>
    %235 = vector.multi_reduction <add>, %234, %cst_84 [1] : vector<16x32xf32> to vector<16xf32>
    %236 = vector.shape_cast %235 : vector<16xf32> to vector<16x1xf32>
    %cst_85 = arith.constant 3.200000e+01 : f32
    %237 = vector.broadcast %cst_85 : f32 to vector<16x1xf32>
    %238 = arith.divf %236, %237 : vector<16x1xf32>
    %239 = vector.broadcast %231 : vector<16x1xf32> to vector<16x32xf32>
    %240 = arith.subf %227, %239 : vector<16x32xf32>
    %cst_86 = arith.constant 9.99999974E-6 : f32
    %241 = vector.broadcast %cst_86 : f32 to vector<16x1xf32>
    %242 = arith.addf %238, %241 : vector<16x1xf32>
    %243 = math.rsqrt %242 : vector<16x1xf32>
    %244 = vector.broadcast %243 : vector<16x1xf32> to vector<16x32xf32>
    %245 = arith.mulf %240, %244 : vector<16x32xf32>
    %246 = vector.broadcast %31 : vector<1x32xf32> to vector<16x32xf32>
    %247 = arith.mulf %245, %246 : vector<16x32xf32>
    %248 = vector.broadcast %32 : vector<1x32xf32> to vector<16x32xf32>
    %249 = arith.addf %247, %248 : vector<16x32xf32>
    %cst_87 = arith.constant dense<0.000000e+00> : vector<16x64xf32>
    %250 = tpu.matmul %249, %21, %cst_87 {dimension_numbers = #tpu.dot_dimension_numbers<[1], [0], [0], [1], [0, 0, 1, 1], [], []>} : vector<16x32xf32>, vector<32x64xf32>, vector<16x64xf32> -> vector<16x64xf32>
    %251 = vector.broadcast %25 : vector<1x64xf32> to vector<16x64xf32>
    %252 = arith.addf %250, %251 : vector<16x64xf32>
    %cst_88 = arith.constant 0.000000e+00 : f32
    %253 = vector.broadcast %cst_88 : f32 to vector<16x64xf32>
    %254 = arith.maximumf %252, %253 : vector<16x64xf32>
    %cst_89 = arith.constant dense<0.000000e+00> : vector<16x32xf32>
    %255 = tpu.matmul %254, %23, %cst_89 {dimension_numbers = #tpu.dot_dimension_numbers<[1], [0], [0], [1], [0, 0, 1, 1], [], []>} : vector<16x64xf32>, vector<64x32xf32>, vector<16x32xf32> -> vector<16x32xf32>
    %256 = arith.addf %227, %255 : vector<16x32xf32>
    %257 = vector.broadcast %33 : vector<1x32xf32> to vector<16x32xf32>
    %258 = arith.addf %256, %257 : vector<16x32xf32>
    %c1_90 = arith.constant 1 : index
    %c0_91 = arith.constant 0 : index
    %c0_92 = arith.constant 0 : index
    %259 = vector.load %arg4[%c1_90, %c0_91, %c0_92] : memref<2x32x96xf32, #tpu.memory_space<vmem>>, vector<1x32x96xf32>
    %260 = vector.shape_cast %259 : vector<1x32x96xf32> to vector<32x96xf32>
    %c1_93 = arith.constant 1 : index
    %c0_94 = arith.constant 0 : index
    %c0_95 = arith.constant 0 : index
    %261 = vector.load %arg5[%c1_93, %c0_94, %c0_95] : memref<2x1x96xf32, #tpu.memory_space<vmem>>, vector<1x1x96xf32>
    %262 = vector.shape_cast %261 : vector<1x1x96xf32> to vector<1x96xf32>
    %c1_96 = arith.constant 1 : index
    %c0_97 = arith.constant 0 : index
    %c0_98 = arith.constant 0 : index
    %263 = vector.load %arg6[%c1_96, %c0_97, %c0_98] : memref<2x32x32xf32, #tpu.memory_space<vmem>>, vector<1x32x32xf32>
    %264 = vector.shape_cast %263 : vector<1x32x32xf32> to vector<32x32xf32>
    %c1_99 = arith.constant 1 : index
    %c0_100 = arith.constant 0 : index
    %c0_101 = arith.constant 0 : index
    %265 = vector.load %arg7[%c1_99, %c0_100, %c0_101] : memref<2x32x64xf32, #tpu.memory_space<vmem>>, vector<1x32x64xf32>
    %266 = vector.shape_cast %265 : vector<1x32x64xf32> to vector<32x64xf32>
    %c1_102 = arith.constant 1 : index
    %c0_103 = arith.constant 0 : index
    %c0_104 = arith.constant 0 : index
    %267 = vector.load %arg8[%c1_102, %c0_103, %c0_104] : memref<2x64x32xf32, #tpu.memory_space<vmem>>, vector<1x64x32xf32>
    %268 = vector.shape_cast %267 : vector<1x64x32xf32> to vector<64x32xf32>
    %c1_105 = arith.constant 1 : index
    %c0_106 = arith.constant 0 : index
    %c0_107 = arith.constant 0 : index
    %269 = vector.load %arg9[%c1_105, %c0_106, %c0_107] : memref<2x1x64xf32, #tpu.memory_space<vmem>>, vector<1x1x64xf32>
    %270 = vector.shape_cast %269 : vector<1x1x64xf32> to vector<1x64xf32>
    %c1_108 = arith.constant 1 : index
    %c0_109 = arith.constant 0 : index
    %c0_110 = arith.constant 0 : index
    %271 = vector.load %arg10[%c1_108, %c0_109, %c0_110] : memref<2x6x32xf32, #tpu.memory_space<vmem>>, vector<1x6x32xf32>
    %272 = vector.shape_cast %271 : vector<1x6x32xf32> to vector<6x32xf32>
    %273 = vector.extract_strided_slice %272 {offsets = [0, 0], sizes = [1, 32], strides = [1, 1]} : vector<6x32xf32> to vector<1x32xf32>
    %274 = vector.extract_strided_slice %272 {offsets = [1, 0], sizes = [1, 32], strides = [1, 1]} : vector<6x32xf32> to vector<1x32xf32>
    %275 = vector.extract_strided_slice %272 {offsets = [2, 0], sizes = [1, 32], strides = [1, 1]} : vector<6x32xf32> to vector<1x32xf32>
    %276 = vector.extract_strided_slice %272 {offsets = [3, 0], sizes = [1, 32], strides = [1, 1]} : vector<6x32xf32> to vector<1x32xf32>
    %277 = vector.extract_strided_slice %272 {offsets = [4, 0], sizes = [1, 32], strides = [1, 1]} : vector<6x32xf32> to vector<1x32xf32>
    %278 = vector.extract_strided_slice %272 {offsets = [5, 0], sizes = [1, 32], strides = [1, 1]} : vector<6x32xf32> to vector<1x32xf32>
    %cst_111 = arith.constant dense<0.000000e+00> : vector<16xf32>
    %279 = vector.multi_reduction <add>, %258, %cst_111 [1] : vector<16x32xf32> to vector<16xf32>
    %280 = vector.shape_cast %279 : vector<16xf32> to vector<16x1xf32>
    %cst_112 = arith.constant 3.200000e+01 : f32
    %281 = vector.broadcast %cst_112 : f32 to vector<16x1xf32>
    %282 = arith.divf %280, %281 : vector<16x1xf32>
    %283 = vector.broadcast %282 : vector<16x1xf32> to vector<16x32xf32>
    %284 = arith.subf %258, %283 : vector<16x32xf32>
    %285 = arith.mulf %284, %284 : vector<16x32xf32>
    %cst_113 = arith.constant dense<0.000000e+00> : vector<16xf32>
    %286 = vector.multi_reduction <add>, %285, %cst_113 [1] : vector<16x32xf32> to vector<16xf32>
    %287 = vector.shape_cast %286 : vector<16xf32> to vector<16x1xf32>
    %cst_114 = arith.constant 3.200000e+01 : f32
    %288 = vector.broadcast %cst_114 : f32 to vector<16x1xf32>
    %289 = arith.divf %287, %288 : vector<16x1xf32>
    %290 = vector.broadcast %282 : vector<16x1xf32> to vector<16x32xf32>
    %291 = arith.subf %258, %290 : vector<16x32xf32>
    %cst_115 = arith.constant 9.99999974E-6 : f32
    %292 = vector.broadcast %cst_115 : f32 to vector<16x1xf32>
    %293 = arith.addf %289, %292 : vector<16x1xf32>
    %294 = math.rsqrt %293 : vector<16x1xf32>
    %295 = vector.broadcast %294 : vector<16x1xf32> to vector<16x32xf32>
    %296 = arith.mulf %291, %295 : vector<16x32xf32>
    %297 = vector.broadcast %273 : vector<1x32xf32> to vector<16x32xf32>
    %298 = arith.mulf %296, %297 : vector<16x32xf32>
    %299 = vector.broadcast %274 : vector<1x32xf32> to vector<16x32xf32>
    %300 = arith.addf %298, %299 : vector<16x32xf32>
    %cst_116 = arith.constant dense<0.000000e+00> : vector<16x96xf32>
    %301 = tpu.matmul %300, %260, %cst_116 {dimension_numbers = #tpu.dot_dimension_numbers<[1], [0], [0], [1], [0, 0, 1, 1], [], []>} : vector<16x32xf32>, vector<32x96xf32>, vector<16x96xf32> -> vector<16x96xf32>
    %302 = vector.broadcast %262 : vector<1x96xf32> to vector<16x96xf32>
    %303 = arith.addf %301, %302 : vector<16x96xf32>
    %304 = vector.extract_strided_slice %303 {offsets = [0, 0], sizes = [16, 32], strides = [1, 1]} : vector<16x96xf32> to vector<16x32xf32>
    %305 = vector.extract_strided_slice %303 {offsets = [0, 32], sizes = [16, 32], strides = [1, 1]} : vector<16x96xf32> to vector<16x32xf32>
    %306 = vector.extract_strided_slice %303 {offsets = [0, 64], sizes = [16, 32], strides = [1, 1]} : vector<16x96xf32> to vector<16x32xf32>
    %cst_117 = arith.constant 0.000000e+00 : f32
    %307 = vector.broadcast %cst_117 : f32 to vector<8x32xf32>
    %308 = vector.extract_strided_slice %304 {offsets = [0, 0], sizes = [8, 8], strides = [1, 1]} : vector<16x32xf32> to vector<8x8xf32>
    %309 = vector.extract_strided_slice %305 {offsets = [0, 0], sizes = [8, 8], strides = [1, 1]} : vector<16x32xf32> to vector<8x8xf32>
    %310 = vector.extract_strided_slice %306 {offsets = [0, 0], sizes = [8, 8], strides = [1, 1]} : vector<16x32xf32> to vector<8x8xf32>
    %cst_118 = arith.constant dense<0.000000e+00> : vector<8x8xf32>
    %311 = tpu.matmul %308, %309, %cst_118 {dimension_numbers = #tpu.dot_dimension_numbers<[1], [1], [0], [0], [0, 0, 1, 0], [], []>} : vector<8x8xf32>, vector<8x8xf32>, vector<8x8xf32> -> vector<8x8xf32>
    %312 = vector.broadcast %6 : vector<1x8xf32> to vector<8x8xf32>
    %313 = arith.addf %311, %312 : vector<8x8xf32>
    %cst_119 = arith.constant dense<0xFF800000> : vector<8xf32>
    %314 = vector.multi_reduction <maximumf>, %313, %cst_119 [1] : vector<8x8xf32> to vector<8xf32>
    %315 = vector.shape_cast %314 : vector<8xf32> to vector<8x1xf32>
    %316 = vector.broadcast %315 : vector<8x1xf32> to vector<8x8xf32>
    %317 = arith.subf %313, %316 : vector<8x8xf32>
    %318 = math.exp %317 : vector<8x8xf32>
    %cst_120 = arith.constant dense<0.000000e+00> : vector<8xf32>
    %319 = vector.multi_reduction <add>, %318, %cst_120 [1] : vector<8x8xf32> to vector<8xf32>
    %320 = vector.shape_cast %319 : vector<8xf32> to vector<8x1xf32>
    %321 = tpu.reciprocal %320 {approx = true} : vector<8x1xf32> -> vector<8x1xf32>
    %322 = vector.broadcast %321 : vector<8x1xf32> to vector<8x8xf32>
    %323 = arith.mulf %318, %322 : vector<8x8xf32>
    %cst_121 = arith.constant dense<0.000000e+00> : vector<8x8xf32>
    %324 = tpu.matmul %323, %310, %cst_121 {dimension_numbers = #tpu.dot_dimension_numbers<[1], [0], [0], [1], [0, 0, 1, 1], [], []>} : vector<8x8xf32>, vector<8x8xf32>, vector<8x8xf32> -> vector<8x8xf32>
    %325 = vector.extract_strided_slice %264 {offsets = [0, 0], sizes = [8, 32], strides = [1, 1]} : vector<32x32xf32> to vector<8x32xf32>
    %cst_122 = arith.constant dense<0.000000e+00> : vector<8x32xf32>
    %326 = tpu.matmul %324, %325, %cst_122 {dimension_numbers = #tpu.dot_dimension_numbers<[1], [0], [0], [1], [0, 0, 1, 1], [], []>} : vector<8x8xf32>, vector<8x32xf32>, vector<8x32xf32> -> vector<8x32xf32>
    %327 = arith.addf %307, %326 : vector<8x32xf32>
    %328 = vector.extract_strided_slice %304 {offsets = [0, 8], sizes = [8, 8], strides = [1, 1]} : vector<16x32xf32> to vector<8x8xf32>
    %329 = vector.extract_strided_slice %305 {offsets = [0, 8], sizes = [8, 8], strides = [1, 1]} : vector<16x32xf32> to vector<8x8xf32>
    %330 = vector.extract_strided_slice %306 {offsets = [0, 8], sizes = [8, 8], strides = [1, 1]} : vector<16x32xf32> to vector<8x8xf32>
    %cst_123 = arith.constant dense<0.000000e+00> : vector<8x8xf32>
    %331 = tpu.matmul %328, %329, %cst_123 {dimension_numbers = #tpu.dot_dimension_numbers<[1], [1], [0], [0], [0, 0, 1, 0], [], []>} : vector<8x8xf32>, vector<8x8xf32>, vector<8x8xf32> -> vector<8x8xf32>
    %332 = vector.broadcast %6 : vector<1x8xf32> to vector<8x8xf32>
    %333 = arith.addf %331, %332 : vector<8x8xf32>
    %cst_124 = arith.constant dense<0xFF800000> : vector<8xf32>
    %334 = vector.multi_reduction <maximumf>, %333, %cst_124 [1] : vector<8x8xf32> to vector<8xf32>
    %335 = vector.shape_cast %334 : vector<8xf32> to vector<8x1xf32>
    %336 = vector.broadcast %335 : vector<8x1xf32> to vector<8x8xf32>
    %337 = arith.subf %333, %336 : vector<8x8xf32>
    %338 = math.exp %337 : vector<8x8xf32>
    %cst_125 = arith.constant dense<0.000000e+00> : vector<8xf32>
    %339 = vector.multi_reduction <add>, %338, %cst_125 [1] : vector<8x8xf32> to vector<8xf32>
    %340 = vector.shape_cast %339 : vector<8xf32> to vector<8x1xf32>
    %341 = tpu.reciprocal %340 {approx = true} : vector<8x1xf32> -> vector<8x1xf32>
    %342 = vector.broadcast %341 : vector<8x1xf32> to vector<8x8xf32>
    %343 = arith.mulf %338, %342 : vector<8x8xf32>
    %cst_126 = arith.constant dense<0.000000e+00> : vector<8x8xf32>
    %344 = tpu.matmul %343, %330, %cst_126 {dimension_numbers = #tpu.dot_dimension_numbers<[1], [0], [0], [1], [0, 0, 1, 1], [], []>} : vector<8x8xf32>, vector<8x8xf32>, vector<8x8xf32> -> vector<8x8xf32>
    %345 = vector.extract_strided_slice %264 {offsets = [8, 0], sizes = [8, 32], strides = [1, 1]} : vector<32x32xf32> to vector<8x32xf32>
    %cst_127 = arith.constant dense<0.000000e+00> : vector<8x32xf32>
    %346 = tpu.matmul %344, %345, %cst_127 {dimension_numbers = #tpu.dot_dimension_numbers<[1], [0], [0], [1], [0, 0, 1, 1], [], []>} : vector<8x8xf32>, vector<8x32xf32>, vector<8x32xf32> -> vector<8x32xf32>
    %347 = arith.addf %327, %346 : vector<8x32xf32>
    %348 = vector.extract_strided_slice %304 {offsets = [0, 16], sizes = [8, 8], strides = [1, 1]} : vector<16x32xf32> to vector<8x8xf32>
    %349 = vector.extract_strided_slice %305 {offsets = [0, 16], sizes = [8, 8], strides = [1, 1]} : vector<16x32xf32> to vector<8x8xf32>
    %350 = vector.extract_strided_slice %306 {offsets = [0, 16], sizes = [8, 8], strides = [1, 1]} : vector<16x32xf32> to vector<8x8xf32>
    %cst_128 = arith.constant dense<0.000000e+00> : vector<8x8xf32>
    %351 = tpu.matmul %348, %349, %cst_128 {dimension_numbers = #tpu.dot_dimension_numbers<[1], [1], [0], [0], [0, 0, 1, 0], [], []>} : vector<8x8xf32>, vector<8x8xf32>, vector<8x8xf32> -> vector<8x8xf32>
    %352 = vector.broadcast %6 : vector<1x8xf32> to vector<8x8xf32>
    %353 = arith.addf %351, %352 : vector<8x8xf32>
    %cst_129 = arith.constant dense<0xFF800000> : vector<8xf32>
    %354 = vector.multi_reduction <maximumf>, %353, %cst_129 [1] : vector<8x8xf32> to vector<8xf32>
    %355 = vector.shape_cast %354 : vector<8xf32> to vector<8x1xf32>
    %356 = vector.broadcast %355 : vector<8x1xf32> to vector<8x8xf32>
    %357 = arith.subf %353, %356 : vector<8x8xf32>
    %358 = math.exp %357 : vector<8x8xf32>
    %cst_130 = arith.constant dense<0.000000e+00> : vector<8xf32>
    %359 = vector.multi_reduction <add>, %358, %cst_130 [1] : vector<8x8xf32> to vector<8xf32>
    %360 = vector.shape_cast %359 : vector<8xf32> to vector<8x1xf32>
    %361 = tpu.reciprocal %360 {approx = true} : vector<8x1xf32> -> vector<8x1xf32>
    %362 = vector.broadcast %361 : vector<8x1xf32> to vector<8x8xf32>
    %363 = arith.mulf %358, %362 : vector<8x8xf32>
    %cst_131 = arith.constant dense<0.000000e+00> : vector<8x8xf32>
    %364 = tpu.matmul %363, %350, %cst_131 {dimension_numbers = #tpu.dot_dimension_numbers<[1], [0], [0], [1], [0, 0, 1, 1], [], []>} : vector<8x8xf32>, vector<8x8xf32>, vector<8x8xf32> -> vector<8x8xf32>
    %365 = vector.extract_strided_slice %264 {offsets = [16, 0], sizes = [8, 32], strides = [1, 1]} : vector<32x32xf32> to vector<8x32xf32>
    %cst_132 = arith.constant dense<0.000000e+00> : vector<8x32xf32>
    %366 = tpu.matmul %364, %365, %cst_132 {dimension_numbers = #tpu.dot_dimension_numbers<[1], [0], [0], [1], [0, 0, 1, 1], [], []>} : vector<8x8xf32>, vector<8x32xf32>, vector<8x32xf32> -> vector<8x32xf32>
    %367 = arith.addf %347, %366 : vector<8x32xf32>
    %368 = vector.extract_strided_slice %304 {offsets = [0, 24], sizes = [8, 8], strides = [1, 1]} : vector<16x32xf32> to vector<8x8xf32>
    %369 = vector.extract_strided_slice %305 {offsets = [0, 24], sizes = [8, 8], strides = [1, 1]} : vector<16x32xf32> to vector<8x8xf32>
    %370 = vector.extract_strided_slice %306 {offsets = [0, 24], sizes = [8, 8], strides = [1, 1]} : vector<16x32xf32> to vector<8x8xf32>
    %cst_133 = arith.constant dense<0.000000e+00> : vector<8x8xf32>
    %371 = tpu.matmul %368, %369, %cst_133 {dimension_numbers = #tpu.dot_dimension_numbers<[1], [1], [0], [0], [0, 0, 1, 0], [], []>} : vector<8x8xf32>, vector<8x8xf32>, vector<8x8xf32> -> vector<8x8xf32>
    %372 = vector.broadcast %6 : vector<1x8xf32> to vector<8x8xf32>
    %373 = arith.addf %371, %372 : vector<8x8xf32>
    %cst_134 = arith.constant dense<0xFF800000> : vector<8xf32>
    %374 = vector.multi_reduction <maximumf>, %373, %cst_134 [1] : vector<8x8xf32> to vector<8xf32>
    %375 = vector.shape_cast %374 : vector<8xf32> to vector<8x1xf32>
    %376 = vector.broadcast %375 : vector<8x1xf32> to vector<8x8xf32>
    %377 = arith.subf %373, %376 : vector<8x8xf32>
    %378 = math.exp %377 : vector<8x8xf32>
    %cst_135 = arith.constant dense<0.000000e+00> : vector<8xf32>
    %379 = vector.multi_reduction <add>, %378, %cst_135 [1] : vector<8x8xf32> to vector<8xf32>
    %380 = vector.shape_cast %379 : vector<8xf32> to vector<8x1xf32>
    %381 = tpu.reciprocal %380 {approx = true} : vector<8x1xf32> -> vector<8x1xf32>
    %382 = vector.broadcast %381 : vector<8x1xf32> to vector<8x8xf32>
    %383 = arith.mulf %378, %382 : vector<8x8xf32>
    %cst_136 = arith.constant dense<0.000000e+00> : vector<8x8xf32>
    %384 = tpu.matmul %383, %370, %cst_136 {dimension_numbers = #tpu.dot_dimension_numbers<[1], [0], [0], [1], [0, 0, 1, 1], [], []>} : vector<8x8xf32>, vector<8x8xf32>, vector<8x8xf32> -> vector<8x8xf32>
    %385 = vector.extract_strided_slice %264 {offsets = [24, 0], sizes = [8, 32], strides = [1, 1]} : vector<32x32xf32> to vector<8x32xf32>
    %cst_137 = arith.constant dense<0.000000e+00> : vector<8x32xf32>
    %386 = tpu.matmul %384, %385, %cst_137 {dimension_numbers = #tpu.dot_dimension_numbers<[1], [0], [0], [1], [0, 0, 1, 1], [], []>} : vector<8x8xf32>, vector<8x32xf32>, vector<8x32xf32> -> vector<8x32xf32>
    %387 = arith.addf %367, %386 : vector<8x32xf32>
    %cst_138 = arith.constant 0.000000e+00 : f32
    %388 = vector.broadcast %cst_138 : f32 to vector<8x32xf32>
    %389 = vector.extract_strided_slice %304 {offsets = [8, 0], sizes = [8, 8], strides = [1, 1]} : vector<16x32xf32> to vector<8x8xf32>
    %390 = vector.extract_strided_slice %305 {offsets = [8, 0], sizes = [8, 8], strides = [1, 1]} : vector<16x32xf32> to vector<8x8xf32>
    %391 = vector.extract_strided_slice %306 {offsets = [8, 0], sizes = [8, 8], strides = [1, 1]} : vector<16x32xf32> to vector<8x8xf32>
    %cst_139 = arith.constant dense<0.000000e+00> : vector<8x8xf32>
    %392 = tpu.matmul %389, %390, %cst_139 {dimension_numbers = #tpu.dot_dimension_numbers<[1], [1], [0], [0], [0, 0, 1, 0], [], []>} : vector<8x8xf32>, vector<8x8xf32>, vector<8x8xf32> -> vector<8x8xf32>
    %393 = vector.broadcast %8 : vector<1x8xf32> to vector<8x8xf32>
    %394 = arith.addf %392, %393 : vector<8x8xf32>
    %cst_140 = arith.constant dense<0xFF800000> : vector<8xf32>
    %395 = vector.multi_reduction <maximumf>, %394, %cst_140 [1] : vector<8x8xf32> to vector<8xf32>
    %396 = vector.shape_cast %395 : vector<8xf32> to vector<8x1xf32>
    %397 = vector.broadcast %396 : vector<8x1xf32> to vector<8x8xf32>
    %398 = arith.subf %394, %397 : vector<8x8xf32>
    %399 = math.exp %398 : vector<8x8xf32>
    %cst_141 = arith.constant dense<0.000000e+00> : vector<8xf32>
    %400 = vector.multi_reduction <add>, %399, %cst_141 [1] : vector<8x8xf32> to vector<8xf32>
    %401 = vector.shape_cast %400 : vector<8xf32> to vector<8x1xf32>
    %402 = tpu.reciprocal %401 {approx = true} : vector<8x1xf32> -> vector<8x1xf32>
    %403 = vector.broadcast %402 : vector<8x1xf32> to vector<8x8xf32>
    %404 = arith.mulf %399, %403 : vector<8x8xf32>
    %cst_142 = arith.constant dense<0.000000e+00> : vector<8x8xf32>
    %405 = tpu.matmul %404, %391, %cst_142 {dimension_numbers = #tpu.dot_dimension_numbers<[1], [0], [0], [1], [0, 0, 1, 1], [], []>} : vector<8x8xf32>, vector<8x8xf32>, vector<8x8xf32> -> vector<8x8xf32>
    %406 = vector.extract_strided_slice %264 {offsets = [0, 0], sizes = [8, 32], strides = [1, 1]} : vector<32x32xf32> to vector<8x32xf32>
    %cst_143 = arith.constant dense<0.000000e+00> : vector<8x32xf32>
    %407 = tpu.matmul %405, %406, %cst_143 {dimension_numbers = #tpu.dot_dimension_numbers<[1], [0], [0], [1], [0, 0, 1, 1], [], []>} : vector<8x8xf32>, vector<8x32xf32>, vector<8x32xf32> -> vector<8x32xf32>
    %408 = arith.addf %388, %407 : vector<8x32xf32>
    %409 = vector.extract_strided_slice %304 {offsets = [8, 8], sizes = [8, 8], strides = [1, 1]} : vector<16x32xf32> to vector<8x8xf32>
    %410 = vector.extract_strided_slice %305 {offsets = [8, 8], sizes = [8, 8], strides = [1, 1]} : vector<16x32xf32> to vector<8x8xf32>
    %411 = vector.extract_strided_slice %306 {offsets = [8, 8], sizes = [8, 8], strides = [1, 1]} : vector<16x32xf32> to vector<8x8xf32>
    %cst_144 = arith.constant dense<0.000000e+00> : vector<8x8xf32>
    %412 = tpu.matmul %409, %410, %cst_144 {dimension_numbers = #tpu.dot_dimension_numbers<[1], [1], [0], [0], [0, 0, 1, 0], [], []>} : vector<8x8xf32>, vector<8x8xf32>, vector<8x8xf32> -> vector<8x8xf32>
    %413 = vector.broadcast %8 : vector<1x8xf32> to vector<8x8xf32>
    %414 = arith.addf %412, %413 : vector<8x8xf32>
    %cst_145 = arith.constant dense<0xFF800000> : vector<8xf32>
    %415 = vector.multi_reduction <maximumf>, %414, %cst_145 [1] : vector<8x8xf32> to vector<8xf32>
    %416 = vector.shape_cast %415 : vector<8xf32> to vector<8x1xf32>
    %417 = vector.broadcast %416 : vector<8x1xf32> to vector<8x8xf32>
    %418 = arith.subf %414, %417 : vector<8x8xf32>
    %419 = math.exp %418 : vector<8x8xf32>
    %cst_146 = arith.constant dense<0.000000e+00> : vector<8xf32>
    %420 = vector.multi_reduction <add>, %419, %cst_146 [1] : vector<8x8xf32> to vector<8xf32>
    %421 = vector.shape_cast %420 : vector<8xf32> to vector<8x1xf32>
    %422 = tpu.reciprocal %421 {approx = true} : vector<8x1xf32> -> vector<8x1xf32>
    %423 = vector.broadcast %422 : vector<8x1xf32> to vector<8x8xf32>
    %424 = arith.mulf %419, %423 : vector<8x8xf32>
    %cst_147 = arith.constant dense<0.000000e+00> : vector<8x8xf32>
    %425 = tpu.matmul %424, %411, %cst_147 {dimension_numbers = #tpu.dot_dimension_numbers<[1], [0], [0], [1], [0, 0, 1, 1], [], []>} : vector<8x8xf32>, vector<8x8xf32>, vector<8x8xf32> -> vector<8x8xf32>
    %426 = vector.extract_strided_slice %264 {offsets = [8, 0], sizes = [8, 32], strides = [1, 1]} : vector<32x32xf32> to vector<8x32xf32>
    %cst_148 = arith.constant dense<0.000000e+00> : vector<8x32xf32>
    %427 = tpu.matmul %425, %426, %cst_148 {dimension_numbers = #tpu.dot_dimension_numbers<[1], [0], [0], [1], [0, 0, 1, 1], [], []>} : vector<8x8xf32>, vector<8x32xf32>, vector<8x32xf32> -> vector<8x32xf32>
    %428 = arith.addf %408, %427 : vector<8x32xf32>
    %429 = vector.extract_strided_slice %304 {offsets = [8, 16], sizes = [8, 8], strides = [1, 1]} : vector<16x32xf32> to vector<8x8xf32>
    %430 = vector.extract_strided_slice %305 {offsets = [8, 16], sizes = [8, 8], strides = [1, 1]} : vector<16x32xf32> to vector<8x8xf32>
    %431 = vector.extract_strided_slice %306 {offsets = [8, 16], sizes = [8, 8], strides = [1, 1]} : vector<16x32xf32> to vector<8x8xf32>
    %cst_149 = arith.constant dense<0.000000e+00> : vector<8x8xf32>
    %432 = tpu.matmul %429, %430, %cst_149 {dimension_numbers = #tpu.dot_dimension_numbers<[1], [1], [0], [0], [0, 0, 1, 0], [], []>} : vector<8x8xf32>, vector<8x8xf32>, vector<8x8xf32> -> vector<8x8xf32>
    %433 = vector.broadcast %8 : vector<1x8xf32> to vector<8x8xf32>
    %434 = arith.addf %432, %433 : vector<8x8xf32>
    %cst_150 = arith.constant dense<0xFF800000> : vector<8xf32>
    %435 = vector.multi_reduction <maximumf>, %434, %cst_150 [1] : vector<8x8xf32> to vector<8xf32>
    %436 = vector.shape_cast %435 : vector<8xf32> to vector<8x1xf32>
    %437 = vector.broadcast %436 : vector<8x1xf32> to vector<8x8xf32>
    %438 = arith.subf %434, %437 : vector<8x8xf32>
    %439 = math.exp %438 : vector<8x8xf32>
    %cst_151 = arith.constant dense<0.000000e+00> : vector<8xf32>
    %440 = vector.multi_reduction <add>, %439, %cst_151 [1] : vector<8x8xf32> to vector<8xf32>
    %441 = vector.shape_cast %440 : vector<8xf32> to vector<8x1xf32>
    %442 = tpu.reciprocal %441 {approx = true} : vector<8x1xf32> -> vector<8x1xf32>
    %443 = vector.broadcast %442 : vector<8x1xf32> to vector<8x8xf32>
    %444 = arith.mulf %439, %443 : vector<8x8xf32>
    %cst_152 = arith.constant dense<0.000000e+00> : vector<8x8xf32>
    %445 = tpu.matmul %444, %431, %cst_152 {dimension_numbers = #tpu.dot_dimension_numbers<[1], [0], [0], [1], [0, 0, 1, 1], [], []>} : vector<8x8xf32>, vector<8x8xf32>, vector<8x8xf32> -> vector<8x8xf32>
    %446 = vector.extract_strided_slice %264 {offsets = [16, 0], sizes = [8, 32], strides = [1, 1]} : vector<32x32xf32> to vector<8x32xf32>
    %cst_153 = arith.constant dense<0.000000e+00> : vector<8x32xf32>
    %447 = tpu.matmul %445, %446, %cst_153 {dimension_numbers = #tpu.dot_dimension_numbers<[1], [0], [0], [1], [0, 0, 1, 1], [], []>} : vector<8x8xf32>, vector<8x32xf32>, vector<8x32xf32> -> vector<8x32xf32>
    %448 = arith.addf %428, %447 : vector<8x32xf32>
    %449 = vector.extract_strided_slice %304 {offsets = [8, 24], sizes = [8, 8], strides = [1, 1]} : vector<16x32xf32> to vector<8x8xf32>
    %450 = vector.extract_strided_slice %305 {offsets = [8, 24], sizes = [8, 8], strides = [1, 1]} : vector<16x32xf32> to vector<8x8xf32>
    %451 = vector.extract_strided_slice %306 {offsets = [8, 24], sizes = [8, 8], strides = [1, 1]} : vector<16x32xf32> to vector<8x8xf32>
    %cst_154 = arith.constant dense<0.000000e+00> : vector<8x8xf32>
    %452 = tpu.matmul %449, %450, %cst_154 {dimension_numbers = #tpu.dot_dimension_numbers<[1], [1], [0], [0], [0, 0, 1, 0], [], []>} : vector<8x8xf32>, vector<8x8xf32>, vector<8x8xf32> -> vector<8x8xf32>
    %453 = vector.broadcast %8 : vector<1x8xf32> to vector<8x8xf32>
    %454 = arith.addf %452, %453 : vector<8x8xf32>
    %cst_155 = arith.constant dense<0xFF800000> : vector<8xf32>
    %455 = vector.multi_reduction <maximumf>, %454, %cst_155 [1] : vector<8x8xf32> to vector<8xf32>
    %456 = vector.shape_cast %455 : vector<8xf32> to vector<8x1xf32>
    %457 = vector.broadcast %456 : vector<8x1xf32> to vector<8x8xf32>
    %458 = arith.subf %454, %457 : vector<8x8xf32>
    %459 = math.exp %458 : vector<8x8xf32>
    %cst_156 = arith.constant dense<0.000000e+00> : vector<8xf32>
    %460 = vector.multi_reduction <add>, %459, %cst_156 [1] : vector<8x8xf32> to vector<8xf32>
    %461 = vector.shape_cast %460 : vector<8xf32> to vector<8x1xf32>
    %462 = tpu.reciprocal %461 {approx = true} : vector<8x1xf32> -> vector<8x1xf32>
    %463 = vector.broadcast %462 : vector<8x1xf32> to vector<8x8xf32>
    %464 = arith.mulf %459, %463 : vector<8x8xf32>
    %cst_157 = arith.constant dense<0.000000e+00> : vector<8x8xf32>
    %465 = tpu.matmul %464, %451, %cst_157 {dimension_numbers = #tpu.dot_dimension_numbers<[1], [0], [0], [1], [0, 0, 1, 1], [], []>} : vector<8x8xf32>, vector<8x8xf32>, vector<8x8xf32> -> vector<8x8xf32>
    %466 = vector.extract_strided_slice %264 {offsets = [24, 0], sizes = [8, 32], strides = [1, 1]} : vector<32x32xf32> to vector<8x32xf32>
    %cst_158 = arith.constant dense<0.000000e+00> : vector<8x32xf32>
    %467 = tpu.matmul %465, %466, %cst_158 {dimension_numbers = #tpu.dot_dimension_numbers<[1], [0], [0], [1], [0, 0, 1, 1], [], []>} : vector<8x8xf32>, vector<8x32xf32>, vector<8x32xf32> -> vector<8x32xf32>
    %468 = arith.addf %448, %467 : vector<8x32xf32>
    %469 = tpu.concatenate %387, %468 in 0 : vector<8x32xf32>, vector<8x32xf32> -> vector<16x32xf32>
    %470 = arith.addf %258, %469 : vector<16x32xf32>
    %471 = vector.broadcast %275 : vector<1x32xf32> to vector<16x32xf32>
    %472 = arith.addf %470, %471 : vector<16x32xf32>
    %cst_159 = arith.constant dense<0.000000e+00> : vector<16xf32>
    %473 = vector.multi_reduction <add>, %472, %cst_159 [1] : vector<16x32xf32> to vector<16xf32>
    %474 = vector.shape_cast %473 : vector<16xf32> to vector<16x1xf32>
    %cst_160 = arith.constant 3.200000e+01 : f32
    %475 = vector.broadcast %cst_160 : f32 to vector<16x1xf32>
    %476 = arith.divf %474, %475 : vector<16x1xf32>
    %477 = vector.broadcast %476 : vector<16x1xf32> to vector<16x32xf32>
    %478 = arith.subf %472, %477 : vector<16x32xf32>
    %479 = arith.mulf %478, %478 : vector<16x32xf32>
    %cst_161 = arith.constant dense<0.000000e+00> : vector<16xf32>
    %480 = vector.multi_reduction <add>, %479, %cst_161 [1] : vector<16x32xf32> to vector<16xf32>
    %481 = vector.shape_cast %480 : vector<16xf32> to vector<16x1xf32>
    %cst_162 = arith.constant 3.200000e+01 : f32
    %482 = vector.broadcast %cst_162 : f32 to vector<16x1xf32>
    %483 = arith.divf %481, %482 : vector<16x1xf32>
    %484 = vector.broadcast %476 : vector<16x1xf32> to vector<16x32xf32>
    %485 = arith.subf %472, %484 : vector<16x32xf32>
    %cst_163 = arith.constant 9.99999974E-6 : f32
    %486 = vector.broadcast %cst_163 : f32 to vector<16x1xf32>
    %487 = arith.addf %483, %486 : vector<16x1xf32>
    %488 = math.rsqrt %487 : vector<16x1xf32>
    %489 = vector.broadcast %488 : vector<16x1xf32> to vector<16x32xf32>
    %490 = arith.mulf %485, %489 : vector<16x32xf32>
    %491 = vector.broadcast %276 : vector<1x32xf32> to vector<16x32xf32>
    %492 = arith.mulf %490, %491 : vector<16x32xf32>
    %493 = vector.broadcast %277 : vector<1x32xf32> to vector<16x32xf32>
    %494 = arith.addf %492, %493 : vector<16x32xf32>
    %cst_164 = arith.constant dense<0.000000e+00> : vector<16x64xf32>
    %495 = tpu.matmul %494, %266, %cst_164 {dimension_numbers = #tpu.dot_dimension_numbers<[1], [0], [0], [1], [0, 0, 1, 1], [], []>} : vector<16x32xf32>, vector<32x64xf32>, vector<16x64xf32> -> vector<16x64xf32>
    %496 = vector.broadcast %270 : vector<1x64xf32> to vector<16x64xf32>
    %497 = arith.addf %495, %496 : vector<16x64xf32>
    %cst_165 = arith.constant 0.000000e+00 : f32
    %498 = vector.broadcast %cst_165 : f32 to vector<16x64xf32>
    %499 = arith.maximumf %497, %498 : vector<16x64xf32>
    %cst_166 = arith.constant dense<0.000000e+00> : vector<16x32xf32>
    %500 = tpu.matmul %499, %268, %cst_166 {dimension_numbers = #tpu.dot_dimension_numbers<[1], [0], [0], [1], [0, 0, 1, 1], [], []>} : vector<16x64xf32>, vector<64x32xf32>, vector<16x32xf32> -> vector<16x32xf32>
    %501 = arith.addf %472, %500 : vector<16x32xf32>
    %502 = vector.broadcast %278 : vector<1x32xf32> to vector<16x32xf32>
    %503 = arith.addf %501, %502 : vector<16x32xf32>
    %c0_167 = arith.constant 0 : index
    %c0_168 = arith.constant 0 : index
    %504 = vector.load %arg11[%c0_167, %c0_168] : memref<1x32xf32, #tpu.memory_space<vmem>>, vector<1x32xf32>
    %c0_169 = arith.constant 0 : index
    %c0_170 = arith.constant 0 : index
    %505 = vector.load %arg12[%c0_169, %c0_170] : memref<1x32xf32, #tpu.memory_space<vmem>>, vector<1x32xf32>
    %cst_171 = arith.constant dense<0.000000e+00> : vector<16xf32>
    %506 = vector.multi_reduction <add>, %503, %cst_171 [1] : vector<16x32xf32> to vector<16xf32>
    %507 = vector.shape_cast %506 : vector<16xf32> to vector<16x1xf32>
    %cst_172 = arith.constant 3.200000e+01 : f32
    %508 = vector.broadcast %cst_172 : f32 to vector<16x1xf32>
    %509 = arith.divf %507, %508 : vector<16x1xf32>
    %510 = vector.broadcast %509 : vector<16x1xf32> to vector<16x32xf32>
    %511 = arith.subf %503, %510 : vector<16x32xf32>
    %512 = arith.mulf %511, %511 : vector<16x32xf32>
    %cst_173 = arith.constant dense<0.000000e+00> : vector<16xf32>
    %513 = vector.multi_reduction <add>, %512, %cst_173 [1] : vector<16x32xf32> to vector<16xf32>
    %514 = vector.shape_cast %513 : vector<16xf32> to vector<16x1xf32>
    %cst_174 = arith.constant 3.200000e+01 : f32
    %515 = vector.broadcast %cst_174 : f32 to vector<16x1xf32>
    %516 = arith.divf %514, %515 : vector<16x1xf32>
    %517 = vector.broadcast %509 : vector<16x1xf32> to vector<16x32xf32>
    %518 = arith.subf %503, %517 : vector<16x32xf32>
    %cst_175 = arith.constant 9.99999974E-6 : f32
    %519 = vector.broadcast %cst_175 : f32 to vector<16x1xf32>
    %520 = arith.addf %516, %519 : vector<16x1xf32>
    %521 = math.rsqrt %520 : vector<16x1xf32>
    %522 = vector.broadcast %521 : vector<16x1xf32> to vector<16x32xf32>
    %523 = arith.mulf %518, %522 : vector<16x32xf32>
    %524 = vector.broadcast %504 : vector<1x32xf32> to vector<16x32xf32>
    %525 = arith.mulf %523, %524 : vector<16x32xf32>
    %526 = vector.broadcast %505 : vector<1x32xf32> to vector<16x32xf32>
    %527 = arith.addf %525, %526 : vector<16x32xf32>
    %528 = vector.extract_strided_slice %527 {offsets = [0, 0], sizes = [8, 32], strides = [1, 1]} : vector<16x32xf32> to vector<8x32xf32>
    %c0_176 = arith.constant 0 : index
    %c0_177 = arith.constant 0 : index
    %c0_178 = arith.constant 0 : index
    %529 = vector.load %arg13[%c0_176, %c0_177, %c0_178] : memref<2x8x32xf32, #tpu.memory_space<vmem>>, vector<1x8x32xf32>
    %530 = vector.shape_cast %529 : vector<1x8x32xf32> to vector<8x32xf32>
    %531 = vector.shape_cast %528 : vector<8x32xf32> to vector<1x8x32xf32>
    tpu.vector_store %arg13[%c0_176, %c0_177, %c0_178], %531 {strides = array<i32>} : memref<2x8x32xf32, #tpu.memory_space<vmem>>, vector<1x8x32xf32>,
    %532 = vector.extract_strided_slice %527 {offsets = [8, 0], sizes = [8, 32], strides = [1, 1]} : vector<16x32xf32> to vector<8x32xf32>
    %c1_179 = arith.constant 1 : index
    %c0_180 = arith.constant 0 : index
    %c0_181 = arith.constant 0 : index
    %533 = vector.load %arg13[%c1_179, %c0_180, %c0_181] : memref<2x8x32xf32, #tpu.memory_space<vmem>>, vector<1x8x32xf32>
    %534 = vector.shape_cast %533 : vector<1x8x32xf32> to vector<8x32xf32>
    %535 = vector.shape_cast %532 : vector<8x32xf32> to vector<1x8x32xf32>
    tpu.vector_store %arg13[%c1_179, %c0_180, %c0_181], %535 {strides = array<i32>} : memref<2x8x32xf32, #tpu.memory_space<vmem>>, vector<1x8x32xf32>,
    return
  }
  func.func @transform_0(%arg0: i32) -> (i32, i32, i32) {
    %c0_i32 = arith.constant 0 : i32
    %c0_i32_0 = arith.constant 0 : i32
    %c0_i32_1 = arith.constant 0 : i32
    return %arg0, %c0_i32, %c0_i32_0 : i32, i32, i32
  }
  func.func @transform_1(%arg0: i32) -> (i32, i32) {
    %c0_i32 = arith.constant 0 : i32
    %c0_i32_0 = arith.constant 0 : i32
    %c0_i32_1 = arith.constant 0 : i32
    return %c0_i32, %c0_i32_0 : i32, i32
  }
  func.func @transform_2(%arg0: i32) -> (i32, i32) {
    %c0_i32 = arith.constant 0 : i32
    %c0_i32_0 = arith.constant 0 : i32
    %c0_i32_1 = arith.constant 0 : i32
    return %c0_i32, %c0_i32_0 : i32, i32
  }
  func.func @transform_3(%arg0: i32) -> (i32, i32, i32) {
    %c0_i32 = arith.constant 0 : i32
    %c0_i32_0 = arith.constant 0 : i32
    %c0_i32_1 = arith.constant 0 : i32
    %c0_i32_2 = arith.constant 0 : i32
    return %c0_i32, %c0_i32_0, %c0_i32_1 : i32, i32, i32
  }
  func.func @transform_4(%arg0: i32) -> (i32, i32, i32) {
    %c0_i32 = arith.constant 0 : i32
    %c0_i32_0 = arith.constant 0 : i32
    %c0_i32_1 = arith.constant 0 : i32
    %c0_i32_2 = arith.constant 0 : i32
    return %c0_i32, %c0_i32_0, %c0_i32_1 : i32, i32, i32
  }
  func.func @transform_5(%arg0: i32) -> (i32, i32, i32) {
    %c0_i32 = arith.constant 0 : i32
    %c0_i32_0 = arith.constant 0 : i32
    %c0_i32_1 = arith.constant 0 : i32
    %c0_i32_2 = arith.constant 0 : i32
    return %c0_i32, %c0_i32_0, %c0_i32_1 : i32, i32, i32
  }
  func.func @transform_6(%arg0: i32) -> (i32, i32, i32) {
    %c0_i32 = arith.constant 0 : i32
    %c0_i32_0 = arith.constant 0 : i32
    %c0_i32_1 = arith.constant 0 : i32
    %c0_i32_2 = arith.constant 0 : i32
    return %c0_i32, %c0_i32_0, %c0_i32_1 : i32, i32, i32
  }
  func.func @transform_7(%arg0: i32) -> (i32, i32, i32) {
    %c0_i32 = arith.constant 0 : i32
    %c0_i32_0 = arith.constant 0 : i32
    %c0_i32_1 = arith.constant 0 : i32
    %c0_i32_2 = arith.constant 0 : i32
    return %c0_i32, %c0_i32_0, %c0_i32_1 : i32, i32, i32
  }
  func.func @transform_8(%arg0: i32) -> (i32, i32, i32) {
    %c0_i32 = arith.constant 0 : i32
    %c0_i32_0 = arith.constant 0 : i32
    %c0_i32_1 = arith.constant 0 : i32
    %c0_i32_2 = arith.constant 0 : i32
    return %c0_i32, %c0_i32_0, %c0_i32_1 : i32, i32, i32
  }
  func.func @transform_9(%arg0: i32) -> (i32, i32, i32) {
    %c0_i32 = arith.constant 0 : i32
    %c0_i32_0 = arith.constant 0 : i32
    %c0_i32_1 = arith.constant 0 : i32
    %c0_i32_2 = arith.constant 0 : i32
    return %c0_i32, %c0_i32_0, %c0_i32_1 : i32, i32, i32
  }
  func.func @transform_10(%arg0: i32) -> (i32, i32) {
    %c0_i32 = arith.constant 0 : i32
    %c0_i32_0 = arith.constant 0 : i32
    %c0_i32_1 = arith.constant 0 : i32
    return %c0_i32, %c0_i32_0 : i32, i32
  }
  func.func @transform_11(%arg0: i32) -> (i32, i32) {
    %c0_i32 = arith.constant 0 : i32
    %c0_i32_0 = arith.constant 0 : i32
    %c0_i32_1 = arith.constant 0 : i32
    return %c0_i32, %c0_i32_0 : i32, i32
  }
  func.func @transform_12(%arg0: i32) -> (i32, i32, i32) {
    %c0_i32 = arith.constant 0 : i32
    %c0_i32_0 = arith.constant 0 : i32
    %c0_i32_1 = arith.constant 0 : i32
    return %arg0, %c0_i32, %c0_i32_0 : i32, i32, i32
  }
}

</mosaic_0001>

<llo_original>
// kernel: tpu_custom_call.1
$region0: #{tpu_custom_call.1}
  #allocation0 [shape = 'u32[]', space=smem, size = 0x4, offset = 0x4, fixed_abs, tag = 'smem constant byte address 0x4 - core index']
  #allocation1 [shape = 'u32[144,128]{1,0:T(1,128)}', space=vmem, size = 0x12000, scoped, tag = 'internal scratch']
  %s0 = inlined_call_operand.vmem [shape: f32[2,9,16], index: 0, kind: input, shape index: {}]
  %s1 = inlined_call_operand.vmem [shape: f32[16,32], index: 1, kind: input, shape index: {}]
  %s2 = inlined_call_operand.vmem [shape: f32[1,32], index: 2, kind: input, shape index: {}]
  %s3 = inlined_call_operand.vmem [shape: f32[2,32,96], index: 3, kind: input, shape index: {}]
  %s4 = inlined_call_operand.vmem [shape: f32[2,1,96], index: 4, kind: input, shape index: {}]
  %s5 = inlined_call_operand.vmem [shape: f32[2,32,32], index: 5, kind: input, shape index: {}]
  %s6 = inlined_call_operand.vmem [shape: f32[2,32,64], index: 6, kind: input, shape index: {}]
  %s7 = inlined_call_operand.vmem [shape: f32[2,64,32], index: 7, kind: input, shape index: {}]
  %s8 = inlined_call_operand.vmem [shape: f32[2,1,64], index: 8, kind: input, shape index: {}]
  %s9 = inlined_call_operand.vmem [shape: f32[2,6,32], index: 9, kind: input, shape index: {}]
  %s10 = inlined_call_operand.vmem [shape: f32[1,32], index: 10, kind: input, shape index: {}]
  %s11 = inlined_call_operand.vmem [shape: f32[1,32], index: 11, kind: input, shape index: {}]
  %s12 = inlined_call_operand.hbm [shape: f32[2,8,32], index: 12, kind: output, shape index: {}]
  %s13 = sld [smem:[#allocation0]]
  $region58: #{tpu_custom_call.1} parent=0
    _
  %s15 = ssub.s32 1, %s13
  %s16 = scalar_select 0, %s15, %s13
  $region1: #{tpu_custom_call.1} parent=0
    #allocation2 [shape = 'u8[8192]{0}', space=vmem, size = 0x2000, scoped, tag = 'output window, operand 0, single buffered']
    #allocation3 [shape = 's32[1]{0}', space=sflag, size = 0x4, scoped, tag = 'scoped memory for tpu_custom_call.1']
    %17 = vsyncpa [#allocation3], 0
    // Predicated region
    $region2: #{tpu_custom_call.1} parent=1 // pred_check
      _
    $region3: #{tpu_custom_call.1} parent=1 // pred_check_branch
      %19 = sbr.rel (0) target = $region5
    $region4: #{tpu_custom_call.1} parent=1 // pred_region
      _
    $region5: #{tpu_custom_call.1} parent=1 // pred_fallthru
      _
    // Predicated region
    $region6: #{tpu_custom_call.1} parent=1 // pred_check
      _
    $region7: #{tpu_custom_call.1} parent=1 // pred_check_branch
      %21 = sbr.rel (0) target = $region9
    $region8: #{tpu_custom_call.1} parent=1 // pred_region
      _
    $region9: #{tpu_custom_call.1} parent=1 // pred_fallthru
      _
    // Predicated region
    $region10: #{tpu_custom_call.1} parent=1 // pred_check
      _
    $region11: #{tpu_custom_call.1} parent=1 // pred_check_branch
      %23 = sbr.rel (0) target = $region13
    $region12: #{tpu_custom_call.1} parent=1 // pred_region
      _
    $region13: #{tpu_custom_call.1} parent=1 // pred_fallthru
      _
    // Predicated region
    $region14: #{tpu_custom_call.1} parent=1 // pred_check
      _
    $region15: #{tpu_custom_call.1} parent=1 // pred_check_branch
      %25 = sbr.rel (0) target = $region17
    $region16: #{tpu_custom_call.1} parent=1 // pred_region
      _
    $region17: #{tpu_custom_call.1} parent=1 // pred_fallthru
      _
    // Predicated region
    $region18: #{tpu_custom_call.1} parent=1 // pred_check
      _
    $region19: #{tpu_custom_call.1} parent=1 // pred_check_branch
      %27 = sbr.rel (0) target = $region21
    $region20: #{tpu_custom_call.1} parent=1 // pred_region
      _
    $region21: #{tpu_custom_call.1} parent=1 // pred_fallthru
      _
    // Predicated region
    $region22: #{tpu_custom_call.1} parent=1 // pred_check
      _
    $region23: #{tpu_custom_call.1} parent=1 // pred_check_branch
      %29 = sbr.rel (0) target = $region25
    $region24: #{tpu_custom_call.1} parent=1 // pred_region
      _
    $region25: #{tpu_custom_call.1} parent=1 // pred_fallthru
      _
    // Predicated region
    $region26: #{tpu_custom_call.1} parent=1 // pred_check
      _
    $region27: #{tpu_custom_call.1} parent=1 // pred_check_branch
      %31 = sbr.rel (0) target = $region29
    $region28: #{tpu_custom_call.1} parent=1 // pred_region
      _
    $region29: #{tpu_custom_call.1} parent=1 // pred_fallthru
      _
    // Predicated region
    $region30: #{tpu_custom_call.1} parent=1 // pred_check
      _
    $region31: #{tpu_custom_call.1} parent=1 // pred_check_branch
      %33 = sbr.rel (0) target = $region33
    $region32: #{tpu_custom_call.1} parent=1 // pred_region
      _
    $region33: #{tpu_custom_call.1} parent=1 // pred_fallthru
      _
    // Predicated region
    $region34: #{tpu_custom_call.1} parent=1 // pred_check
      _
    $region35: #{tpu_custom_call.1} parent=1 // pred_check_branch
      %35 = sbr.rel (0) target = $region37
    $region36: #{tpu_custom_call.1} parent=1 // pred_region
      _
    $region37: #{tpu_custom_call.1} parent=1 // pred_fallthru
      _
    // Predicated region
    $region38: #{tpu_custom_call.1} parent=1 // pred_check
      _
    $region39: #{tpu_custom_call.1} parent=1 // pred_check_branch
      %37 = sbr.rel (0) target = $region41
    $region40: #{tpu_custom_call.1} parent=1 // pred_region
      _
    $region41: #{tpu_custom_call.1} parent=1 // pred_fallthru
      _
    // Predicated region
    $region42: #{tpu_custom_call.1} parent=1 // pred_check
      _
    $region43: #{tpu_custom_call.1} parent=1 // pred_check_branch
      %39 = sbr.rel (0) target = $region45
    $region44: #{tpu_custom_call.1} parent=1 // pred_region
      _
    $region45: #{tpu_custom_call.1} parent=1 // pred_fallthru
      _
    // Predicated region
    $region46: #{tpu_custom_call.1} parent=1 // pred_check
      _
    $region47: #{tpu_custom_call.1} parent=1 // pred_check_branch
      %41 = sbr.rel (0) target = $region49
    $region48: #{tpu_custom_call.1} parent=1 // pred_region
      _
    $region49: #{tpu_custom_call.1} parent=1 // pred_fallthru
      _
    %v42 = vld [vmem:[%s0] sm:$0xff]
    %s43 = scalar_lea.vmem %s0, 16
    %v44 = vld [vmem:[%s43] sm:$0xff]
    %v45 = vld [vmem:[%s0 + $0x8] sm:$0x1]
    %v46 = vld [vmem:[%s43 + $0x8] sm:$0x1]
    %v47 = vld [vmem:[%s1] sm:$0xff]
    %v48 = vld [vmem:[%s1 + $0x8] sm:$0xff]
    %v49 = vld [vmem:[%s2] sm:$0x1]
    %v51 = vlaneseq
    %v52 = vshrl.u32 %v51, 7
    %v53 = vsub.s32 0, %v52
    %v54 = vrot.slane %v49, %v53
    %vm56 = vcmask 130048
    %v58 = vsel %vm56, %v42, 0
    %v61 = vsel %vm56, %v44, 0
    %63 = vmatprep.subr.mxu0 0.0
    %64 = vmatpush1.msra.mxu0 %v47
    %65 = vmatprep.subr.mxu0 0.0
    %66 = vmatpush1.msra.mxu0 %v48
    %67 = vmatprep.subr.mxu0 0.0
    %68 = vmatpush1.msra.mxu0 0.0
    %69 = vmatprep.subr.mxu0 0.0
    %70 = vmatpush1.msra.mxu0 0.0
    %71 = vmatprep.subr.mxu0 0.0
    %72 = vmatpush1.msra.mxu0 0.0
    %73 = vmatprep.subr.mxu0 0.0
    %74 = vmatpush1.msra.mxu0 0.0
    %75 = vmatprep.subr.mxu0 0.0
    %76 = vmatpush1.msra.mxu0 0.0
    %77 = vmatprep.subr.mxu0 0.0
    %78 = vmatpush1.msra.mxu0 0.0
    %79 = vmatprep.subr.mxu0 0.0
    %80 = vmatpush1.msra.mxu0 0.0
    %81 = vmatprep.subr.mxu0 0.0
    %82 = vmatpush1.msra.mxu0 0.0
    %83 = vmatprep.subr.mxu0 0.0
    %84 = vmatpush1.msra.mxu0 0.0
    %85 = vmatprep.subr.mxu0 0.0
    %86 = vmatpush1.msra.mxu0 0.0
    %87 = vmatprep.subr.mxu0 0.0
    %88 = vmatpush1.msra.mxu0 0.0
    %89 = vmatprep.subr.mxu0 0.0
    %90 = vmatpush1.msra.mxu0 0.0
    %91 = vmatprep.subr.mxu0 0.0
    %92 = vmatpush1.msra.mxu0 0.0
    %93 = vmatprep.subr.mxu0 0.0
    %94 = vmatpush1.msra.mxu0 0.0
    %95 = vmatprep.subr.mxu0 0.0
    %96 = vmatpush1.msra.mxu0 0.0
    %97 = vmatprep.subr.mxu0 0.0
    %98 = vmatpush1.msra.mxu0 0.0
    %99 = vmatprep.subr.mxu0 0.0
    %100 = vmatpush1.msra.mxu0 0.0
    %101 = vmatprep.subr.mxu0 0.0
    %102 = vmatpush1.msra.mxu0 0.0
    %103 = vmatprep.subr.mxu0 0.0
    %104 = vmatpush1.msra.mxu0 0.0
    %105 = vmatprep.subr.mxu0 0.0
    %106 = vmatpush1.msra.mxu0 0.0
    %107 = vmatprep.subr.mxu0 0.0
    %108 = vmatpush1.msra.mxu0 0.0
    %109 = vmatprep.subr.mxu0 0.0
    %110 = vmatpush1.msra.mxu0 0.0
    %111 = vmatprep.subr.mxu0 0.0
    %112 = vmatpush1.msra.mxu0 0.0
    %113 = vmatprep.subr.mxu0 0.0
    %114 = vmatpush1.msra.mxu0 0.0
    %115 = vmatprep.subr.mxu0 0.0
    %116 = vmatpush1.msra.mxu0 0.0
    %117 = vmatprep.subr.mxu0 0.0
    %118 = vmatpush1.msra.mxu0 0.0
    %119 = vmatprep.subr.mxu0 0.0
    %120 = vmatpush1.msra.mxu0 0.0
    %121 = vmatprep.subr.mxu0 0.0
    %122 = vmatpush1.msra.mxu0 0.0
    %123 = vmatprep.subr.mxu0 0.0
    %124 = vmatpush1.msra.mxu0 0.0
    %125 = vmatprep.subr.mxu0 0.0
    %126 = vmatpush1.msra.mxu0 0.0
    %127 = vmatprep.mubr.f32.mxu0 0.0
    %128 = vmatmul.mubr.f32.gmra.mrb[0].mxu0 %v58
    %v129 = vpop.f32.mrb[0].mxu0
    %v130 = vadd.f32 %v54, %v129
    %v131 = vpop.f32.mrb[0].mxu0
    %132 = vmatprep.mubr.f32.mxu0 0.0
    %133 = vmatmul.mubr.f32.gmra.mrb[0].mxu0 %v61
    %v134 = vpop.f32.mrb[0].mxu0
    %v135 = vadd.f32 %v54, %v134
    %v136 = vpop.f32.mrb[0].mxu0
    %137 = vdwg.mxu0
    %v138 = vld [vmem:[%s3] sm:$0xff]
    %v139 = vld [vmem:[%s3 + $0x8] sm:$0xff]
    %v140 = vld [vmem:[%s3 + $0x10] sm:$0xff]
    %v141 = vld [vmem:[%s3 + $0x18] sm:$0xff]
    %v142 = vld [vmem:[%s4] sm:$0x1]
    %v143 = vld [vmem:[%s5] sm:$0xff]
    %v144 = vld [vmem:[%s5 + $0x8] sm:$0xff]
    %v145 = vld [vmem:[%s5 + $0x10] sm:$0xff]
    %v146 = vld [vmem:[%s5 + $0x18] sm:$0xff]
    %v147 = vld [vmem:[%s6] sm:$0xff]
    %v148 = vld [vmem:[%s6 + $0x8] sm:$0xff]
    %v149 = vld [vmem:[%s6 + $0x10] sm:$0xff]
    %v150 = vld [vmem:[%s6 + $0x18] sm:$0xff]
    %v151 = vld [vmem:[%s7] sm:$0xff]
    %v152 = vld [vmem:[%s7 + $0x8] sm:$0xff]
    %v153 = vld [vmem:[%s7 + $0x10] sm:$0xff]
    %v154 = vld [vmem:[%s7 + $0x18] sm:$0xff]
    %v155 = vld [vmem:[%s7 + $0x20] sm:$0xff]
    %v156 = vld [vmem:[%s7 + $0x28] sm:$0xff]
    %v157 = vld [vmem:[%s7 + $0x30] sm:$0xff]
    %v158 = vld [vmem:[%s7 + $0x38] sm:$0xff]
    %v159 = vld [vmem:[%s8] sm:$0x1]
    %v160 = vld [vmem:[%s9] sm:$0x3f]
    %vm161 = vcmask 261120
    %v162 = vsel %vm161, %v130, 0.0
    %163 = vadd.xlane.f32.xlu0 %v162
    %v164 = vpop.xlane.xlu0 %163
    %v165 = vsel %vm161, %v135, 0.0
    %166 = vadd.xlane.f32.xlu0 %v165
    %v167 = vpop.xlane.xlu0 %166
    %v168 = vrcp.pop 32.0
    %v169 = vmul.f32 %v164, %v168
    %v170 = vmul.f32 %v167, %v168
    %v171 = vsub.f32 %v130, %v169
    %v172 = vsub.f32 %v135, %v170
    %v173 = vmul.f32 %v171, %v171
    %v174 = vmul.f32 %v172, %v172
    %v175 = vsel %vm161, %v173, 0.0
    %176 = vadd.xlane.f32.xlu0 %v175
    %v177 = vpop.xlane.xlu0 %176
    %v178 = vsel %vm161, %v174, 0.0
    %179 = vadd.xlane.f32.xlu0 %v178
    %v180 = vpop.xlane.xlu0 %179
    %v181 = vmul.f32 %v177, %v168
    %v182 = vmul.f32 %v180, %v168
    %v183 = vadd.f32 %v181, 1e-05
    %v184 = vadd.f32 %v182, 1e-05
    %v185 = vrsqrt.pop %v183
    %v186 = vrsqrt.pop %v184
    %v187 = vmul.f32 %v171, %v185
    %v188 = vmul.f32 %v172, %v186
    %v189 = vlaneseq
    %v190 = vshrl.u32 %v189, 7
    %v191 = vsub.s32 0, %v190
    %v192 = vrot.slane %v160, %v191
    %v193 = vmul.f32 %v187, %v192
    %v194 = vmul.f32 %v188, %v192
    %v195 = vlaneseq
    %v196 = vshrl.u32 %v195, 7
    %v197 = vsub.s32 1, %v196
    %v198 = vrot.slane %v160, %v197
    %v199 = vadd.f32 %v193, %v198
    %v200 = vadd.f32 %v194, %v198
    %v202 = vlaneseq
    %v203 = vshrl.u32 %v202, 7
    %v204 = vsub.s32 0, %v203
    %v205 = vrot.slane %v142, %v204
    %v208 = vsel %vm161, %v199, 0
    %v211 = vsel %vm161, %v200, 0
    %213 = vmatprep.subr.mxu0 0.0
    %214 = vmatpush1.msra.mxu0 %v138
    %215 = vmatprep.subr.mxu0 0.0
    %216 = vmatpush1.msra.mxu0 %v139
    %217 = vmatprep.subr.mxu0 0.0
    %218 = vmatpush1.msra.mxu0 %v140
    %219 = vmatprep.subr.mxu0 0.0
    %220 = vmatpush1.msra.mxu0 %v141
    %221 = vmatprep.subr.mxu0 0.0
    %222 = vmatpush1.msra.mxu0 0.0
    %223 = vmatprep.subr.mxu0 0.0
    %224 = vmatpush1.msra.mxu0 0.0
    %225 = vmatprep.subr.mxu0 0.0
    %226 = vmatpush1.msra.mxu0 0.0
    %227 = vmatprep.subr.mxu0 0.0
    %228 = vmatpush1.msra.mxu0 0.0
    %229 = vmatprep.subr.mxu0 0.0
    %230 = vmatpush1.msra.mxu0 0.0
    %231 = vmatprep.subr.mxu0 0.0
    %232 = vmatpush1.msra.mxu0 0.0
    %233 = vmatprep.subr.mxu0 0.0
    %234 = vmatpush1.msra.mxu0 0.0
    %235 = vmatprep.subr.mxu0 0.0
    %236 = vmatpush1.msra.mxu0 0.0
    %237 = vmatprep.subr.mxu0 0.0
    %238 = vmatpush1.msra.mxu0 0.0
    %239 = vmatprep.subr.mxu0 0.0
    %240 = vmatpush1.msra.mxu0 0.0
    %241 = vmatprep.subr.mxu0 0.0
    %242 = vmatpush1.msra.mxu0 0.0
    %243 = vmatprep.subr.mxu0 0.0
    %244 = vmatpush1.msra.mxu0 0.0
    %245 = vmatprep.subr.mxu0 0.0
    %246 = vmatpush1.msra.mxu0 0.0
    %247 = vmatprep.subr.mxu0 0.0
    %248 = vmatpush1.msra.mxu0 0.0
    %249 = vmatprep.subr.mxu0 0.0
    %250 = vmatpush1.msra.mxu0 0.0
    %251 = vmatprep.subr.mxu0 0.0
    %252 = vmatpush1.msra.mxu0 0.0
    %253 = vmatprep.subr.mxu0 0.0
    %254 = vmatpush1.msra.mxu0 0.0
    %255 = vmatprep.subr.mxu0 0.0
    %256 = vmatpush1.msra.mxu0 0.0
    %257 = vmatprep.subr.mxu0 0.0
    %258 = vmatpush1.msra.mxu0 0.0
    %259 = vmatprep.subr.mxu0 0.0
    %260 = vmatpush1.msra.mxu0 0.0
    %261 = vmatprep.subr.mxu0 0.0
    %262 = vmatpush1.msra.mxu0 0.0
    %263 = vmatprep.subr.mxu0 0.0
    %264 = vmatpush1.msra.mxu0 0.0
    %265 = vmatprep.subr.mxu0 0.0
    %266 = vmatpush1.msra.mxu0 0.0
    %267 = vmatprep.subr.mxu0 0.0
    %268 = vmatpush1.msra.mxu0 0.0
    %269 = vmatprep.subr.mxu0 0.0
    %270 = vmatpush1.msra.mxu0 0.0
    %271 = vmatprep.subr.mxu0 0.0
    %272 = vmatpush1.msra.mxu0 0.0
    %273 = vmatprep.subr.mxu0 0.0
    %274 = vmatpush1.msra.mxu0 0.0
    %275 = vmatprep.subr.mxu0 0.0
    %276 = vmatpush1.msra.mxu0 0.0
    %277 = vmatprep.mubr.f32.mxu0 0.0
    %278 = vmatmul.mubr.f32.gmra.mrb[0].mxu0 %v208
    %v279 = vpop.f32.mrb[0].mxu0
    %v280 = vadd.f32 %v205, %v279
    %v281 = vpop.f32.mrb[0].mxu0
    %282 = vmatprep.mubr.f32.mxu0 0.0
    %283 = vmatmul.mubr.f32.gmra.mrb[0].mxu0 %v211
    %v284 = vpop.f32.mrb[0].mxu0
    %v285 = vadd.f32 %v205, %v284
    %v286 = vpop.f32.mrb[0].mxu0
    %287 = vdwg.mxu0
    %v288 = vlaneseq
    %v289 = vshrl.u32 %v288, 7
    %v290 = vsub.s32 0, %v289
    %v291 = vrot.slane %v45, %v290
    %293 = vrot.lane.b32.xlu0 %v280, 96
    %v294 = vpop.permute.xlu0 %293
    %vm295 = vcmask 64512
    %v296 = vsel %vm295, %v280, 0
    %v298 = vsel %vm295, %v294, 0
    %300 = vmatprep.subr.mxu0 0.0
    %301 = vmatpush1.xpose.msra.mxu0 %v298
    %302 = vmatprep.subr.mxu0 0.0
    %303 = vmatpush1.xpose.msra.mxu0 0.0
    %304 = vmatprep.subr.mxu0 0.0
    %305 = vmatpush1.xpose.msra.mxu0 0.0
    %306 = vmatprep.subr.mxu0 0.0
    %307 = vmatpush1.xpose.msra.mxu0 0.0
    %308 = vmatprep.subr.mxu0 0.0
    %309 = vmatpush1.xpose.msra.mxu0 0.0
    %310 = vmatprep.subr.mxu0 0.0
    %311 = vmatpush1.xpose.msra.mxu0 0.0
    %312 = vmatprep.subr.mxu0 0.0
    %313 = vmatpush1.xpose.msra.mxu0 0.0
    %314 = vmatprep.subr.mxu0 0.0
    %315 = vmatpush1.xpose.msra.mxu0 0.0
    %316 = vmatprep.subr.mxu0 0.0
    %317 = vmatpush1.xpose.msra.mxu0 0.0
    %318 = vmatprep.subr.mxu0 0.0
    %319 = vmatpush1.xpose.msra.mxu0 0.0
    %320 = vmatprep.subr.mxu0 0.0
    %321 = vmatpush1.xpose.msra.mxu0 0.0
    %322 = vmatprep.subr.mxu0 0.0
    %323 = vmatpush1.xpose.msra.mxu0 0.0
    %324 = vmatprep.subr.mxu0 0.0
    %325 = vmatpush1.xpose.msra.mxu0 0.0
    %326 = vmatprep.subr.mxu0 0.0
    %327 = vmatpush1.xpose.msra.mxu0 0.0
    %328 = vmatprep.subr.mxu0 0.0
    %329 = vmatpush1.xpose.msra.mxu0 0.0
    %330 = vmatprep.subr.mxu0 0.0
    %331 = vmatpush1.xpose.msra.mxu0 0.0
    %332 = vmatprep.subr.mxu0 0.0
    %333 = vmatpush1.xpose.msra.mxu0 0.0
    %334 = vmatprep.subr.mxu0 0.0
    %335 = vmatpush1.xpose.msra.mxu0 0.0
    %336 = vmatprep.subr.mxu0 0.0
    %337 = vmatpush1.xpose.msra.mxu0 0.0
    %338 = vmatprep.subr.mxu0 0.0
    %339 = vmatpush1.xpose.msra.mxu0 0.0
    %340 = vmatprep.subr.mxu0 0.0
    %341 = vmatpush1.xpose.msra.mxu0 0.0
    %342 = vmatprep.subr.mxu0 0.0
    %343 = vmatpush1.xpose.msra.mxu0 0.0
    %344 = vmatprep.subr.mxu0 0.0
    %345 = vmatpush1.xpose.msra.mxu0 0.0
    %346 = vmatprep.subr.mxu0 0.0
    %347 = vmatpush1.xpose.msra.mxu0 0.0
    %348 = vmatprep.subr.mxu0 0.0
    %349 = vmatpush1.xpose.msra.mxu0 0.0
    %350 = vmatprep.subr.mxu0 0.0
    %351 = vmatpush1.xpose.msra.mxu0 0.0
    %352 = vmatprep.subr.mxu0 0.0
    %353 = vmatpush1.xpose.msra.mxu0 0.0
    %354 = vmatprep.subr.mxu0 0.0
    %355 = vmatpush1.xpose.msra.mxu0 0.0
    %356 = vmatprep.subr.mxu0 0.0
    %357 = vmatpush1.xpose.msra.mxu0 0.0
    %358 = vmatprep.subr.mxu0 0.0
    %359 = vmatpush1.xpose.msra.mxu0 0.0
    %360 = vmatprep.subr.mxu0 0.0
    %361 = vmatpush1.xpose.msra.mxu0 0.0
    %362 = vmatprep.subr.mxu0 0.0
    %363 = vmatpush1.xpose.msra.mxu0 0.0
    %364 = vmatprep.mubr.f32.mxu0 0.0
    %365 = vmatmul.mubr.f32.gmra.mrb[0].mxu0 %v296
    %v366 = vpop.f32.mrb[0].mxu0
    %v367 = vadd.f32 %v291, %v366
    %v368 = vpop.f32.mrb[0].mxu0
    %369 = vdwg.mxu0
    %v370 = vsel %vm295, %v367, -inf
    %371 = vmax.xlane.f32.xlu0 %v370
    %v372 = vpop.xlane.xlu0 %371
    %v373 = vsub.f32 %v367, %v372
    %v374 = vmul.f32 %v373, 1.442695
    %v375 = vpow.pop %v374
    %v376 = vsel %vm295, %v375, 0.0
    %377 = vadd.xlane.f32.xlu0 %v376
    %v378 = vpop.xlane.xlu0 %377
    %v379 = vrcp.pop %v378
    %v380 = vmul.f32 %v375, %v379
    %381 = vrot.lane.b32.xlu0 %v280, 64
    %v382 = vpop.permute.xlu0 %381
    %v385 = vsel %vm295, %v380, 0
    %387 = vmatprep.subr.mxu0 0.0
    %388 = vmatpush1.msra.mxu0 %v382
    %389 = vmatprep.subr.mxu0 0.0
    %390 = vmatpush1.msra.mxu0 0.0
    %391 = vmatprep.subr.mxu0 0.0
    %392 = vmatpush1.msra.mxu0 0.0
    %393 = vmatprep.subr.mxu0 0.0
    %394 = vmatpush1.msra.mxu0 0.0
    %395 = vmatprep.subr.mxu0 0.0
    %396 = vmatpush1.msra.mxu0 0.0
    %397 = vmatprep.subr.mxu0 0.0
    %398 = vmatpush1.msra.mxu0 0.0
    %399 = vmatprep.subr.mxu0 0.0
    %400 = vmatpush1.msra.mxu0 0.0
    %401 = vmatprep.subr.mxu0 0.0
    %402 = vmatpush1.msra.mxu0 0.0
    %403 = vmatprep.subr.mxu0 0.0
    %404 = vmatpush1.msra.mxu0 0.0
    %405 = vmatprep.subr.mxu0 0.0
    %406 = vmatpush1.msra.mxu0 0.0
    %407 = vmatprep.subr.mxu0 0.0
    %408 = vmatpush1.msra.mxu0 0.0
    %409 = vmatprep.subr.mxu0 0.0
    %410 = vmatpush1.msra.mxu0 0.0
    %411 = vmatprep.subr.mxu0 0.0
    %412 = vmatpush1.msra.mxu0 0.0
    %413 = vmatprep.subr.mxu0 0.0
    %414 = vmatpush1.msra.mxu0 0.0
    %415 = vmatprep.subr.mxu0 0.0
    %416 = vmatpush1.msra.mxu0 0.0
    %417 = vmatprep.subr.mxu0 0.0
    %418 = vmatpush1.msra.mxu0 0.0
    %419 = vmatprep.subr.mxu0 0.0
    %420 = vmatpush1.msra.mxu0 0.0
    %421 = vmatprep.subr.mxu0 0.0
    %422 = vmatpush1.msra.mxu0 0.0
    %423 = vmatprep.subr.mxu0 0.0
    %424 = vmatpush1.msra.mxu0 0.0
    %425 = vmatprep.subr.mxu0 0.0
    %426 = vmatpush1.msra.mxu0 0.0
    %427 = vmatprep.subr.mxu0 0.0
    %428 = vmatpush1.msra.mxu0 0.0
    %429 = vmatprep.subr.mxu0 0.0
    %430 = vmatpush1.msra.mxu0 0.0
    %431 = vmatprep.subr.mxu0 0.0
    %432 = vmatpush1.msra.mxu0 0.0
    %433 = vmatprep.subr.mxu0 0.0
    %434 = vmatpush1.msra.mxu0 0.0
    %435 = vmatprep.subr.mxu0 0.0
    %436 = vmatpush1.msra.mxu0 0.0
    %437 = vmatprep.subr.mxu0 0.0
    %438 = vmatpush1.msra.mxu0 0.0
    %439 = vmatprep.subr.mxu0 0.0
    %440 = vmatpush1.msra.mxu0 0.0
    %441 = vmatprep.subr.mxu0 0.0
    %442 = vmatpush1.msra.mxu0 0.0
    %443 = vmatprep.subr.mxu0 0.0
    %444 = vmatpush1.msra.mxu0 0.0
    %445 = vmatprep.subr.mxu0 0.0
    %446 = vmatpush1.msra.mxu0 0.0
    %447 = vmatprep.subr.mxu0 0.0
    %448 = vmatpush1.msra.mxu0 0.0
    %449 = vmatprep.subr.mxu0 0.0
    %450 = vmatpush1.msra.mxu0 0.0
    %451 = vmatprep.mubr.f32.mxu0 0.0
    %452 = vmatmul.mubr.f32.gmra.mrb[0].mxu0 %v385
    %v453 = vpop.f32.mrb[0].mxu0
    %v454 = vadd.f32 0.0, %v453
    %v455 = vpop.f32.mrb[0].mxu0
    %456 = vdwg.mxu0
    %457 = vrot.lane.b32.xlu0 %v280, 120
    %v458 = vpop.permute.xlu0 %457
    %459 = vrot.lane.b32.xlu0 %v280, 88
    %v460 = vpop.permute.xlu0 %459
    %v461 = vsel %vm295, %v458, 0
    %v463 = vsel %vm295, %v460, 0
    %465 = vmatprep.subr.mxu0 0.0
    %466 = vmatpush1.xpose.msra.mxu0 %v463
    %467 = vmatprep.subr.mxu0 0.0
    %468 = vmatpush1.xpose.msra.mxu0 0.0
    %469 = vmatprep.subr.mxu0 0.0
    %470 = vmatpush1.xpose.msra.mxu0 0.0
    %471 = vmatprep.subr.mxu0 0.0
    %472 = vmatpush1.xpose.msra.mxu0 0.0
    %473 = vmatprep.subr.mxu0 0.0
    %474 = vmatpush1.xpose.msra.mxu0 0.0
    %475 = vmatprep.subr.mxu0 0.0
    %476 = vmatpush1.xpose.msra.mxu0 0.0
    %477 = vmatprep.subr.mxu0 0.0
    %478 = vmatpush1.xpose.msra.mxu0 0.0
    %479 = vmatprep.subr.mxu0 0.0
    %480 = vmatpush1.xpose.msra.mxu0 0.0
    %481 = vmatprep.subr.mxu0 0.0
    %482 = vmatpush1.xpose.msra.mxu0 0.0
    %483 = vmatprep.subr.mxu0 0.0
    %484 = vmatpush1.xpose.msra.mxu0 0.0
    %485 = vmatprep.subr.mxu0 0.0
    %486 = vmatpush1.xpose.msra.mxu0 0.0
    %487 = vmatprep.subr.mxu0 0.0
    %488 = vmatpush1.xpose.msra.mxu0 0.0
    %489 = vmatprep.subr.mxu0 0.0
    %490 = vmatpush1.xpose.msra.mxu0 0.0
    %491 = vmatprep.subr.mxu0 0.0
    %492 = vmatpush1.xpose.msra.mxu0 0.0
    %493 = vmatprep.subr.mxu0 0.0
    %494 = vmatpush1.xpose.msra.mxu0 0.0
    %495 = vmatprep.subr.mxu0 0.0
    %496 = vmatpush1.xpose.msra.mxu0 0.0
    %497 = vmatprep.subr.mxu0 0.0
    %498 = vmatpush1.xpose.msra.mxu0 0.0
    %499 = vmatprep.subr.mxu0 0.0
    %500 = vmatpush1.xpose.msra.mxu0 0.0
    %501 = vmatprep.subr.mxu0 0.0
    %502 = vmatpush1.xpose.msra.mxu0 0.0
    %503 = vmatprep.subr.mxu0 0.0
    %504 = vmatpush1.xpose.msra.mxu0 0.0
    %505 = vmatprep.subr.mxu0 0.0
    %506 = vmatpush1.xpose.msra.mxu0 0.0
    %507 = vmatprep.subr.mxu0 0.0
    %508 = vmatpush1.xpose.msra.mxu0 0.0
    %509 = vmatprep.subr.mxu0 0.0
    %510 = vmatpush1.xpose.msra.mxu0 0.0
    %511 = vmatprep.subr.mxu0 0.0
    %512 = vmatpush1.xpose.msra.mxu0 0.0
    %513 = vmatprep.subr.mxu0 0.0
    %514 = vmatpush1.xpose.msra.mxu0 0.0
    %515 = vmatprep.subr.mxu0 0.0
    %516 = vmatpush1.xpose.msra.mxu0 0.0
    %517 = vmatprep.subr.mxu0 0.0
    %518 = vmatpush1.xpose.msra.mxu0 0.0
    %519 = vmatprep.subr.mxu0 0.0
    %520 = vmatpush1.xpose.msra.mxu0 0.0
    %521 = vmatprep.subr.mxu0 0.0
    %522 = vmatpush1.xpose.msra.mxu0 0.0
    %523 = vmatprep.subr.mxu0 0.0
    %524 = vmatpush1.xpose.msra.mxu0 0.0
    %525 = vmatprep.subr.mxu0 0.0
    %526 = vmatpush1.xpose.msra.mxu0 0.0
    %527 = vmatprep.subr.mxu0 0.0
    %528 = vmatpush1.xpose.msra.mxu0 0.0
    %529 = vmatprep.mubr.f32.mxu0 0.0
    %530 = vmatmul.mubr.f32.gmra.mrb[0].mxu0 %v461
    %v531 = vpop.f32.mrb[0].mxu0
    %v532 = vadd.f32 %v291, %v531
    %v533 = vpop.f32.mrb[0].mxu0
    %534 = vdwg.mxu0
    %v535 = vsel %vm295, %v532, -inf
    %536 = vmax.xlane.f32.xlu0 %v535
    %v537 = vpop.xlane.xlu0 %536
    %v538 = vsub.f32 %v532, %v537
    %v539 = vmul.f32 %v538, 1.442695
    %v540 = vpow.pop %v539
    %v541 = vsel %vm295, %v540, 0.0
    %542 = vadd.xlane.f32.xlu0 %v541
    %v543 = vpop.xlane.xlu0 %542
    %v544 = vrcp.pop %v543
    %v545 = vmul.f32 %v540, %v544
    %546 = vrot.lane.b32.xlu0 %v280, 56
    %v547 = vpop.permute.xlu0 %546
    %v550 = vsel %vm295, %v545, 0
    %552 = vmatprep.subr.mxu0 0.0
    %553 = vmatpush1.msra.mxu0 %v547
    %554 = vmatprep.subr.mxu0 0.0
    %555 = vmatpush1.msra.mxu0 0.0
    %556 = vmatprep.subr.mxu0 0.0
    %557 = vmatpush1.msra.mxu0 0.0
    %558 = vmatprep.subr.mxu0 0.0
    %559 = vmatpush1.msra.mxu0 0.0
    %560 = vmatprep.subr.mxu0 0.0
    %561 = vmatpush1.msra.mxu0 0.0
    %562 = vmatprep.subr.mxu0 0.0
    %563 = vmatpush1.msra.mxu0 0.0
    %564 = vmatprep.subr.mxu0 0.0
    %565 = vmatpush1.msra.mxu0 0.0
    %566 = vmatprep.subr.mxu0 0.0
    %567 = vmatpush1.msra.mxu0 0.0
    %568 = vmatprep.subr.mxu0 0.0
    %569 = vmatpush1.msra.mxu0 0.0
    %570 = vmatprep.subr.mxu0 0.0
    %571 = vmatpush1.msra.mxu0 0.0
    %572 = vmatprep.subr.mxu0 0.0
    %573 = vmatpush1.msra.mxu0 0.0
    %574 = vmatprep.subr.mxu0 0.0
    %575 = vmatpush1.msra.mxu0 0.0
    %576 = vmatprep.subr.mxu0 0.0
    %577 = vmatpush1.msra.mxu0 0.0
    %578 = vmatprep.subr.mxu0 0.0
    %579 = vmatpush1.msra.mxu0 0.0
    %580 = vmatprep.subr.mxu0 0.0
    %581 = vmatpush1.msra.mxu0 0.0
    %582 = vmatprep.subr.mxu0 0.0
    %583 = vmatpush1.msra.mxu0 0.0
    %584 = vmatprep.subr.mxu0 0.0
    %585 = vmatpush1.msra.mxu0 0.0
    %586 = vmatprep.subr.mxu0 0.0
    %587 = vmatpush1.msra.mxu0 0.0
    %588 = vmatprep.subr.mxu0 0.0
    %589 = vmatpush1.msra.mxu0 0.0
    %590 = vmatprep.subr.mxu0 0.0
    %591 = vmatpush1.msra.mxu0 0.0
    %592 = vmatprep.subr.mxu0 0.0
    %593 = vmatpush1.msra.mxu0 0.0
    %594 = vmatprep.subr.mxu0 0.0
    %595 = vmatpush1.msra.mxu0 0.0
    %596 = vmatprep.subr.mxu0 0.0
    %597 = vmatpush1.msra.mxu0 0.0
    %598 = vmatprep.subr.mxu0 0.0
    %599 = vmatpush1.msra.mxu0 0.0
    %600 = vmatprep.subr.mxu0 0.0
    %601 = vmatpush1.msra.mxu0 0.0
    %602 = vmatprep.subr.mxu0 0.0
    %603 = vmatpush1.msra.mxu0 0.0
    %604 = vmatprep.subr.mxu0 0.0
    %605 = vmatpush1.msra.mxu0 0.0
    %606 = vmatprep.subr.mxu0 0.0
    %607 = vmatpush1.msra.mxu0 0.0
    %608 = vmatprep.subr.mxu0 0.0
    %609 = vmatpush1.msra.mxu0 0.0
    %610 = vmatprep.subr.mxu0 0.0
    %611 = vmatpush1.msra.mxu0 0.0
    %612 = vmatprep.subr.mxu0 0.0
    %613 = vmatpush1.msra.mxu0 0.0
    %614 = vmatprep.subr.mxu0 0.0
    %615 = vmatpush1.msra.mxu0 0.0
    %616 = vmatprep.mubr.f32.mxu0 0.0
    %617 = vmatmul.mubr.f32.gmra.mrb[0].mxu0 %v550
    %v618 = vpop.f32.mrb[0].mxu0
    %v619 = vadd.f32 0.0, %v618
    %v620 = vpop.f32.mrb[0].mxu0
    %621 = vdwg.mxu0
    %v623 = vsel %vm295, %v619, 0
    %625 = vmatprep.subr.mxu0 0.0
    %626 = vmatpush1.msra.mxu0 %v144
    %627 = vmatprep.subr.mxu0 0.0
    %628 = vmatpush1.msra.mxu0 0.0
    %629 = vmatprep.subr.mxu0 0.0
    %630 = vmatpush1.msra.mxu0 0.0
    %631 = vmatprep.subr.mxu0 0.0
    %632 = vmatpush1.msra.mxu0 0.0
    %633 = vmatprep.subr.mxu0 0.0
    %634 = vmatpush1.msra.mxu0 0.0
    %635 = vmatprep.subr.mxu0 0.0
    %636 = vmatpush1.msra.mxu0 0.0
    %637 = vmatprep.subr.mxu0 0.0
    %638 = vmatpush1.msra.mxu0 0.0
    %639 = vmatprep.subr.mxu0 0.0
    %640 = vmatpush1.msra.mxu0 0.0
    %641 = vmatprep.subr.mxu0 0.0
    %642 = vmatpush1.msra.mxu0 0.0
    %643 = vmatprep.subr.mxu0 0.0
    %644 = vmatpush1.msra.mxu0 0.0
    %645 = vmatprep.subr.mxu0 0.0
    %646 = vmatpush1.msra.mxu0 0.0
    %647 = vmatprep.subr.mxu0 0.0
    %648 = vmatpush1.msra.mxu0 0.0
    %649 = vmatprep.subr.mxu0 0.0
    %650 = vmatpush1.msra.mxu0 0.0
    %651 = vmatprep.subr.mxu0 0.0
    %652 = vmatpush1.msra.mxu0 0.0
    %653 = vmatprep.subr.mxu0 0.0
    %654 = vmatpush1.msra.mxu0 0.0
    %655 = vmatprep.subr.mxu0 0.0
    %656 = vmatpush1.msra.mxu0 0.0
    %657 = vmatprep.subr.mxu0 0.0
    %658 = vmatpush1.msra.mxu0 0.0
    %659 = vmatprep.subr.mxu0 0.0
    %660 = vmatpush1.msra.mxu0 0.0
    %661 = vmatprep.subr.mxu0 0.0
    %662 = vmatpush1.msra.mxu0 0.0
    %663 = vmatprep.subr.mxu0 0.0
    %664 = vmatpush1.msra.mxu0 0.0
    %665 = vmatprep.subr.mxu0 0.0
    %666 = vmatpush1.msra.mxu0 0.0
    %667 = vmatprep.subr.mxu0 0.0
    %668 = vmatpush1.msra.mxu0 0.0
    %669 = vmatprep.subr.mxu0 0.0
    %670 = vmatpush1.msra.mxu0 0.0
    %671 = vmatprep.subr.mxu0 0.0
    %672 = vmatpush1.msra.mxu0 0.0
    %673 = vmatprep.subr.mxu0 0.0
    %674 = vmatpush1.msra.mxu0 0.0
    %675 = vmatprep.subr.mxu0 0.0
    %676 = vmatpush1.msra.mxu0 0.0
    %677 = vmatprep.subr.mxu0 0.0
    %678 = vmatpush1.msra.mxu0 0.0
    %679 = vmatprep.subr.mxu0 0.0
    %680 = vmatpush1.msra.mxu0 0.0
    %681 = vmatprep.subr.mxu0 0.0
    %682 = vmatpush1.msra.mxu0 0.0
    %683 = vmatprep.subr.mxu0 0.0
    %684 = vmatpush1.msra.mxu0 0.0
    %685 = vmatprep.subr.mxu0 0.0
    %686 = vmatpush1.msra.mxu0 0.0
    %687 = vmatprep.subr.mxu0 0.0
    %688 = vmatpush1.msra.mxu0 0.0
    %689 = vmatprep.mubr.f32.mxu0 0.0
    %690 = vmatmul.mubr.f32.gmra.mrb[0].mxu0 %v623
    %v691 = vpop.f32.mrb[0].mxu0
    %v692 = vadd.f32 0.0, %v691
    %v693 = vpop.f32.mrb[0].mxu0
    %694 = vdwg.mxu0
    %v696 = vsel %vm295, %v454, 0
    %698 = vmatprep.subr.mxu0 0.0
    %699 = vmatpush1.msra.mxu0 %v143
    %700 = vmatprep.subr.mxu0 0.0
    %701 = vmatpush1.msra.mxu0 0.0
    %702 = vmatprep.subr.mxu0 0.0
    %703 = vmatpush1.msra.mxu0 0.0
    %704 = vmatprep.subr.mxu0 0.0
    %705 = vmatpush1.msra.mxu0 0.0
    %706 = vmatprep.subr.mxu0 0.0
    %707 = vmatpush1.msra.mxu0 0.0
    %708 = vmatprep.subr.mxu0 0.0
    %709 = vmatpush1.msra.mxu0 0.0
    %710 = vmatprep.subr.mxu0 0.0
    %711 = vmatpush1.msra.mxu0 0.0
    %712 = vmatprep.subr.mxu0 0.0
    %713 = vmatpush1.msra.mxu0 0.0
    %714 = vmatprep.subr.mxu0 0.0
    %715 = vmatpush1.msra.mxu0 0.0
    %716 = vmatprep.subr.mxu0 0.0
    %717 = vmatpush1.msra.mxu0 0.0
    %718 = vmatprep.subr.mxu0 0.0
    %719 = vmatpush1.msra.mxu0 0.0
    %720 = vmatprep.subr.mxu0 0.0
    %721 = vmatpush1.msra.mxu0 0.0
    %722 = vmatprep.subr.mxu0 0.0
    %723 = vmatpush1.msra.mxu0 0.0
    %724 = vmatprep.subr.mxu0 0.0
    %725 = vmatpush1.msra.mxu0 0.0
    %726 = vmatprep.subr.mxu0 0.0
    %727 = vmatpush1.msra.mxu0 0.0
    %728 = vmatprep.subr.mxu0 0.0
    %729 = vmatpush1.msra.mxu0 0.0
    %730 = vmatprep.subr.mxu0 0.0
    %731 = vmatpush1.msra.mxu0 0.0
    %732 = vmatprep.subr.mxu0 0.0
    %733 = vmatpush1.msra.mxu0 0.0
    %734 = vmatprep.subr.mxu0 0.0
    %735 = vmatpush1.msra.mxu0 0.0
    %736 = vmatprep.subr.mxu0 0.0
    %737 = vmatpush1.msra.mxu0 0.0
    %738 = vmatprep.subr.mxu0 0.0
    %739 = vmatpush1.msra.mxu0 0.0
    %740 = vmatprep.subr.mxu0 0.0
    %741 = vmatpush1.msra.mxu0 0.0
    %742 = vmatprep.subr.mxu0 0.0
    %743 = vmatpush1.msra.mxu0 0.0
    %744 = vmatprep.subr.mxu0 0.0
    %745 = vmatpush1.msra.mxu0 0.0
    %746 = vmatprep.subr.mxu0 0.0
    %747 = vmatpush1.msra.mxu0 0.0
    %748 = vmatprep.subr.mxu0 0.0
    %749 = vmatpush1.msra.mxu0 0.0
    %750 = vmatprep.subr.mxu0 0.0
    %751 = vmatpush1.msra.mxu0 0.0
    %752 = vmatprep.subr.mxu0 0.0
    %753 = vmatpush1.msra.mxu0 0.0
    %754 = vmatprep.subr.mxu0 0.0
    %755 = vmatpush1.msra.mxu0 0.0
    %756 = vmatprep.subr.mxu0 0.0
    %757 = vmatpush1.msra.mxu0 0.0
    %758 = vmatprep.subr.mxu0 0.0
    %759 = vmatpush1.msra.mxu0 0.0
    %760 = vmatprep.subr.mxu0 0.0
    %761 = vmatpush1.msra.mxu0 0.0
    %762 = vmatprep.mubr.f32.mxu0 0.0
    %763 = vmatmul.mubr.f32.gmra.mrb[0].mxu0 %v696
    %v764 = vpop.f32.mrb[0].mxu0
    %v765 = vadd.f32 %v692, %v764
    %v766 = vpop.f32.mrb[0].mxu0
    %767 = vdwg.mxu0
    %768 = vrot.lane.b32.xlu0 %v280, 112
    %v769 = vpop.permute.xlu0 %768
    %770 = vrot.lane.b32.xlu0 %v280, 80
    %v771 = vpop.permute.xlu0 %770
    %v772 = vsel %vm295, %v769, 0
    %v774 = vsel %vm295, %v771, 0
    %776 = vmatprep.subr.mxu0 0.0
    %777 = vmatpush1.xpose.msra.mxu0 %v774
    %778 = vmatprep.subr.mxu0 0.0
    %779 = vmatpush1.xpose.msra.mxu0 0.0
    %780 = vmatprep.subr.mxu0 0.0
    %781 = vmatpush1.xpose.msra.mxu0 0.0
    %782 = vmatprep.subr.mxu0 0.0
    %783 = vmatpush1.xpose.msra.mxu0 0.0
    %784 = vmatprep.subr.mxu0 0.0
    %785 = vmatpush1.xpose.msra.mxu0 0.0
    %786 = vmatprep.subr.mxu0 0.0
    %787 = vmatpush1.xpose.msra.mxu0 0.0
    %788 = vmatprep.subr.mxu0 0.0
    %789 = vmatpush1.xpose.msra.mxu0 0.0
    %790 = vmatprep.subr.mxu0 0.0
    %791 = vmatpush1.xpose.msra.mxu0 0.0
    %792 = vmatprep.subr.mxu0 0.0
    %793 = vmatpush1.xpose.msra.mxu0 0.0
    %794 = vmatprep.subr.mxu0 0.0
    %795 = vmatpush1.xpose.msra.mxu0 0.0
    %796 = vmatprep.subr.mxu0 0.0
    %797 = vmatpush1.xpose.msra.mxu0 0.0
    %798 = vmatprep.subr.mxu0 0.0
    %799 = vmatpush1.xpose.msra.mxu0 0.0
    %800 = vmatprep.subr.mxu0 0.0
    %801 = vmatpush1.xpose.msra.mxu0 0.0
    %802 = vmatprep.subr.mxu0 0.0
    %803 = vmatpush1.xpose.msra.mxu0 0.0
    %804 = vmatprep.subr.mxu0 0.0
    %805 = vmatpush1.xpose.msra.mxu0 0.0
    %806 = vmatprep.subr.mxu0 0.0
    %807 = vmatpush1.xpose.msra.mxu0 0.0
    %808 = vmatprep.subr.mxu0 0.0
    %809 = vmatpush1.xpose.msra.mxu0 0.0
    %810 = vmatprep.subr.mxu0 0.0
    %811 = vmatpush1.xpose.msra.mxu0 0.0
    %812 = vmatprep.subr.mxu0 0.0
    %813 = vmatpush1.xpose.msra.mxu0 0.0
    %814 = vmatprep.subr.mxu0 0.0
    %815 = vmatpush1.xpose.msra.mxu0 0.0
    %816 = vmatprep.subr.mxu0 0.0
    %817 = vmatpush1.xpose.msra.mxu0 0.0
    %818 = vmatprep.subr.mxu0 0.0
    %819 = vmatpush1.xpose.msra.mxu0 0.0
    %820 = vmatprep.subr.mxu0 0.0
    %821 = vmatpush1.xpose.msra.mxu0 0.0
    %822 = vmatprep.subr.mxu0 0.0
    %823 = vmatpush1.xpose.msra.mxu0 0.0
    %824 = vmatprep.subr.mxu0 0.0
    %825 = vmatpush1.xpose.msra.mxu0 0.0
    %826 = vmatprep.subr.mxu0 0.0
    %827 = vmatpush1.xpose.msra.mxu0 0.0
    %828 = vmatprep.subr.mxu0 0.0
    %829 = vmatpush1.xpose.msra.mxu0 0.0
    %830 = vmatprep.subr.mxu0 0.0
    %831 = vmatpush1.xpose.msra.mxu0 0.0
    %832 = vmatprep.subr.mxu0 0.0
    %833 = vmatpush1.xpose.msra.mxu0 0.0
    %834 = vmatprep.subr.mxu0 0.0
    %835 = vmatpush1.xpose.msra.mxu0 0.0
    %836 = vmatprep.subr.mxu0 0.0
    %837 = vmatpush1.xpose.msra.mxu0 0.0
    %838 = vmatprep.subr.mxu0 0.0
    %839 = vmatpush1.xpose.msra.mxu0 0.0
    %840 = vmatprep.mubr.f32.mxu0 0.0
    %841 = vmatmul.mubr.f32.gmra.mrb[0].mxu0 %v772
    %v842 = vpop.f32.mrb[0].mxu0
    %v843 = vadd.f32 %v291, %v842
    %v844 = vpop.f32.mrb[0].mxu0
    %845 = vdwg.mxu0
    %v846 = vsel %vm295, %v843, -inf
    %847 = vmax.xlane.f32.xlu0 %v846
    %v848 = vpop.xlane.xlu0 %847
    %v849 = vsub.f32 %v843, %v848
    %v850 = vmul.f32 %v849, 1.442695
    %v851 = vpow.pop %v850
    %v852 = vsel %vm295, %v851, 0.0
    %853 = vadd.xlane.f32.xlu0 %v852
    %v854 = vpop.xlane.xlu0 %853
    %v855 = vrcp.pop %v854
    %v856 = vmul.f32 %v851, %v855
    %857 = vrot.lane.b32.xlu0 %v280, 48
    %v858 = vpop.permute.xlu0 %857
    %v861 = vsel %vm295, %v856, 0
    %863 = vmatprep.subr.mxu0 0.0
    %864 = vmatpush1.msra.mxu0 %v858
    %865 = vmatprep.subr.mxu0 0.0
    %866 = vmatpush1.msra.mxu0 0.0
    %867 = vmatprep.subr.mxu0 0.0
    %868 = vmatpush1.msra.mxu0 0.0
    %869 = vmatprep.subr.mxu0 0.0
    %870 = vmatpush1.msra.mxu0 0.0
    %871 = vmatprep.subr.mxu0 0.0
    %872 = vmatpush1.msra.mxu0 0.0
    %873 = vmatprep.subr.mxu0 0.0
    %874 = vmatpush1.msra.mxu0 0.0
    %875 = vmatprep.subr.mxu0 0.0
    %876 = vmatpush1.msra.mxu0 0.0
    %877 = vmatprep.subr.mxu0 0.0
    %878 = vmatpush1.msra.mxu0 0.0
    %879 = vmatprep.subr.mxu0 0.0
    %880 = vmatpush1.msra.mxu0 0.0
    %881 = vmatprep.subr.mxu0 0.0
    %882 = vmatpush1.msra.mxu0 0.0
    %883 = vmatprep.subr.mxu0 0.0
    %884 = vmatpush1.msra.mxu0 0.0
    %885 = vmatprep.subr.mxu0 0.0
    %886 = vmatpush1.msra.mxu0 0.0
    %887 = vmatprep.subr.mxu0 0.0
    %888 = vmatpush1.msra.mxu0 0.0
    %889 = vmatprep.subr.mxu0 0.0
    %890 = vmatpush1.msra.mxu0 0.0
    %891 = vmatprep.subr.mxu0 0.0
    %892 = vmatpush1.msra.mxu0 0.0
    %893 = vmatprep.subr.mxu0 0.0
    %894 = vmatpush1.msra.mxu0 0.0
    %895 = vmatprep.subr.mxu0 0.0
    %896 = vmatpush1.msra.mxu0 0.0
    %897 = vmatprep.subr.mxu0 0.0
    %898 = vmatpush1.msra.mxu0 0.0
    %899 = vmatprep.subr.mxu0 0.0
    %900 = vmatpush1.msra.mxu0 0.0
    %901 = vmatprep.subr.mxu0 0.0
    %902 = vmatpush1.msra.mxu0 0.0
    %903 = vmatprep.subr.mxu0 0.0
    %904 = vmatpush1.msra.mxu0 0.0
    %905 = vmatprep.subr.mxu0 0.0
    %906 = vmatpush1.msra.mxu0 0.0
    %907 = vmatprep.subr.mxu0 0.0
    %908 = vmatpush1.msra.mxu0 0.0
    %909 = vmatprep.subr.mxu0 0.0
    %910 = vmatpush1.msra.mxu0 0.0
    %911 = vmatprep.subr.mxu0 0.0
    %912 = vmatpush1.msra.mxu0 0.0
    %913 = vmatprep.subr.mxu0 0.0
    %914 = vmatpush1.msra.mxu0 0.0
    %915 = vmatprep.subr.mxu0 0.0
    %916 = vmatpush1.msra.mxu0 0.0
    %917 = vmatprep.subr.mxu0 0.0
    %918 = vmatpush1.msra.mxu0 0.0
    %919 = vmatprep.subr.mxu0 0.0
    %920 = vmatpush1.msra.mxu0 0.0
    %921 = vmatprep.subr.mxu0 0.0
    %922 = vmatpush1.msra.mxu0 0.0
    %923 = vmatprep.subr.mxu0 0.0
    %924 = vmatpush1.msra.mxu0 0.0
    %925 = vmatprep.subr.mxu0 0.0
    %926 = vmatpush1.msra.mxu0 0.0
    %927 = vmatprep.mubr.f32.mxu0 0.0
    %928 = vmatmul.mubr.f32.gmra.mrb[0].mxu0 %v861
    %v929 = vpop.f32.mrb[0].mxu0
    %v930 = vadd.f32 0.0, %v929
    %v931 = vpop.f32.mrb[0].mxu0
    %932 = vdwg.mxu0
    %v934 = vsel %vm295, %v930, 0
    %936 = vmatprep.subr.mxu0 0.0
    %937 = vmatpush1.msra.mxu0 %v145
    %938 = vmatprep.subr.mxu0 0.0
    %939 = vmatpush1.msra.mxu0 0.0
    %940 = vmatprep.subr.mxu0 0.0
    %941 = vmatpush1.msra.mxu0 0.0
    %942 = vmatprep.subr.mxu0 0.0
    %943 = vmatpush1.msra.mxu0 0.0
    %944 = vmatprep.subr.mxu0 0.0
    %945 = vmatpush1.msra.mxu0 0.0
    %946 = vmatprep.subr.mxu0 0.0
    %947 = vmatpush1.msra.mxu0 0.0
    %948 = vmatprep.subr.mxu0 0.0
    %949 = vmatpush1.msra.mxu0 0.0
    %950 = vmatprep.subr.mxu0 0.0
    %951 = vmatpush1.msra.mxu0 0.0
    %952 = vmatprep.subr.mxu0 0.0
    %953 = vmatpush1.msra.mxu0 0.0
    %954 = vmatprep.subr.mxu0 0.0
    %955 = vmatpush1.msra.mxu0 0.0
    %956 = vmatprep.subr.mxu0 0.0
    %957 = vmatpush1.msra.mxu0 0.0
    %958 = vmatprep.subr.mxu0 0.0
    %959 = vmatpush1.msra.mxu0 0.0
    %960 = vmatprep.subr.mxu0 0.0
    %961 = vmatpush1.msra.mxu0 0.0
    %962 = vmatprep.subr.mxu0 0.0
    %963 = vmatpush1.msra.mxu0 0.0
    %964 = vmatprep.subr.mxu0 0.0
    %965 = vmatpush1.msra.mxu0 0.0
    %966 = vmatprep.subr.mxu0 0.0
    %967 = vmatpush1.msra.mxu0 0.0
    %968 = vmatprep.subr.mxu0 0.0
    %969 = vmatpush1.msra.mxu0 0.0
    %970 = vmatprep.subr.mxu0 0.0
    %971 = vmatpush1.msra.mxu0 0.0
    %972 = vmatprep.subr.mxu0 0.0
    %973 = vmatpush1.msra.mxu0 0.0
    %974 = vmatprep.subr.mxu0 0.0
    %975 = vmatpush1.msra.mxu0 0.0
    %976 = vmatprep.subr.mxu0 0.0
    %977 = vmatpush1.msra.mxu0 0.0
    %978 = vmatprep.subr.mxu0 0.0
    %979 = vmatpush1.msra.mxu0 0.0
    %980 = vmatprep.subr.mxu0 0.0
    %981 = vmatpush1.msra.mxu0 0.0
    %982 = vmatprep.subr.mxu0 0.0
    %983 = vmatpush1.msra.mxu0 0.0
    %984 = vmatprep.subr.mxu0 0.0
    %985 = vmatpush1.msra.mxu0 0.0
    %986 = vmatprep.subr.mxu0 0.0
    %987 = vmatpush1.msra.mxu0 0.0
    %988 = vmatprep.subr.mxu0 0.0
    %989 = vmatpush1.msra.mxu0 0.0
    %990 = vmatprep.subr.mxu0 0.0
    %991 = vmatpush1.msra.mxu0 0.0
    %992 = vmatprep.subr.mxu0 0.0
    %993 = vmatpush1.msra.mxu0 0.0
    %994 = vmatprep.subr.mxu0 0.0
    %995 = vmatpush1.msra.mxu0 0.0
    %996 = vmatprep.subr.mxu0 0.0
    %997 = vmatpush1.msra.mxu0 0.0
    %998 = vmatprep.subr.mxu0 0.0
    %999 = vmatpush1.msra.mxu0 0.0
    %1000 = vmatprep.mubr.f32.mxu0 0.0
    %1001 = vmatmul.mubr.f32.gmra.mrb[0].mxu0 %v934
    %v1002 = vpop.f32.mrb[0].mxu0
    %v1003 = vadd.f32 0.0, %v1002
    %v1004 = vpop.f32.mrb[0].mxu0
    %1005 = vdwg.mxu0
    %v1006 = vadd.f32 %v765, %v1003
    %1007 = vrot.lane.b32.xlu0 %v280, 104
    %v1008 = vpop.permute.xlu0 %1007
    %1009 = vrot.lane.b32.xlu0 %v280, 72
    %v1010 = vpop.permute.xlu0 %1009
    %v1011 = vsel %vm295, %v1008, 0
    %v1013 = vsel %vm295, %v1010, 0
    %1015 = vmatprep.subr.mxu0 0.0
    %1016 = vmatpush1.xpose.msra.mxu0 %v1013
    %1017 = vmatprep.subr.mxu0 0.0
    %1018 = vmatpush1.xpose.msra.mxu0 0.0
    %1019 = vmatprep.subr.mxu0 0.0
    %1020 = vmatpush1.xpose.msra.mxu0 0.0
    %1021 = vmatprep.subr.mxu0 0.0
    %1022 = vmatpush1.xpose.msra.mxu0 0.0
    %1023 = vmatprep.subr.mxu0 0.0
    %1024 = vmatpush1.xpose.msra.mxu0 0.0
    %1025 = vmatprep.subr.mxu0 0.0
    %1026 = vmatpush1.xpose.msra.mxu0 0.0
    %1027 = vmatprep.subr.mxu0 0.0
    %1028 = vmatpush1.xpose.msra.mxu0 0.0
    %1029 = vmatprep.subr.mxu0 0.0
    %1030 = vmatpush1.xpose.msra.mxu0 0.0
    %1031 = vmatprep.subr.mxu0 0.0
    %1032 = vmatpush1.xpose.msra.mxu0 0.0
    %1033 = vmatprep.subr.mxu0 0.0
    %1034 = vmatpush1.xpose.msra.mxu0 0.0
    %1035 = vmatprep.subr.mxu0 0.0
    %1036 = vmatpush1.xpose.msra.mxu0 0.0
    %1037 = vmatprep.subr.mxu0 0.0
    %1038 = vmatpush1.xpose.msra.mxu0 0.0
    %1039 = vmatprep.subr.mxu0 0.0
    %1040 = vmatpush1.xpose.msra.mxu0 0.0
    %1041 = vmatprep.subr.mxu0 0.0
    %1042 = vmatpush1.xpose.msra.mxu0 0.0
    %1043 = vmatprep.subr.mxu0 0.0
    %1044 = vmatpush1.xpose.msra.mxu0 0.0
    %1045 = vmatprep.subr.mxu0 0.0
    %1046 = vmatpush1.xpose.msra.mxu0 0.0
    %1047 = vmatprep.subr.mxu0 0.0
    %1048 = vmatpush1.xpose.msra.mxu0 0.0
    %1049 = vmatprep.subr.mxu0 0.0
    %1050 = vmatpush1.xpose.msra.mxu0 0.0
    %1051 = vmatprep.subr.mxu0 0.0
    %1052 = vmatpush1.xpose.msra.mxu0 0.0
    %1053 = vmatprep.subr.mxu0 0.0
    %1054 = vmatpush1.xpose.msra.mxu0 0.0
    %1055 = vmatprep.subr.mxu0 0.0
    %1056 = vmatpush1.xpose.msra.mxu0 0.0
    %1057 = vmatprep.subr.mxu0 0.0
    %1058 = vmatpush1.xpose.msra.mxu0 0.0
    %1059 = vmatprep.subr.mxu0 0.0
    %1060 = vmatpush1.xpose.msra.mxu0 0.0
    %1061 = vmatprep.subr.mxu0 0.0
    %1062 = vmatpush1.xpose.msra.mxu0 0.0
    %1063 = vmatprep.subr.mxu0 0.0
    %1064 = vmatpush1.xpose.msra.mxu0 0.0
    %1065 = vmatprep.subr.mxu0 0.0
    %1066 = vmatpush1.xpose.msra.mxu0 0.0
    %1067 = vmatprep.subr.mxu0 0.0
    %1068 = vmatpush1.xpose.msra.mxu0 0.0
    %1069 = vmatprep.subr.mxu0 0.0
    %1070 = vmatpush1.xpose.msra.mxu0 0.0
    %1071 = vmatprep.subr.mxu0 0.0
    %1072 = vmatpush1.xpose.msra.mxu0 0.0
    %1073 = vmatprep.subr.mxu0 0.0
    %1074 = vmatpush1.xpose.msra.mxu0 0.0
    %1075 = vmatprep.subr.mxu0 0.0
    %1076 = vmatpush1.xpose.msra.mxu0 0.0
    %1077 = vmatprep.subr.mxu0 0.0
    %1078 = vmatpush1.xpose.msra.mxu0 0.0
    %1079 = vmatprep.mubr.f32.mxu0 0.0
    %1080 = vmatmul.mubr.f32.gmra.mrb[0].mxu0 %v1011
    %v1081 = vpop.f32.mrb[0].mxu0
    %v1082 = vadd.f32 %v291, %v1081
    %v1083 = vpop.f32.mrb[0].mxu0
    %1084 = vdwg.mxu0
    %v1085 = vsel %vm295, %v1082, -inf
    %1086 = vmax.xlane.f32.xlu0 %v1085
    %v1087 = vpop.xlane.xlu0 %1086
    %v1088 = vsub.f32 %v1082, %v1087
    %v1089 = vmul.f32 %v1088, 1.442695
    %v1090 = vpow.pop %v1089
    %v1091 = vsel %vm295, %v1090, 0.0
    %1092 = vadd.xlane.f32.xlu0 %v1091
    %v1093 = vpop.xlane.xlu0 %1092
    %v1094 = vrcp.pop %v1093
    %v1095 = vmul.f32 %v1090, %v1094
    %1096 = vrot.lane.b32.xlu0 %v280, 40
    %v1097 = vpop.permute.xlu0 %1096
    %v1100 = vsel %vm295, %v1095, 0
    %1102 = vmatprep.subr.mxu0 0.0
    %1103 = vmatpush1.msra.mxu0 %v1097
    %1104 = vmatprep.subr.mxu0 0.0
    %1105 = vmatpush1.msra.mxu0 0.0
    %1106 = vmatprep.subr.mxu0 0.0
    %1107 = vmatpush1.msra.mxu0 0.0
    %1108 = vmatprep.subr.mxu0 0.0
    %1109 = vmatpush1.msra.mxu0 0.0
    %1110 = vmatprep.subr.mxu0 0.0
    %1111 = vmatpush1.msra.mxu0 0.0
    %1112 = vmatprep.subr.mxu0 0.0
    %1113 = vmatpush1.msra.mxu0 0.0
    %1114 = vmatprep.subr.mxu0 0.0
    %1115 = vmatpush1.msra.mxu0 0.0
    %1116 = vmatprep.subr.mxu0 0.0
    %1117 = vmatpush1.msra.mxu0 0.0
    %1118 = vmatprep.subr.mxu0 0.0
    %1119 = vmatpush1.msra.mxu0 0.0
    %1120 = vmatprep.subr.mxu0 0.0
    %1121 = vmatpush1.msra.mxu0 0.0
    %1122 = vmatprep.subr.mxu0 0.0
    %1123 = vmatpush1.msra.mxu0 0.0
    %1124 = vmatprep.subr.mxu0 0.0
    %1125 = vmatpush1.msra.mxu0 0.0
    %1126 = vmatprep.subr.mxu0 0.0
    %1127 = vmatpush1.msra.mxu0 0.0
    %1128 = vmatprep.subr.mxu0 0.0
    %1129 = vmatpush1.msra.mxu0 0.0
    %1130 = vmatprep.subr.mxu0 0.0
    %1131 = vmatpush1.msra.mxu0 0.0
    %1132 = vmatprep.subr.mxu0 0.0
    %1133 = vmatpush1.msra.mxu0 0.0
    %1134 = vmatprep.subr.mxu0 0.0
    %1135 = vmatpush1.msra.mxu0 0.0
    %1136 = vmatprep.subr.mxu0 0.0
    %1137 = vmatpush1.msra.mxu0 0.0
    %1138 = vmatprep.subr.mxu0 0.0
    %1139 = vmatpush1.msra.mxu0 0.0
    %1140 = vmatprep.subr.mxu0 0.0
    %1141 = vmatpush1.msra.mxu0 0.0
    %1142 = vmatprep.subr.mxu0 0.0
    %1143 = vmatpush1.msra.mxu0 0.0
    %1144 = vmatprep.subr.mxu0 0.0
    %1145 = vmatpush1.msra.mxu0 0.0
    %1146 = vmatprep.subr.mxu0 0.0
    %1147 = vmatpush1.msra.mxu0 0.0
    %1148 = vmatprep.subr.mxu0 0.0
    %1149 = vmatpush1.msra.mxu0 0.0
    %1150 = vmatprep.subr.mxu0 0.0
    %1151 = vmatpush1.msra.mxu0 0.0
    %1152 = vmatprep.subr.mxu0 0.0
    %1153 = vmatpush1.msra.mxu0 0.0
    %1154 = vmatprep.subr.mxu0 0.0
    %1155 = vmatpush1.msra.mxu0 0.0
    %1156 = vmatprep.subr.mxu0 0.0
    %1157 = vmatpush1.msra.mxu0 0.0
    %1158 = vmatprep.subr.mxu0 0.0
    %1159 = vmatpush1.msra.mxu0 0.0
    %1160 = vmatprep.subr.mxu0 0.0
    %1161 = vmatpush1.msra.mxu0 0.0
    %1162 = vmatprep.subr.mxu0 0.0
    %1163 = vmatpush1.msra.mxu0 0.0
    %1164 = vmatprep.subr.mxu0 0.0
    %1165 = vmatpush1.msra.mxu0 0.0
    %1166 = vmatprep.mubr.f32.mxu0 0.0
    %1167 = vmatmul.mubr.f32.gmra.mrb[0].mxu0 %v1100
    %v1168 = vpop.f32.mrb[0].mxu0
    %v1169 = vadd.f32 0.0, %v1168
    %v1170 = vpop.f32.mrb[0].mxu0
    %1171 = vdwg.mxu0
    %v1173 = vsel %vm295, %v1169, 0
    %1175 = vmatprep.subr.mxu0 0.0
    %1176 = vmatpush1.msra.mxu0 %v146
    %1177 = vmatprep.subr.mxu0 0.0
    %1178 = vmatpush1.msra.mxu0 0.0
    %1179 = vmatprep.subr.mxu0 0.0
    %1180 = vmatpush1.msra.mxu0 0.0
    %1181 = vmatprep.subr.mxu0 0.0
    %1182 = vmatpush1.msra.mxu0 0.0
    %1183 = vmatprep.subr.mxu0 0.0
    %1184 = vmatpush1.msra.mxu0 0.0
    %1185 = vmatprep.subr.mxu0 0.0
    %1186 = vmatpush1.msra.mxu0 0.0
    %1187 = vmatprep.subr.mxu0 0.0
    %1188 = vmatpush1.msra.mxu0 0.0
    %1189 = vmatprep.subr.mxu0 0.0
    %1190 = vmatpush1.msra.mxu0 0.0
    %1191 = vmatprep.subr.mxu0 0.0
    %1192 = vmatpush1.msra.mxu0 0.0
    %1193 = vmatprep.subr.mxu0 0.0
    %1194 = vmatpush1.msra.mxu0 0.0
    %1195 = vmatprep.subr.mxu0 0.0
    %1196 = vmatpush1.msra.mxu0 0.0
    %1197 = vmatprep.subr.mxu0 0.0
    %1198 = vmatpush1.msra.mxu0 0.0
    %1199 = vmatprep.subr.mxu0 0.0
    %1200 = vmatpush1.msra.mxu0 0.0
    %1201 = vmatprep.subr.mxu0 0.0
    %1202 = vmatpush1.msra.mxu0 0.0
    %1203 = vmatprep.subr.mxu0 0.0
    %1204 = vmatpush1.msra.mxu0 0.0
    %1205 = vmatprep.subr.mxu0 0.0
    %1206 = vmatpush1.msra.mxu0 0.0
    %1207 = vmatprep.subr.mxu0 0.0
    %1208 = vmatpush1.msra.mxu0 0.0
    %1209 = vmatprep.subr.mxu0 0.0
    %1210 = vmatpush1.msra.mxu0 0.0
    %1211 = vmatprep.subr.mxu0 0.0
    %1212 = vmatpush1.msra.mxu0 0.0
    %1213 = vmatprep.subr.mxu0 0.0
    %1214 = vmatpush1.msra.mxu0 0.0
    %1215 = vmatprep.subr.mxu0 0.0
    %1216 = vmatpush1.msra.mxu0 0.0
    %1217 = vmatprep.subr.mxu0 0.0
    %1218 = vmatpush1.msra.mxu0 0.0
    %1219 = vmatprep.subr.mxu0 0.0
    %1220 = vmatpush1.msra.mxu0 0.0
    %1221 = vmatprep.subr.mxu0 0.0
    %1222 = vmatpush1.msra.mxu0 0.0
    %1223 = vmatprep.subr.mxu0 0.0
    %1224 = vmatpush1.msra.mxu0 0.0
    %1225 = vmatprep.subr.mxu0 0.0
    %1226 = vmatpush1.msra.mxu0 0.0
    %1227 = vmatprep.subr.mxu0 0.0
    %1228 = vmatpush1.msra.mxu0 0.0
    %1229 = vmatprep.subr.mxu0 0.0
    %1230 = vmatpush1.msra.mxu0 0.0
    %1231 = vmatprep.subr.mxu0 0.0
    %1232 = vmatpush1.msra.mxu0 0.0
    %1233 = vmatprep.subr.mxu0 0.0
    %1234 = vmatpush1.msra.mxu0 0.0
    %1235 = vmatprep.subr.mxu0 0.0
    %1236 = vmatpush1.msra.mxu0 0.0
    %1237 = vmatprep.subr.mxu0 0.0
    %1238 = vmatpush1.msra.mxu0 0.0
    %1239 = vmatprep.mubr.f32.mxu0 0.0
    %1240 = vmatmul.mubr.f32.gmra.mrb[0].mxu0 %v1173
    %v1241 = vpop.f32.mrb[0].mxu0
    %v1242 = vadd.f32 0.0, %v1241
    %v1243 = vpop.f32.mrb[0].mxu0
    %1244 = vdwg.mxu0
    %v1245 = vadd.f32 %v1006, %v1242
    %v1246 = vlaneseq
    %v1247 = vshrl.u32 %v1246, 7
    %v1248 = vsub.s32 0, %v1247
    %v1249 = vrot.slane %v46, %v1248
    %1251 = vrot.lane.b32.xlu0 %v285, 96
    %v1252 = vpop.permute.xlu0 %1251
    %v1253 = vsel %vm295, %v285, 0
    %v1255 = vsel %vm295, %v1252, 0
    %1257 = vmatprep.subr.mxu0 0.0
    %1258 = vmatpush1.xpose.msra.mxu0 %v1255
    %1259 = vmatprep.subr.mxu0 0.0
    %1260 = vmatpush1.xpose.msra.mxu0 0.0
    %1261 = vmatprep.subr.mxu0 0.0
    %1262 = vmatpush1.xpose.msra.mxu0 0.0
    %1263 = vmatprep.subr.mxu0 0.0
    %1264 = vmatpush1.xpose.msra.mxu0 0.0
    %1265 = vmatprep.subr.mxu0 0.0
    %1266 = vmatpush1.xpose.msra.mxu0 0.0
    %1267 = vmatprep.subr.mxu0 0.0
    %1268 = vmatpush1.xpose.msra.mxu0 0.0
    %1269 = vmatprep.subr.mxu0 0.0
    %1270 = vmatpush1.xpose.msra.mxu0 0.0
    %1271 = vmatprep.subr.mxu0 0.0
    %1272 = vmatpush1.xpose.msra.mxu0 0.0
    %1273 = vmatprep.subr.mxu0 0.0
    %1274 = vmatpush1.xpose.msra.mxu0 0.0
    %1275 = vmatprep.subr.mxu0 0.0
    %1276 = vmatpush1.xpose.msra.mxu0 0.0
    %1277 = vmatprep.subr.mxu0 0.0
    %1278 = vmatpush1.xpose.msra.mxu0 0.0
    %1279 = vmatprep.subr.mxu0 0.0
    %1280 = vmatpush1.xpose.msra.mxu0 0.0
    %1281 = vmatprep.subr.mxu0 0.0
    %1282 = vmatpush1.xpose.msra.mxu0 0.0
    %1283 = vmatprep.subr.mxu0 0.0
    %1284 = vmatpush1.xpose.msra.mxu0 0.0
    %1285 = vmatprep.subr.mxu0 0.0
    %1286 = vmatpush1.xpose.msra.mxu0 0.0
    %1287 = vmatprep.subr.mxu0 0.0
    %1288 = vmatpush1.xpose.msra.mxu0 0.0
    %1289 = vmatprep.subr.mxu0 0.0
    %1290 = vmatpush1.xpose.msra.mxu0 0.0
    %1291 = vmatprep.subr.mxu0 0.0
    %1292 = vmatpush1.xpose.msra.mxu0 0.0
    %1293 = vmatprep.subr.mxu0 0.0
    %1294 = vmatpush1.xpose.msra.mxu0 0.0
    %1295 = vmatprep.subr.mxu0 0.0
    %1296 = vmatpush1.xpose.msra.mxu0 0.0
    %1297 = vmatprep.subr.mxu0 0.0
    %1298 = vmatpush1.xpose.msra.mxu0 0.0
    %1299 = vmatprep.subr.mxu0 0.0
    %1300 = vmatpush1.xpose.msra.mxu0 0.0
    %1301 = vmatprep.subr.mxu0 0.0
    %1302 = vmatpush1.xpose.msra.mxu0 0.0
    %1303 = vmatprep.subr.mxu0 0.0
    %1304 = vmatpush1.xpose.msra.mxu0 0.0
    %1305 = vmatprep.subr.mxu0 0.0
    %1306 = vmatpush1.xpose.msra.mxu0 0.0
    %1307 = vmatprep.subr.mxu0 0.0
    %1308 = vmatpush1.xpose.msra.mxu0 0.0
    %1309 = vmatprep.subr.mxu0 0.0
    %1310 = vmatpush1.xpose.msra.mxu0 0.0
    %1311 = vmatprep.subr.mxu0 0.0
    %1312 = vmatpush1.xpose.msra.mxu0 0.0
    %1313 = vmatprep.subr.mxu0 0.0
    %1314 = vmatpush1.xpose.msra.mxu0 0.0
    %1315 = vmatprep.subr.mxu0 0.0
    %1316 = vmatpush1.xpose.msra.mxu0 0.0
    %1317 = vmatprep.subr.mxu0 0.0
    %1318 = vmatpush1.xpose.msra.mxu0 0.0
    %1319 = vmatprep.subr.mxu0 0.0
    %1320 = vmatpush1.xpose.msra.mxu0 0.0
    %1321 = vmatprep.mubr.f32.mxu0 0.0
    %1322 = vmatmul.mubr.f32.gmra.mrb[0].mxu0 %v1253
    %v1323 = vpop.f32.mrb[0].mxu0
    %v1324 = vadd.f32 %v1249, %v1323
    %v1325 = vpop.f32.mrb[0].mxu0
    %1326 = vdwg.mxu0
    %v1327 = vsel %vm295, %v1324, -inf
    %1328 = vmax.xlane.f32.xlu0 %v1327
    %v1329 = vpop.xlane.xlu0 %1328
    %v1330 = vsub.f32 %v1324, %v1329
    %v1331 = vmul.f32 %v1330, 1.442695
    %v1332 = vpow.pop %v1331
    %v1333 = vsel %vm295, %v1332, 0.0
    %1334 = vadd.xlane.f32.xlu0 %v1333
    %v1335 = vpop.xlane.xlu0 %1334
    %v1336 = vrcp.pop %v1335
    %v1337 = vmul.f32 %v1332, %v1336
    %1338 = vrot.lane.b32.xlu0 %v285, 64
    %v1339 = vpop.permute.xlu0 %1338
    %v1342 = vsel %vm295, %v1337, 0
    %1344 = vmatprep.subr.mxu0 0.0
    %1345 = vmatpush1.msra.mxu0 %v1339
    %1346 = vmatprep.subr.mxu0 0.0
    %1347 = vmatpush1.msra.mxu0 0.0
    %1348 = vmatprep.subr.mxu0 0.0
    %1349 = vmatpush1.msra.mxu0 0.0
    %1350 = vmatprep.subr.mxu0 0.0
    %1351 = vmatpush1.msra.mxu0 0.0
    %1352 = vmatprep.subr.mxu0 0.0
    %1353 = vmatpush1.msra.mxu0 0.0
    %1354 = vmatprep.subr.mxu0 0.0
    %1355 = vmatpush1.msra.mxu0 0.0
    %1356 = vmatprep.subr.mxu0 0.0
    %1357 = vmatpush1.msra.mxu0 0.0
    %1358 = vmatprep.subr.mxu0 0.0
    %1359 = vmatpush1.msra.mxu0 0.0
    %1360 = vmatprep.subr.mxu0 0.0
    %1361 = vmatpush1.msra.mxu0 0.0
    %1362 = vmatprep.subr.mxu0 0.0
    %1363 = vmatpush1.msra.mxu0 0.0
    %1364 = vmatprep.subr.mxu0 0.0
    %1365 = vmatpush1.msra.mxu0 0.0
    %1366 = vmatprep.subr.mxu0 0.0
    %1367 = vmatpush1.msra.mxu0 0.0
    %1368 = vmatprep.subr.mxu0 0.0
    %1369 = vmatpush1.msra.mxu0 0.0
    %1370 = vmatprep.subr.mxu0 0.0
    %1371 = vmatpush1.msra.mxu0 0.0
    %1372 = vmatprep.subr.mxu0 0.0
    %1373 = vmatpush1.msra.mxu0 0.0
    %1374 = vmatprep.subr.mxu0 0.0
    %1375 = vmatpush1.msra.mxu0 0.0
    %1376 = vmatprep.subr.mxu0 0.0
    %1377 = vmatpush1.msra.mxu0 0.0
    %1378 = vmatprep.subr.mxu0 0.0
    %1379 = vmatpush1.msra.mxu0 0.0
    %1380 = vmatprep.subr.mxu0 0.0
    %1381 = vmatpush1.msra.mxu0 0.0
    %1382 = vmatprep.subr.mxu0 0.0
    %1383 = vmatpush1.msra.mxu0 0.0
    %1384 = vmatprep.subr.mxu0 0.0
    %1385 = vmatpush1.msra.mxu0 0.0
    %1386 = vmatprep.subr.mxu0 0.0
    %1387 = vmatpush1.msra.mxu0 0.0
    %1388 = vmatprep.subr.mxu0 0.0
    %1389 = vmatpush1.msra.mxu0 0.0
    %1390 = vmatprep.subr.mxu0 0.0
    %1391 = vmatpush1.msra.mxu0 0.0
    %1392 = vmatprep.subr.mxu0 0.0
    %1393 = vmatpush1.msra.mxu0 0.0
    %1394 = vmatprep.subr.mxu0 0.0
    %1395 = vmatpush1.msra.mxu0 0.0
    %1396 = vmatprep.subr.mxu0 0.0
    %1397 = vmatpush1.msra.mxu0 0.0
    %1398 = vmatprep.subr.mxu0 0.0
    %1399 = vmatpush1.msra.mxu0 0.0
    %1400 = vmatprep.subr.mxu0 0.0
    %1401 = vmatpush1.msra.mxu0 0.0
    %1402 = vmatprep.subr.mxu0 0.0
    %1403 = vmatpush1.msra.mxu0 0.0
    %1404 = vmatprep.subr.mxu0 0.0
    %1405 = vmatpush1.msra.mxu0 0.0
    %1406 = vmatprep.subr.mxu0 0.0
    %1407 = vmatpush1.msra.mxu0 0.0
    %1408 = vmatprep.mubr.f32.mxu0 0.0
    %1409 = vmatmul.mubr.f32.gmra.mrb[0].mxu0 %v1342
    %v1410 = vpop.f32.mrb[0].mxu0
    %v1411 = vadd.f32 0.0, %v1410
    %v1412 = vpop.f32.mrb[0].mxu0
    %1413 = vdwg.mxu0
    %1414 = vrot.lane.b32.xlu0 %v285, 120
    %v1415 = vpop.permute.xlu0 %1414
    %1416 = vrot.lane.b32.xlu0 %v285, 88
    %v1417 = vpop.permute.xlu0 %1416
    %v1418 = vsel %vm295, %v1415, 0
    %v1420 = vsel %vm295, %v1417, 0
    %1422 = vmatprep.subr.mxu0 0.0
    %1423 = vmatpush1.xpose.msra.mxu0 %v1420
    %1424 = vmatprep.subr.mxu0 0.0
    %1425 = vmatpush1.xpose.msra.mxu0 0.0
    %1426 = vmatprep.subr.mxu0 0.0
    %1427 = vmatpush1.xpose.msra.mxu0 0.0
    %1428 = vmatprep.subr.mxu0 0.0
    %1429 = vmatpush1.xpose.msra.mxu0 0.0
    %1430 = vmatprep.subr.mxu0 0.0
    %1431 = vmatpush1.xpose.msra.mxu0 0.0
    %1432 = vmatprep.subr.mxu0 0.0
    %1433 = vmatpush1.xpose.msra.mxu0 0.0
    %1434 = vmatprep.subr.mxu0 0.0
    %1435 = vmatpush1.xpose.msra.mxu0 0.0
    %1436 = vmatprep.subr.mxu0 0.0
    %1437 = vmatpush1.xpose.msra.mxu0 0.0
    %1438 = vmatprep.subr.mxu0 0.0
    %1439 = vmatpush1.xpose.msra.mxu0 0.0
    %1440 = vmatprep.subr.mxu0 0.0
    %1441 = vmatpush1.xpose.msra.mxu0 0.0
    %1442 = vmatprep.subr.mxu0 0.0
    %1443 = vmatpush1.xpose.msra.mxu0 0.0
    %1444 = vmatprep.subr.mxu0 0.0
    %1445 = vmatpush1.xpose.msra.mxu0 0.0
    %1446 = vmatprep.subr.mxu0 0.0
    %1447 = vmatpush1.xpose.msra.mxu0 0.0
    %1448 = vmatprep.subr.mxu0 0.0
    %1449 = vmatpush1.xpose.msra.mxu0 0.0
    %1450 = vmatprep.subr.mxu0 0.0
    %1451 = vmatpush1.xpose.msra.mxu0 0.0
    %1452 = vmatprep.subr.mxu0 0.0
    %1453 = vmatpush1.xpose.msra.mxu0 0.0
    %1454 = vmatprep.subr.mxu0 0.0
    %1455 = vmatpush1.xpose.msra.mxu0 0.0
    %1456 = vmatprep.subr.mxu0 0.0
    %1457 = vmatpush1.xpose.msra.mxu0 0.0
    %1458 = vmatprep.subr.mxu0 0.0
    %1459 = vmatpush1.xpose.msra.mxu0 0.0
    %1460 = vmatprep.subr.mxu0 0.0
    %1461 = vmatpush1.xpose.msra.mxu0 0.0
    %1462 = vmatprep.subr.mxu0 0.0
    %1463 = vmatpush1.xpose.msra.mxu0 0.0
    %1464 = vmatprep.subr.mxu0 0.0
    %1465 = vmatpush1.xpose.msra.mxu0 0.0
    %1466 = vmatprep.subr.mxu0 0.0
    %1467 = vmatpush1.xpose.msra.mxu0 0.0
    %1468 = vmatprep.subr.mxu0 0.0
    %1469 = vmatpush1.xpose.msra.mxu0 0.0
    %1470 = vmatprep.subr.mxu0 0.0
    %1471 = vmatpush1.xpose.msra.mxu0 0.0
    %1472 = vmatprep.subr.mxu0 0.0
    %1473 = vmatpush1.xpose.msra.mxu0 0.0
    %1474 = vmatprep.subr.mxu0 0.0
    %1475 = vmatpush1.xpose.msra.mxu0 0.0
    %1476 = vmatprep.subr.mxu0 0.0
    %1477 = vmatpush1.xpose.msra.mxu0 0.0
    %1478 = vmatprep.subr.mxu0 0.0
    %1479 = vmatpush1.xpose.msra.mxu0 0.0
    %1480 = vmatprep.subr.mxu0 0.0
    %1481 = vmatpush1.xpose.msra.mxu0 0.0
    %1482 = vmatprep.subr.mxu0 0.0
    %1483 = vmatpush1.xpose.msra.mxu0 0.0
    %1484 = vmatprep.subr.mxu0 0.0
    %1485 = vmatpush1.xpose.msra.mxu0 0.0
    %1486 = vmatprep.mubr.f32.mxu0 0.0
    %1487 = vmatmul.mubr.f32.gmra.mrb[0].mxu0 %v1418
    %v1488 = vpop.f32.mrb[0].mxu0
    %v1489 = vadd.f32 %v1249, %v1488
    %v1490 = vpop.f32.mrb[0].mxu0
    %1491 = vdwg.mxu0
    %v1492 = vsel %vm295, %v1489, -inf
    %1493 = vmax.xlane.f32.xlu0 %v1492
    %v1494 = vpop.xlane.xlu0 %1493
    %v1495 = vsub.f32 %v1489, %v1494
    %v1496 = vmul.f32 %v1495, 1.442695
    %v1497 = vpow.pop %v1496
    %v1498 = vsel %vm295, %v1497, 0.0
    %1499 = vadd.xlane.f32.xlu0 %v1498
    %v1500 = vpop.xlane.xlu0 %1499
    %v1501 = vrcp.pop %v1500
    %v1502 = vmul.f32 %v1497, %v1501
    %1503 = vrot.lane.b32.xlu0 %v285, 56
    %v1504 = vpop.permute.xlu0 %1503
    %v1507 = vsel %vm295, %v1502, 0
    %1509 = vmatprep.subr.mxu0 0.0
    %1510 = vmatpush1.msra.mxu0 %v1504
    %1511 = vmatprep.subr.mxu0 0.0
    %1512 = vmatpush1.msra.mxu0 0.0
    %1513 = vmatprep.subr.mxu0 0.0
    %1514 = vmatpush1.msra.mxu0 0.0
    %1515 = vmatprep.subr.mxu0 0.0
    %1516 = vmatpush1.msra.mxu0 0.0
    %1517 = vmatprep.subr.mxu0 0.0
    %1518 = vmatpush1.msra.mxu0 0.0
    %1519 = vmatprep.subr.mxu0 0.0
    %1520 = vmatpush1.msra.mxu0 0.0
    %1521 = vmatprep.subr.mxu0 0.0
    %1522 = vmatpush1.msra.mxu0 0.0
    %1523 = vmatprep.subr.mxu0 0.0
    %1524 = vmatpush1.msra.mxu0 0.0
    %1525 = vmatprep.subr.mxu0 0.0
    %1526 = vmatpush1.msra.mxu0 0.0
    %1527 = vmatprep.subr.mxu0 0.0
    %1528 = vmatpush1.msra.mxu0 0.0
    %1529 = vmatprep.subr.mxu0 0.0
    %1530 = vmatpush1.msra.mxu0 0.0
    %1531 = vmatprep.subr.mxu0 0.0
    %1532 = vmatpush1.msra.mxu0 0.0
    %1533 = vmatprep.subr.mxu0 0.0
    %1534 = vmatpush1.msra.mxu0 0.0
    %1535 = vmatprep.subr.mxu0 0.0
    %1536 = vmatpush1.msra.mxu0 0.0
    %1537 = vmatprep.subr.mxu0 0.0
    %1538 = vmatpush1.msra.mxu0 0.0
    %1539 = vmatprep.subr.mxu0 0.0
    %1540 = vmatpush1.msra.mxu0 0.0
    %1541 = vmatprep.subr.mxu0 0.0
    %1542 = vmatpush1.msra.mxu0 0.0
    %1543 = vmatprep.subr.mxu0 0.0
    %1544 = vmatpush1.msra.mxu0 0.0
    %1545 = vmatprep.subr.mxu0 0.0
    %1546 = vmatpush1.msra.mxu0 0.0
    %1547 = vmatprep.subr.mxu0 0.0
    %1548 = vmatpush1.msra.mxu0 0.0
    %1549 = vmatprep.subr.mxu0 0.0
    %1550 = vmatpush1.msra.mxu0 0.0
    %1551 = vmatprep.subr.mxu0 0.0
    %1552 = vmatpush1.msra.mxu0 0.0
    %1553 = vmatprep.subr.mxu0 0.0
    %1554 = vmatpush1.msra.mxu0 0.0
    %1555 = vmatprep.subr.mxu0 0.0
    %1556 = vmatpush1.msra.mxu0 0.0
    %1557 = vmatprep.subr.mxu0 0.0
    %1558 = vmatpush1.msra.mxu0 0.0
    %1559 = vmatprep.subr.mxu0 0.0
    %1560 = vmatpush1.msra.mxu0 0.0
    %1561 = vmatprep.subr.mxu0 0.0
    %1562 = vmatpush1.msra.mxu0 0.0
    %1563 = vmatprep.subr.mxu0 0.0
    %1564 = vmatpush1.msra.mxu0 0.0
    %1565 = vmatprep.subr.mxu0 0.0
    %1566 = vmatpush1.msra.mxu0 0.0
    %1567 = vmatprep.subr.mxu0 0.0
    %1568 = vmatpush1.msra.mxu0 0.0
    %1569 = vmatprep.subr.mxu0 0.0
    %1570 = vmatpush1.msra.mxu0 0.0
    %1571 = vmatprep.subr.mxu0 0.0
    %1572 = vmatpush1.msra.mxu0 0.0
    %1573 = vmatprep.mubr.f32.mxu0 0.0
    %1574 = vmatmul.mubr.f32.gmra.mrb[0].mxu0 %v1507
    %v1575 = vpop.f32.mrb[0].mxu0
    %v1576 = vadd.f32 0.0, %v1575
    %v1577 = vpop.f32.mrb[0].mxu0
    %1578 = vdwg.mxu0
    %v1580 = vsel %vm295, %v1576, 0
    %1582 = vmatprep.subr.mxu0 0.0
    %1583 = vmatpush1.msra.mxu0 %v144
    %1584 = vmatprep.subr.mxu0 0.0
    %1585 = vmatpush1.msra.mxu0 0.0
    %1586 = vmatprep.subr.mxu0 0.0
    %1587 = vmatpush1.msra.mxu0 0.0
    %1588 = vmatprep.subr.mxu0 0.0
    %1589 = vmatpush1.msra.mxu0 0.0
    %1590 = vmatprep.subr.mxu0 0.0
    %1591 = vmatpush1.msra.mxu0 0.0
    %1592 = vmatprep.subr.mxu0 0.0
    %1593 = vmatpush1.msra.mxu0 0.0
    %1594 = vmatprep.subr.mxu0 0.0
    %1595 = vmatpush1.msra.mxu0 0.0
    %1596 = vmatprep.subr.mxu0 0.0
    %1597 = vmatpush1.msra.mxu0 0.0
    %1598 = vmatprep.subr.mxu0 0.0
    %1599 = vmatpush1.msra.mxu0 0.0
    %1600 = vmatprep.subr.mxu0 0.0
    %1601 = vmatpush1.msra.mxu0 0.0
    %1602 = vmatprep.subr.mxu0 0.0
    %1603 = vmatpush1.msra.mxu0 0.0
    %1604 = vmatprep.subr.mxu0 0.0
    %1605 = vmatpush1.msra.mxu0 0.0
    %1606 = vmatprep.subr.mxu0 0.0
    %1607 = vmatpush1.msra.mxu0 0.0
    %1608 = vmatprep.subr.mxu0 0.0
    %1609 = vmatpush1.msra.mxu0 0.0
    %1610 = vmatprep.subr.mxu0 0.0
    %1611 = vmatpush1.msra.mxu0 0.0
    %1612 = vmatprep.subr.mxu0 0.0
    %1613 = vmatpush1.msra.mxu0 0.0
    %1614 = vmatprep.subr.mxu0 0.0
    %1615 = vmatpush1.msra.mxu0 0.0
    %1616 = vmatprep.subr.mxu0 0.0
    %1617 = vmatpush1.msra.mxu0 0.0
    %1618 = vmatprep.subr.mxu0 0.0
    %1619 = vmatpush1.msra.mxu0 0.0
    %1620 = vmatprep.subr.mxu0 0.0
    %1621 = vmatpush1.msra.mxu0 0.0
    %1622 = vmatprep.subr.mxu0 0.0
    %1623 = vmatpush1.msra.mxu0 0.0
    %1624 = vmatprep.subr.mxu0 0.0
    %1625 = vmatpush1.msra.mxu0 0.0
    %1626 = vmatprep.subr.mxu0 0.0
    %1627 = vmatpush1.msra.mxu0 0.0
    %1628 = vmatprep.subr.mxu0 0.0
    %1629 = vmatpush1.msra.mxu0 0.0
    %1630 = vmatprep.subr.mxu0 0.0
    %1631 = vmatpush1.msra.mxu0 0.0
    %1632 = vmatprep.subr.mxu0 0.0
    %1633 = vmatpush1.msra.mxu0 0.0
    %1634 = vmatprep.subr.mxu0 0.0
    %1635 = vmatpush1.msra.mxu0 0.0
    %1636 = vmatprep.subr.mxu0 0.0
    %1637 = vmatpush1.msra.mxu0 0.0
    %1638 = vmatprep.subr.mxu0 0.0
    %1639 = vmatpush1.msra.mxu0 0.0
    %1640 = vmatprep.subr.mxu0 0.0
    %1641 = vmatpush1.msra.mxu0 0.0
    %1642 = vmatprep.subr.mxu0 0.0
    %1643 = vmatpush1.msra.mxu0 0.0
    %1644 = vmatprep.subr.mxu0 0.0
    %1645 = vmatpush1.msra.mxu0 0.0
    %1646 = vmatprep.mubr.f32.mxu0 0.0
    %1647 = vmatmul.mubr.f32.gmra.mrb[0].mxu0 %v1580
    %v1648 = vpop.f32.mrb[0].mxu0
    %v1649 = vadd.f32 0.0, %v1648
    %v1650 = vpop.f32.mrb[0].mxu0
    %1651 = vdwg.mxu0
    %v1653 = vsel %vm295, %v1411, 0
    %1655 = vmatprep.subr.mxu0 0.0
    %1656 = vmatpush1.msra.mxu0 %v143
    %1657 = vmatprep.subr.mxu0 0.0
    %1658 = vmatpush1.msra.mxu0 0.0
    %1659 = vmatprep.subr.mxu0 0.0
    %1660 = vmatpush1.msra.mxu0 0.0
    %1661 = vmatprep.subr.mxu0 0.0
    %1662 = vmatpush1.msra.mxu0 0.0
    %1663 = vmatprep.subr.mxu0 0.0
    %1664 = vmatpush1.msra.mxu0 0.0
    %1665 = vmatprep.subr.mxu0 0.0
    %1666 = vmatpush1.msra.mxu0 0.0
    %1667 = vmatprep.subr.mxu0 0.0
    %1668 = vmatpush1.msra.mxu0 0.0
    %1669 = vmatprep.subr.mxu0 0.0
    %1670 = vmatpush1.msra.mxu0 0.0
    %1671 = vmatprep.subr.mxu0 0.0
    %1672 = vmatpush1.msra.mxu0 0.0
    %1673 = vmatprep.subr.mxu0 0.0
    %1674 = vmatpush1.msra.mxu0 0.0
    %1675 = vmatprep.subr.mxu0 0.0
    %1676 = vmatpush1.msra.mxu0 0.0
    %1677 = vmatprep.subr.mxu0 0.0
    %1678 = vmatpush1.msra.mxu0 0.0
    %1679 = vmatprep.subr.mxu0 0.0
    %1680 = vmatpush1.msra.mxu0 0.0
    %1681 = vmatprep.subr.mxu0 0.0
    %1682 = vmatpush1.msra.mxu0 0.0
    %1683 = vmatprep.subr.mxu0 0.0
    %1684 = vmatpush1.msra.mxu0 0.0
    %1685 = vmatprep.subr.mxu0 0.0
    %1686 = vmatpush1.msra.mxu0 0.0
    %1687 = vmatprep.subr.mxu0 0.0
    %1688 = vmatpush1.msra.mxu0 0.0
    %1689 = vmatprep.subr.mxu0 0.0
    %1690 = vmatpush1.msra.mxu0 0.0
    %1691 = vmatprep.subr.mxu0 0.0
    %1692 = vmatpush1.msra.mxu0 0.0
    %1693 = vmatprep.subr.mxu0 0.0
    %1694 = vmatpush1.msra.mxu0 0.0
    %1695 = vmatprep.subr.mxu0 0.0
    %1696 = vmatpush1.msra.mxu0 0.0
    %1697 = vmatprep.subr.mxu0 0.0
    %1698 = vmatpush1.msra.mxu0 0.0
    %1699 = vmatprep.subr.mxu0 0.0
    %1700 = vmatpush1.msra.mxu0 0.0
    %1701 = vmatprep.subr.mxu0 0.0
    %1702 = vmatpush1.msra.mxu0 0.0
    %1703 = vmatprep.subr.mxu0 0.0
    %1704 = vmatpush1.msra.mxu0 0.0
    %1705 = vmatprep.subr.mxu0 0.0
    %1706 = vmatpush1.msra.mxu0 0.0
    %1707 = vmatprep.subr.mxu0 0.0
    %1708 = vmatpush1.msra.mxu0 0.0
    %1709 = vmatprep.subr.mxu0 0.0
    %1710 = vmatpush1.msra.mxu0 0.0
    %1711 = vmatprep.subr.mxu0 0.0
    %1712 = vmatpush1.msra.mxu0 0.0
    %1713 = vmatprep.subr.mxu0 0.0
    %1714 = vmatpush1.msra.mxu0 0.0
    %1715 = vmatprep.subr.mxu0 0.0
    %1716 = vmatpush1.msra.mxu0 0.0
    %1717 = vmatprep.subr.mxu0 0.0
    %1718 = vmatpush1.msra.mxu0 0.0
    %1719 = vmatprep.mubr.f32.mxu0 0.0
    %1720 = vmatmul.mubr.f32.gmra.mrb[0].mxu0 %v1653
    %v1721 = vpop.f32.mrb[0].mxu0
    %v1722 = vadd.f32 %v1649, %v1721
    %v1723 = vpop.f32.mrb[0].mxu0
    %1724 = vdwg.mxu0
    %1725 = vrot.lane.b32.xlu0 %v285, 112
    %v1726 = vpop.permute.xlu0 %1725
    %1727 = vrot.lane.b32.xlu0 %v285, 80
    %v1728 = vpop.permute.xlu0 %1727
    %v1729 = vsel %vm295, %v1726, 0
    %v1731 = vsel %vm295, %v1728, 0
    %1733 = vmatprep.subr.mxu0 0.0
    %1734 = vmatpush1.xpose.msra.mxu0 %v1731
    %1735 = vmatprep.subr.mxu0 0.0
    %1736 = vmatpush1.xpose.msra.mxu0 0.0
    %1737 = vmatprep.subr.mxu0 0.0
    %1738 = vmatpush1.xpose.msra.mxu0 0.0
    %1739 = vmatprep.subr.mxu0 0.0
    %1740 = vmatpush1.xpose.msra.mxu0 0.0
    %1741 = vmatprep.subr.mxu0 0.0
    %1742 = vmatpush1.xpose.msra.mxu0 0.0
    %1743 = vmatprep.subr.mxu0 0.0
    %1744 = vmatpush1.xpose.msra.mxu0 0.0
    %1745 = vmatprep.subr.mxu0 0.0
    %1746 = vmatpush1.xpose.msra.mxu0 0.0
    %1747 = vmatprep.subr.mxu0 0.0
    %1748 = vmatpush1.xpose.msra.mxu0 0.0
    %1749 = vmatprep.subr.mxu0 0.0
    %1750 = vmatpush1.xpose.msra.mxu0 0.0
    %1751 = vmatprep.subr.mxu0 0.0
    %1752 = vmatpush1.xpose.msra.mxu0 0.0
    %1753 = vmatprep.subr.mxu0 0.0
    %1754 = vmatpush1.xpose.msra.mxu0 0.0
    %1755 = vmatprep.subr.mxu0 0.0
    %1756 = vmatpush1.xpose.msra.mxu0 0.0
    %1757 = vmatprep.subr.mxu0 0.0
    %1758 = vmatpush1.xpose.msra.mxu0 0.0
    %1759 = vmatprep.subr.mxu0 0.0
    %1760 = vmatpush1.xpose.msra.mxu0 0.0
    %1761 = vmatprep.subr.mxu0 0.0
    %1762 = vmatpush1.xpose.msra.mxu0 0.0
    %1763 = vmatprep.subr.mxu0 0.0
    %1764 = vmatpush1.xpose.msra.mxu0 0.0
    %1765 = vmatprep.subr.mxu0 0.0
    %1766 = vmatpush1.xpose.msra.mxu0 0.0
    %1767 = vmatprep.subr.mxu0 0.0
    %1768 = vmatpush1.xpose.msra.mxu0 0.0
    %1769 = vmatprep.subr.mxu0 0.0
    %1770 = vmatpush1.xpose.msra.mxu0 0.0
    %1771 = vmatprep.subr.mxu0 0.0
    %1772 = vmatpush1.xpose.msra.mxu0 0.0
    %1773 = vmatprep.subr.mxu0 0.0
    %1774 = vmatpush1.xpose.msra.mxu0 0.0
    %1775 = vmatprep.subr.mxu0 0.0
    %1776 = vmatpush1.xpose.msra.mxu0 0.0
    %1777 = vmatprep.subr.mxu0 0.0
    %1778 = vmatpush1.xpose.msra.mxu0 0.0
    %1779 = vmatprep.subr.mxu0 0.0
    %1780 = vmatpush1.xpose.msra.mxu0 0.0
    %1781 = vmatprep.subr.mxu0 0.0
    %1782 = vmatpush1.xpose.msra.mxu0 0.0
    %1783 = vmatprep.subr.mxu0 0.0
    %1784 = vmatpush1.xpose.msra.mxu0 0.0
    %1785 = vmatprep.subr.mxu0 0.0
    %1786 = vmatpush1.xpose.msra.mxu0 0.0
    %1787 = vmatprep.subr.mxu0 0.0
    %1788 = vmatpush1.xpose.msra.mxu0 0.0
    %1789 = vmatprep.subr.mxu0 0.0
    %1790 = vmatpush1.xpose.msra.mxu0 0.0
    %1791 = vmatprep.subr.mxu0 0.0
    %1792 = vmatpush1.xpose.msra.mxu0 0.0
    %1793 = vmatprep.subr.mxu0 0.0
    %1794 = vmatpush1.xpose.msra.mxu0 0.0
    %1795 = vmatprep.subr.mxu0 0.0
    %1796 = vmatpush1.xpose.msra.mxu0 0.0
    %1797 = vmatprep.mubr.f32.mxu0 0.0
    %1798 = vmatmul.mubr.f32.gmra.mrb[0].mxu0 %v1729
    %v1799 = vpop.f32.mrb[0].mxu0
    %v1800 = vadd.f32 %v1249, %v1799
    %v1801 = vpop.f32.mrb[0].mxu0
    %1802 = vdwg.mxu0
    %v1803 = vsel %vm295, %v1800, -inf
    %1804 = vmax.xlane.f32.xlu0 %v1803
    %v1805 = vpop.xlane.xlu0 %1804
    %v1806 = vsub.f32 %v1800, %v1805
    %v1807 = vmul.f32 %v1806, 1.442695
    %v1808 = vpow.pop %v1807
    %v1809 = vsel %vm295, %v1808, 0.0
    %1810 = vadd.xlane.f32.xlu0 %v1809
    %v1811 = vpop.xlane.xlu0 %1810
    %v1812 = vrcp.pop %v1811
    %v1813 = vmul.f32 %v1808, %v1812
    %1814 = vrot.lane.b32.xlu0 %v285, 48
    %v1815 = vpop.permute.xlu0 %1814
    %v1818 = vsel %vm295, %v1813, 0
    %1820 = vmatprep.subr.mxu0 0.0
    %1821 = vmatpush1.msra.mxu0 %v1815
    %1822 = vmatprep.subr.mxu0 0.0
    %1823 = vmatpush1.msra.mxu0 0.0
    %1824 = vmatprep.subr.mxu0 0.0
    %1825 = vmatpush1.msra.mxu0 0.0
    %1826 = vmatprep.subr.mxu0 0.0
    %1827 = vmatpush1.msra.mxu0 0.0
    %1828 = vmatprep.subr.mxu0 0.0
    %1829 = vmatpush1.msra.mxu0 0.0
    %1830 = vmatprep.subr.mxu0 0.0
    %1831 = vmatpush1.msra.mxu0 0.0
    %1832 = vmatprep.subr.mxu0 0.0
    %1833 = vmatpush1.msra.mxu0 0.0
    %1834 = vmatprep.subr.mxu0 0.0
    %1835 = vmatpush1.msra.mxu0 0.0
    %1836 = vmatprep.subr.mxu0 0.0
    %1837 = vmatpush1.msra.mxu0 0.0
    %1838 = vmatprep.subr.mxu0 0.0
    %1839 = vmatpush1.msra.mxu0 0.0
    %1840 = vmatprep.subr.mxu0 0.0
    %1841 = vmatpush1.msra.mxu0 0.0
    %1842 = vmatprep.subr.mxu0 0.0
    %1843 = vmatpush1.msra.mxu0 0.0
    %1844 = vmatprep.subr.mxu0 0.0
    %1845 = vmatpush1.msra.mxu0 0.0
    %1846 = vmatprep.subr.mxu0 0.0
    %1847 = vmatpush1.msra.mxu0 0.0
    %1848 = vmatprep.subr.mxu0 0.0
    %1849 = vmatpush1.msra.mxu0 0.0
    %1850 = vmatprep.subr.mxu0 0.0
    %1851 = vmatpush1.msra.mxu0 0.0
    %1852 = vmatprep.subr.mxu0 0.0
    %1853 = vmatpush1.msra.mxu0 0.0
    %1854 = vmatprep.subr.mxu0 0.0
    %1855 = vmatpush1.msra.mxu0 0.0
    %1856 = vmatprep.subr.mxu0 0.0
    %1857 = vmatpush1.msra.mxu0 0.0
    %1858 = vmatprep.subr.mxu0 0.0
    %1859 = vmatpush1.msra.mxu0 0.0
    %1860 = vmatprep.subr.mxu0 0.0
    %1861 = vmatpush1.msra.mxu0 0.0
    %1862 = vmatprep.subr.mxu0 0.0
    %1863 = vmatpush1.msra.mxu0 0.0
    %1864 = vmatprep.subr.mxu0 0.0
    %1865 = vmatpush1.msra.mxu0 0.0
    %1866 = vmatprep.subr.mxu0 0.0
    %1867 = vmatpush1.msra.mxu0 0.0
    %1868 = vmatprep.subr.mxu0 0.0
    %1869 = vmatpush1.msra.mxu0 0.0
    %1870 = vmatprep.subr.mxu0 0.0
    %1871 = vmatpush1.msra.mxu0 0.0
    %1872 = vmatprep.subr.mxu0 0.0
    %1873 = vmatpush1.msra.mxu0 0.0
    %1874 = vmatprep.subr.mxu0 0.0
    %1875 = vmatpush1.msra.mxu0 0.0
    %1876 = vmatprep.subr.mxu0 0.0
    %1877 = vmatpush1.msra.mxu0 0.0
    %1878 = vmatprep.subr.mxu0 0.0
    %1879 = vmatpush1.msra.mxu0 0.0
    %1880 = vmatprep.subr.mxu0 0.0
    %1881 = vmatpush1.msra.mxu0 0.0
    %1882 = vmatprep.subr.mxu0 0.0
    %1883 = vmatpush1.msra.mxu0 0.0
    %1884 = vmatprep.mubr.f32.mxu0 0.0
    %1885 = vmatmul.mubr.f32.gmra.mrb[0].mxu0 %v1818
    %v1886 = vpop.f32.mrb[0].mxu0
    %v1887 = vadd.f32 0.0, %v1886
    %v1888 = vpop.f32.mrb[0].mxu0
    %1889 = vdwg.mxu0
    %v1891 = vsel %vm295, %v1887, 0
    %1893 = vmatprep.subr.mxu0 0.0
    %1894 = vmatpush1.msra.mxu0 %v145
    %1895 = vmatprep.subr.mxu0 0.0
    %1896 = vmatpush1.msra.mxu0 0.0
    %1897 = vmatprep.subr.mxu0 0.0
    %1898 = vmatpush1.msra.mxu0 0.0
    %1899 = vmatprep.subr.mxu0 0.0
    %1900 = vmatpush1.msra.mxu0 0.0
    %1901 = vmatprep.subr.mxu0 0.0
    %1902 = vmatpush1.msra.mxu0 0.0
    %1903 = vmatprep.subr.mxu0 0.0
    %1904 = vmatpush1.msra.mxu0 0.0
    %1905 = vmatprep.subr.mxu0 0.0
    %1906 = vmatpush1.msra.mxu0 0.0
    %1907 = vmatprep.subr.mxu0 0.0
    %1908 = vmatpush1.msra.mxu0 0.0
    %1909 = vmatprep.subr.mxu0 0.0
    %1910 = vmatpush1.msra.mxu0 0.0
    %1911 = vmatprep.subr.mxu0 0.0
    %1912 = vmatpush1.msra.mxu0 0.0
    %1913 = vmatprep.subr.mxu0 0.0
    %1914 = vmatpush1.msra.mxu0 0.0
    %1915 = vmatprep.subr.mxu0 0.0
    %1916 = vmatpush1.msra.mxu0 0.0
    %1917 = vmatprep.subr.mxu0 0.0
    %1918 = vmatpush1.msra.mxu0 0.0
    %1919 = vmatprep.subr.mxu0 0.0
    %1920 = vmatpush1.msra.mxu0 0.0
    %1921 = vmatprep.subr.mxu0 0.0
    %1922 = vmatpush1.msra.mxu0 0.0
    %1923 = vmatprep.subr.mxu0 0.0
    %1924 = vmatpush1.msra.mxu0 0.0
    %1925 = vmatprep.subr.mxu0 0.0
    %1926 = vmatpush1.msra.mxu0 0.0
    %1927 = vmatprep.subr.mxu0 0.0
    %1928 = vmatpush1.msra.mxu0 0.0
    %1929 = vmatprep.subr.mxu0 0.0
    %1930 = vmatpush1.msra.mxu0 0.0
    %1931 = vmatprep.subr.mxu0 0.0
    %1932 = vmatpush1.msra.mxu0 0.0
    %1933 = vmatprep.subr.mxu0 0.0
    %1934 = vmatpush1.msra.mxu0 0.0
    %1935 = vmatprep.subr.mxu0 0.0
    %1936 = vmatpush1.msra.mxu0 0.0
    %1937 = vmatprep.subr.mxu0 0.0
    %1938 = vmatpush1.msra.mxu0 0.0
    %1939 = vmatprep.subr.mxu0 0.0
    %1940 = vmatpush1.msra.mxu0 0.0
    %1941 = vmatprep.subr.mxu0 0.0
    %1942 = vmatpush1.msra.mxu0 0.0
    %1943 = vmatprep.subr.mxu0 0.0
    %1944 = vmatpush1.msra.mxu0 0.0
    %1945 = vmatprep.subr.mxu0 0.0
    %1946 = vmatpush1.msra.mxu0 0.0
    %1947 = vmatprep.subr.mxu0 0.0
    %1948 = vmatpush1.msra.mxu0 0.0
    %1949 = vmatprep.subr.mxu0 0.0
    %1950 = vmatpush1.msra.mxu0 0.0
    %1951 = vmatprep.subr.mxu0 0.0
    %1952 = vmatpush1.msra.mxu0 0.0
    %1953 = vmatprep.subr.mxu0 0.0
    %1954 = vmatpush1.msra.mxu0 0.0
    %1955 = vmatprep.subr.mxu0 0.0
    %1956 = vmatpush1.msra.mxu0 0.0
    %1957 = vmatprep.mubr.f32.mxu0 0.0
    %1958 = vmatmul.mubr.f32.gmra.mrb[0].mxu0 %v1891
    %v1959 = vpop.f32.mrb[0].mxu0
    %v1960 = vadd.f32 0.0, %v1959
    %v1961 = vpop.f32.mrb[0].mxu0
    %1962 = vdwg.mxu0
    %v1963 = vadd.f32 %v1722, %v1960
    %1964 = vrot.lane.b32.xlu0 %v285, 104
    %v1965 = vpop.permute.xlu0 %1964
    %1966 = vrot.lane.b32.xlu0 %v285, 72
    %v1967 = vpop.permute.xlu0 %1966
    %v1968 = vsel %vm295, %v1965, 0
    %v1970 = vsel %vm295, %v1967, 0
    %1972 = vmatprep.subr.mxu0 0.0
    %1973 = vmatpush1.xpose.msra.mxu0 %v1970
    %1974 = vmatprep.subr.mxu0 0.0
    %1975 = vmatpush1.xpose.msra.mxu0 0.0
    %1976 = vmatprep.subr.mxu0 0.0
    %1977 = vmatpush1.xpose.msra.mxu0 0.0
    %1978 = vmatprep.subr.mxu0 0.0
    %1979 = vmatpush1.xpose.msra.mxu0 0.0
    %1980 = vmatprep.subr.mxu0 0.0
    %1981 = vmatpush1.xpose.msra.mxu0 0.0
    %1982 = vmatprep.subr.mxu0 0.0
    %1983 = vmatpush1.xpose.msra.mxu0 0.0
    %1984 = vmatprep.subr.mxu0 0.0
    %1985 = vmatpush1.xpose.msra.mxu0 0.0
    %1986 = vmatprep.subr.mxu0 0.0
    %1987 = vmatpush1.xpose.msra.mxu0 0.0
    %1988 = vmatprep.subr.mxu0 0.0
    %1989 = vmatpush1.xpose.msra.mxu0 0.0
    %1990 = vmatprep.subr.mxu0 0.0
    %1991 = vmatpush1.xpose.msra.mxu0 0.0
    %1992 = vmatprep.subr.mxu0 0.0
    %1993 = vmatpush1.xpose.msra.mxu0 0.0
    %1994 = vmatprep.subr.mxu0 0.0
    %1995 = vmatpush1.xpose.msra.mxu0 0.0
    %1996 = vmatprep.subr.mxu0 0.0
    %1997 = vmatpush1.xpose.msra.mxu0 0.0
    %1998 = vmatprep.subr.mxu0 0.0
    %1999 = vmatpush1.xpose.msra.mxu0 0.0
    %2000 = vmatprep.subr.mxu0 0.0
    %2001 = vmatpush1.xpose.msra.mxu0 0.0
    %2002 = vmatprep.subr.mxu0 0.0
    %2003 = vmatpush1.xpose.msra.mxu0 0.0
    %2004 = vmatprep.subr.mxu0 0.0
    %2005 = vmatpush1.xpose.msra.mxu0 0.0
    %2006 = vmatprep.subr.mxu0 0.0
    %2007 = vmatpush1.xpose.msra.mxu0 0.0
    %2008 = vmatprep.subr.mxu0 0.0
    %2009 = vmatpush1.xpose.msra.mxu0 0.0
    %2010 = vmatprep.subr.mxu0 0.0
    %2011 = vmatpush1.xpose.msra.mxu0 0.0
    %2012 = vmatprep.subr.mxu0 0.0
    %2013 = vmatpush1.xpose.msra.mxu0 0.0
    %2014 = vmatprep.subr.mxu0 0.0
    %2015 = vmatpush1.xpose.msra.mxu0 0.0
    %2016 = vmatprep.subr.mxu0 0.0
    %2017 = vmatpush1.xpose.msra.mxu0 0.0
    %2018 = vmatprep.subr.mxu0 0.0
    %2019 = vmatpush1.xpose.msra.mxu0 0.0
    %2020 = vmatprep.subr.mxu0 0.0
    %2021 = vmatpush1.xpose.msra.mxu0 0.0
    %2022 = vmatprep.subr.mxu0 0.0
    %2023 = vmatpush1.xpose.msra.mxu0 0.0
    %2024 = vmatprep.subr.mxu0 0.0
    %2025 = vmatpush1.xpose.msra.mxu0 0.0
    %2026 = vmatprep.subr.mxu0 0.0
    %2027 = vmatpush1.xpose.msra.mxu0 0.0
    %2028 = vmatprep.subr.mxu0 0.0
    %2029 = vmatpush1.xpose.msra.mxu0 0.0
    %2030 = vmatprep.subr.mxu0 0.0
    %2031 = vmatpush1.xpose.msra.mxu0 0.0
    %2032 = vmatprep.subr.mxu0 0.0
    %2033 = vmatpush1.xpose.msra.mxu0 0.0
    %2034 = vmatprep.subr.mxu0 0.0
    %2035 = vmatpush1.xpose.msra.mxu0 0.0
    %2036 = vmatprep.mubr.f32.mxu0 0.0
    %2037 = vmatmul.mubr.f32.gmra.mrb[0].mxu0 %v1968
    %v2038 = vpop.f32.mrb[0].mxu0
    %v2039 = vadd.f32 %v1249, %v2038
    %v2040 = vpop.f32.mrb[0].mxu0
    %2041 = vdwg.mxu0
    %v2042 = vsel %vm295, %v2039, -inf
    %2043 = vmax.xlane.f32.xlu0 %v2042
    %v2044 = vpop.xlane.xlu0 %2043
    %v2045 = vsub.f32 %v2039, %v2044
    %v2046 = vmul.f32 %v2045, 1.442695
    %v2047 = vpow.pop %v2046
    %v2048 = vsel %vm295, %v2047, 0.0
    %2049 = vadd.xlane.f32.xlu0 %v2048
    %v2050 = vpop.xlane.xlu0 %2049
    %v2051 = vrcp.pop %v2050
    %v2052 = vmul.f32 %v2047, %v2051
    %2053 = vrot.lane.b32.xlu0 %v285, 40
    %v2054 = vpop.permute.xlu0 %2053
    %v2057 = vsel %vm295, %v2052, 0
    %2059 = vmatprep.subr.mxu0 0.0
    %2060 = vmatpush1.msra.mxu0 %v2054
    %2061 = vmatprep.subr.mxu0 0.0
    %2062 = vmatpush1.msra.mxu0 0.0
    %2063 = vmatprep.subr.mxu0 0.0
    %2064 = vmatpush1.msra.mxu0 0.0
    %2065 = vmatprep.subr.mxu0 0.0
    %2066 = vmatpush1.msra.mxu0 0.0
    %2067 = vmatprep.subr.mxu0 0.0
    %2068 = vmatpush1.msra.mxu0 0.0
    %2069 = vmatprep.subr.mxu0 0.0
    %2070 = vmatpush1.msra.mxu0 0.0
    %2071 = vmatprep.subr.mxu0 0.0
    %2072 = vmatpush1.msra.mxu0 0.0
    %2073 = vmatprep.subr.mxu0 0.0
    %2074 = vmatpush1.msra.mxu0 0.0
    %2075 = vmatprep.subr.mxu0 0.0
    %2076 = vmatpush1.msra.mxu0 0.0
    %2077 = vmatprep.subr.mxu0 0.0
    %2078 = vmatpush1.msra.mxu0 0.0
    %2079 = vmatprep.subr.mxu0 0.0
    %2080 = vmatpush1.msra.mxu0 0.0
    %2081 = vmatprep.subr.mxu0 0.0
    %2082 = vmatpush1.msra.mxu0 0.0
    %2083 = vmatprep.subr.mxu0 0.0
    %2084 = vmatpush1.msra.mxu0 0.0
    %2085 = vmatprep.subr.mxu0 0.0
    %2086 = vmatpush1.msra.mxu0 0.0
    %2087 = vmatprep.subr.mxu0 0.0
    %2088 = vmatpush1.msra.mxu0 0.0
    %2089 = vmatprep.subr.mxu0 0.0
    %2090 = vmatpush1.msra.mxu0 0.0
    %2091 = vmatprep.subr.mxu0 0.0
    %2092 = vmatpush1.msra.mxu0 0.0
    %2093 = vmatprep.subr.mxu0 0.0
    %2094 = vmatpush1.msra.mxu0 0.0
    %2095 = vmatprep.subr.mxu0 0.0
    %2096 = vmatpush1.msra.mxu0 0.0
    %2097 = vmatprep.subr.mxu0 0.0
    %2098 = vmatpush1.msra.mxu0 0.0
    %2099 = vmatprep.subr.mxu0 0.0
    %2100 = vmatpush1.msra.mxu0 0.0
    %2101 = vmatprep.subr.mxu0 0.0
    %2102 = vmatpush1.msra.mxu0 0.0
    %2103 = vmatprep.subr.mxu0 0.0
    %2104 = vmatpush1.msra.mxu0 0.0
    %2105 = vmatprep.subr.mxu0 0.0
    %2106 = vmatpush1.msra.mxu0 0.0
    %2107 = vmatprep.subr.mxu0 0.0
    %2108 = vmatpush1.msra.mxu0 0.0
    %2109 = vmatprep.subr.mxu0 0.0
    %2110 = vmatpush1.msra.mxu0 0.0
    %2111 = vmatprep.subr.mxu0 0.0
    %2112 = vmatpush1.msra.mxu0 0.0
    %2113 = vmatprep.subr.mxu0 0.0
    %2114 = vmatpush1.msra.mxu0 0.0
    %2115 = vmatprep.subr.mxu0 0.0
    %2116 = vmatpush1.msra.mxu0 0.0
    %2117 = vmatprep.subr.mxu0 0.0
    %2118 = vmatpush1.msra.mxu0 0.0
    %2119 = vmatprep.subr.mxu0 0.0
    %2120 = vmatpush1.msra.mxu0 0.0
    %2121 = vmatprep.subr.mxu0 0.0
    %2122 = vmatpush1.msra.mxu0 0.0
    %2123 = vmatprep.mubr.f32.mxu0 0.0
    %2124 = vmatmul.mubr.f32.gmra.mrb[0].mxu0 %v2057
    %v2125 = vpop.f32.mrb[0].mxu0
    %v2126 = vadd.f32 0.0, %v2125
    %v2127 = vpop.f32.mrb[0].mxu0
    %2128 = vdwg.mxu0
    %v2130 = vsel %vm295, %v2126, 0
    %2132 = vmatprep.subr.mxu0 0.0
    %2133 = vmatpush1.msra.mxu0 %v146
    %2134 = vmatprep.subr.mxu0 0.0
    %2135 = vmatpush1.msra.mxu0 0.0
    %2136 = vmatprep.subr.mxu0 0.0
    %2137 = vmatpush1.msra.mxu0 0.0
    %2138 = vmatprep.subr.mxu0 0.0
    %2139 = vmatpush1.msra.mxu0 0.0
    %2140 = vmatprep.subr.mxu0 0.0
    %2141 = vmatpush1.msra.mxu0 0.0
    %2142 = vmatprep.subr.mxu0 0.0
    %2143 = vmatpush1.msra.mxu0 0.0
    %2144 = vmatprep.subr.mxu0 0.0
    %2145 = vmatpush1.msra.mxu0 0.0
    %2146 = vmatprep.subr.mxu0 0.0
    %2147 = vmatpush1.msra.mxu0 0.0
    %2148 = vmatprep.subr.mxu0 0.0
    %2149 = vmatpush1.msra.mxu0 0.0
    %2150 = vmatprep.subr.mxu0 0.0
    %2151 = vmatpush1.msra.mxu0 0.0
    %2152 = vmatprep.subr.mxu0 0.0
    %2153 = vmatpush1.msra.mxu0 0.0
    %2154 = vmatprep.subr.mxu0 0.0
    %2155 = vmatpush1.msra.mxu0 0.0
    %2156 = vmatprep.subr.mxu0 0.0
    %2157 = vmatpush1.msra.mxu0 0.0
    %2158 = vmatprep.subr.mxu0 0.0
    %2159 = vmatpush1.msra.mxu0 0.0
    %2160 = vmatprep.subr.mxu0 0.0
    %2161 = vmatpush1.msra.mxu0 0.0
    %2162 = vmatprep.subr.mxu0 0.0
    %2163 = vmatpush1.msra.mxu0 0.0
    %2164 = vmatprep.subr.mxu0 0.0
    %2165 = vmatpush1.msra.mxu0 0.0
    %2166 = vmatprep.subr.mxu0 0.0
    %2167 = vmatpush1.msra.mxu0 0.0
    %2168 = vmatprep.subr.mxu0 0.0
    %2169 = vmatpush1.msra.mxu0 0.0
    %2170 = vmatprep.subr.mxu0 0.0
    %2171 = vmatpush1.msra.mxu0 0.0
    %2172 = vmatprep.subr.mxu0 0.0
    %2173 = vmatpush1.msra.mxu0 0.0
    %2174 = vmatprep.subr.mxu0 0.0
    %2175 = vmatpush1.msra.mxu0 0.0
    %2176 = vmatprep.subr.mxu0 0.0
    %2177 = vmatpush1.msra.mxu0 0.0
    %2178 = vmatprep.subr.mxu0 0.0
    %2179 = vmatpush1.msra.mxu0 0.0
    %2180 = vmatprep.subr.mxu0 0.0
    %2181 = vmatpush1.msra.mxu0 0.0
    %2182 = vmatprep.subr.mxu0 0.0
    %2183 = vmatpush1.msra.mxu0 0.0
    %2184 = vmatprep.subr.mxu0 0.0
    %2185 = vmatpush1.msra.mxu0 0.0
    %2186 = vmatprep.subr.mxu0 0.0
    %2187 = vmatpush1.msra.mxu0 0.0
    %2188 = vmatprep.subr.mxu0 0.0
    %2189 = vmatpush1.msra.mxu0 0.0
    %2190 = vmatprep.subr.mxu0 0.0
    %2191 = vmatpush1.msra.mxu0 0.0
    %2192 = vmatprep.subr.mxu0 0.0
    %2193 = vmatpush1.msra.mxu0 0.0
    %2194 = vmatprep.subr.mxu0 0.0
    %2195 = vmatpush1.msra.mxu0 0.0
    %2196 = vmatprep.mubr.f32.mxu0 0.0
    %2197 = vmatmul.mubr.f32.gmra.mrb[0].mxu0 %v2130
    %v2198 = vpop.f32.mrb[0].mxu0
    %v2199 = vadd.f32 0.0, %v2198
    %v2200 = vpop.f32.mrb[0].mxu0
    %2201 = vdwg.mxu0
    %v2202 = vadd.f32 %v1963, %v2199
    %v2203 = vadd.f32 %v130, %v1245
    %v2204 = vadd.f32 %v135, %v2202
    %v2205 = vlaneseq
    %v2206 = vshrl.u32 %v2205, 7
    %v2207 = vsub.s32 2, %v2206
    %v2208 = vrot.slane %v160, %v2207
    %v2209 = vadd.f32 %v2203, %v2208
    %v2210 = vadd.f32 %v2204, %v2208
    %v2211 = vsel %vm161, %v2209, 0.0
    %2212 = vadd.xlane.f32.xlu0 %v2211
    %v2213 = vpop.xlane.xlu0 %2212
    %v2214 = vsel %vm161, %v2210, 0.0
    %2215 = vadd.xlane.f32.xlu0 %v2214
    %v2216 = vpop.xlane.xlu0 %2215
    %v2217 = vmul.f32 %v2213, %v168
    %v2218 = vmul.f32 %v2216, %v168
    %v2219 = vsub.f32 %v2209, %v2217
    %v2220 = vsub.f32 %v2210, %v2218
    %v2221 = vmul.f32 %v2219, %v2219
    %v2222 = vmul.f32 %v2220, %v2220
    %v2223 = vsel %vm161, %v2221, 0.0
    %2224 = vadd.xlane.f32.xlu0 %v2223
    %v2225 = vpop.xlane.xlu0 %2224
    %v2226 = vsel %vm161, %v2222, 0.0
    %2227 = vadd.xlane.f32.xlu0 %v2226
    %v2228 = vpop.xlane.xlu0 %2227
    %v2229 = vmul.f32 %v2225, %v168
    %v2230 = vmul.f32 %v2228, %v168
    %v2231 = vadd.f32 %v2229, 1e-05
    %v2232 = vadd.f32 %v2230, 1e-05
    %v2233 = vrsqrt.pop %v2231
    %v2234 = vrsqrt.pop %v2232
    %v2235 = vmul.f32 %v2219, %v2233
    %v2236 = vmul.f32 %v2220, %v2234
    %v2237 = vlaneseq
    %v2238 = vshrl.u32 %v2237, 7
    %v2239 = vsub.s32 3, %v2238
    %v2240 = vrot.slane %v160, %v2239
    %v2241 = vmul.f32 %v2235, %v2240
    %v2242 = vmul.f32 %v2236, %v2240
    %v2243 = vlaneseq
    %v2244 = vshrl.u32 %v2243, 7
    %v2245 = vsub.s32 4, %v2244
    %v2246 = vrot.slane %v160, %v2245
    %v2247 = vadd.f32 %v2241, %v2246
    %v2248 = vadd.f32 %v2242, %v2246
    %v2250 = vlaneseq
    %v2251 = vshrl.u32 %v2250, 7
    %v2252 = vsub.s32 0, %v2251
    %v2253 = vrot.slane %v159, %v2252
    %v2256 = vsel %vm161, %v2247, 0
    %v2259 = vsel %vm161, %v2248, 0
    %2261 = vmatprep.subr.mxu0 0.0
    %2262 = vmatpush1.msra.mxu0 %v147
    %2263 = vmatprep.subr.mxu0 0.0
    %2264 = vmatpush1.msra.mxu0 %v148
    %2265 = vmatprep.subr.mxu0 0.0
    %2266 = vmatpush1.msra.mxu0 %v149
    %2267 = vmatprep.subr.mxu0 0.0
    %2268 = vmatpush1.msra.mxu0 %v150
    %2269 = vmatprep.subr.mxu0 0.0
    %2270 = vmatpush1.msra.mxu0 0.0
    %2271 = vmatprep.subr.mxu0 0.0
    %2272 = vmatpush1.msra.mxu0 0.0
    %2273 = vmatprep.subr.mxu0 0.0
    %2274 = vmatpush1.msra.mxu0 0.0
    %2275 = vmatprep.subr.mxu0 0.0
    %2276 = vmatpush1.msra.mxu0 0.0
    %2277 = vmatprep.subr.mxu0 0.0
    %2278 = vmatpush1.msra.mxu0 0.0
    %2279 = vmatprep.subr.mxu0 0.0
    %2280 = vmatpush1.msra.mxu0 0.0
    %2281 = vmatprep.subr.mxu0 0.0
    %2282 = vmatpush1.msra.mxu0 0.0
    %2283 = vmatprep.subr.mxu0 0.0
    %2284 = vmatpush1.msra.mxu0 0.0
    %2285 = vmatprep.subr.mxu0 0.0
    %2286 = vmatpush1.msra.mxu0 0.0
    %2287 = vmatprep.subr.mxu0 0.0
    %2288 = vmatpush1.msra.mxu0 0.0
    %2289 = vmatprep.subr.mxu0 0.0
    %2290 = vmatpush1.msra.mxu0 0.0
    %2291 = vmatprep.subr.mxu0 0.0
    %2292 = vmatpush1.msra.mxu0 0.0
    %2293 = vmatprep.subr.mxu0 0.0
    %2294 = vmatpush1.msra.mxu0 0.0
    %2295 = vmatprep.subr.mxu0 0.0
    %2296 = vmatpush1.msra.mxu0 0.0
    %2297 = vmatprep.subr.mxu0 0.0
    %2298 = vmatpush1.msra.mxu0 0.0
    %2299 = vmatprep.subr.mxu0 0.0
    %2300 = vmatpush1.msra.mxu0 0.0
    %2301 = vmatprep.subr.mxu0 0.0
    %2302 = vmatpush1.msra.mxu0 0.0
    %2303 = vmatprep.subr.mxu0 0.0
    %2304 = vmatpush1.msra.mxu0 0.0
    %2305 = vmatprep.subr.mxu0 0.0
    %2306 = vmatpush1.msra.mxu0 0.0
    %2307 = vmatprep.subr.mxu0 0.0
    %2308 = vmatpush1.msra.mxu0 0.0
    %2309 = vmatprep.subr.mxu0 0.0
    %2310 = vmatpush1.msra.mxu0 0.0
    %2311 = vmatprep.subr.mxu0 0.0
    %2312 = vmatpush1.msra.mxu0 0.0
    %2313 = vmatprep.subr.mxu0 0.0
    %2314 = vmatpush1.msra.mxu0 0.0
    %2315 = vmatprep.subr.mxu0 0.0
    %2316 = vmatpush1.msra.mxu0 0.0
    %2317 = vmatprep.subr.mxu0 0.0
    %2318 = vmatpush1.msra.mxu0 0.0
    %2319 = vmatprep.subr.mxu0 0.0
    %2320 = vmatpush1.msra.mxu0 0.0
    %2321 = vmatprep.subr.mxu0 0.0
    %2322 = vmatpush1.msra.mxu0 0.0
    %2323 = vmatprep.subr.mxu0 0.0
    %2324 = vmatpush1.msra.mxu0 0.0
    %2325 = vmatprep.mubr.f32.mxu0 0.0
    %2326 = vmatmul.mubr.f32.gmra.mrb[0].mxu0 %v2256
    %v2327 = vpop.f32.mrb[0].mxu0
    %v2328 = vadd.f32 %v2253, %v2327
    %v2329 = vpop.f32.mrb[0].mxu0
    %2330 = vmatprep.mubr.f32.mxu0 0.0
    %2331 = vmatmul.mubr.f32.gmra.mrb[0].mxu0 %v2259
    %v2332 = vpop.f32.mrb[0].mxu0
    %v2333 = vadd.f32 %v2253, %v2332
    %v2334 = vpop.f32.mrb[0].mxu0
    %2335 = vdwg.mxu0
    %v2336 = vmax.f32 %v2328, 0.0
    %v2337 = vmax.f32 %v2333, 0.0
    %vm2338 = vcmask 523264
    %v2340 = vsel %vm2338, %v2336, 0
    %v2343 = vsel %vm2338, %v2337, 0
    %2345 = vmatprep.subr.mxu0 0.0
    %2346 = vmatpush1.msra.mxu0 %v151
    %2347 = vmatprep.subr.mxu0 0.0
    %2348 = vmatpush1.msra.mxu0 %v152
    %2349 = vmatprep.subr.mxu0 0.0
    %2350 = vmatpush1.msra.mxu0 %v153
    %2351 = vmatprep.subr.mxu0 0.0
    %2352 = vmatpush1.msra.mxu0 %v154
    %2353 = vmatprep.subr.mxu0 0.0
    %2354 = vmatpush1.msra.mxu0 %v155
    %2355 = vmatprep.subr.mxu0 0.0
    %2356 = vmatpush1.msra.mxu0 %v156
    %2357 = vmatprep.subr.mxu0 0.0
    %2358 = vmatpush1.msra.mxu0 %v157
    %2359 = vmatprep.subr.mxu0 0.0
    %2360 = vmatpush1.msra.mxu0 %v158
    %2361 = vmatprep.subr.mxu0 0.0
    %2362 = vmatpush1.msra.mxu0 0.0
    %2363 = vmatprep.subr.mxu0 0.0
    %2364 = vmatpush1.msra.mxu0 0.0
    %2365 = vmatprep.subr.mxu0 0.0
    %2366 = vmatpush1.msra.mxu0 0.0
    %2367 = vmatprep.subr.mxu0 0.0
    %2368 = vmatpush1.msra.mxu0 0.0
    %2369 = vmatprep.subr.mxu0 0.0
    %2370 = vmatpush1.msra.mxu0 0.0
    %2371 = vmatprep.subr.mxu0 0.0
    %2372 = vmatpush1.msra.mxu0 0.0
    %2373 = vmatprep.subr.mxu0 0.0
    %2374 = vmatpush1.msra.mxu0 0.0
    %2375 = vmatprep.subr.mxu0 0.0
    %2376 = vmatpush1.msra.mxu0 0.0
    %2377 = vmatprep.subr.mxu0 0.0
    %2378 = vmatpush1.msra.mxu0 0.0
    %2379 = vmatprep.subr.mxu0 0.0
    %2380 = vmatpush1.msra.mxu0 0.0
    %2381 = vmatprep.subr.mxu0 0.0
    %2382 = vmatpush1.msra.mxu0 0.0
    %2383 = vmatprep.subr.mxu0 0.0
    %2384 = vmatpush1.msra.mxu0 0.0
    %2385 = vmatprep.subr.mxu0 0.0
    %2386 = vmatpush1.msra.mxu0 0.0
    %2387 = vmatprep.subr.mxu0 0.0
    %2388 = vmatpush1.msra.mxu0 0.0
    %2389 = vmatprep.subr.mxu0 0.0
    %2390 = vmatpush1.msra.mxu0 0.0
    %2391 = vmatprep.subr.mxu0 0.0
    %2392 = vmatpush1.msra.mxu0 0.0
    %2393 = vmatprep.subr.mxu0 0.0
    %2394 = vmatpush1.msra.mxu0 0.0
    %2395 = vmatprep.subr.mxu0 0.0
    %2396 = vmatpush1.msra.mxu0 0.0
    %2397 = vmatprep.subr.mxu0 0.0
    %2398 = vmatpush1.msra.mxu0 0.0
    %2399 = vmatprep.subr.mxu0 0.0
    %2400 = vmatpush1.msra.mxu0 0.0
    %2401 = vmatprep.subr.mxu0 0.0
    %2402 = vmatpush1.msra.mxu0 0.0
    %2403 = vmatprep.subr.mxu0 0.0
    %2404 = vmatpush1.msra.mxu0 0.0
    %2405 = vmatprep.subr.mxu0 0.0
    %2406 = vmatpush1.msra.mxu0 0.0
    %2407 = vmatprep.subr.mxu0 0.0
    %2408 = vmatpush1.msra.mxu0 0.0
    %2409 = vmatprep.mubr.f32.mxu0 0.0
    %2410 = vmatmul.mubr.f32.gmra.mrb[0].mxu0 %v2340
    %v2411 = vpop.f32.mrb[0].mxu0
    %v2412 = vadd.f32 0.0, %v2411
    %v2413 = vpop.f32.mrb[0].mxu0
    %2414 = vmatprep.mubr.f32.mxu0 0.0
    %2415 = vmatmul.mubr.f32.gmra.mrb[0].mxu0 %v2343
    %v2416 = vpop.f32.mrb[0].mxu0
    %v2417 = vadd.f32 0.0, %v2416
    %v2418 = vpop.f32.mrb[0].mxu0
    %2419 = vdwg.mxu0
    %v2420 = vadd.f32 %v2209, %v2412
    %v2421 = vadd.f32 %v2210, %v2417
    %v2422 = vlaneseq
    %v2423 = vshrl.u32 %v2422, 7
    %v2424 = vsub.s32 5, %v2423
    %v2425 = vrot.slane %v160, %v2424
    %v2426 = vadd.f32 %v2420, %v2425
    %v2427 = vadd.f32 %v2421, %v2425
    %s2428 = scalar_lea.vmem %s3, 32
    %v2429 = vld [vmem:[%s2428] sm:$0xff]
    %v2430 = vld [vmem:[%s2428 + $0x8] sm:$0xff]
    %v2431 = vld [vmem:[%s2428 + $0x10] sm:$0xff]
    %v2432 = vld [vmem:[%s2428 + $0x18] sm:$0xff]
    %s2433 = scalar_lea.vmem %s4, 1
    %v2434 = vld [vmem:[%s2433] sm:$0x1]
    %s2435 = scalar_lea.vmem %s5, 32
    %v2436 = vld [vmem:[%s2435] sm:$0xff]
    %v2437 = vld [vmem:[%s2435 + $0x8] sm:$0xff]
    %v2438 = vld [vmem:[%s2435 + $0x10] sm:$0xff]
    %v2439 = vld [vmem:[%s2435 + $0x18] sm:$0xff]
    %s2440 = scalar_lea.vmem %s6, 32
    %v2441 = vld [vmem:[%s2440] sm:$0xff]
    %v2442 = vld [vmem:[%s2440 + $0x8] sm:$0xff]
    %v2443 = vld [vmem:[%s2440 + $0x10] sm:$0xff]
    %v2444 = vld [vmem:[%s2440 + $0x18] sm:$0xff]
    %s2445 = scalar_lea.vmem %s7, 64
    %v2446 = vld [vmem:[%s2445] sm:$0xff]
    %v2447 = vld [vmem:[%s2445 + $0x8] sm:$0xff]
    %v2448 = vld [vmem:[%s2445 + $0x10] sm:$0xff]
    %v2449 = vld [vmem:[%s2445 + $0x18] sm:$0xff]
    %v2450 = vld [vmem:[%s2445 + $0x20] sm:$0xff]
    %v2451 = vld [vmem:[%s2445 + $0x28] sm:$0xff]
    %v2452 = vld [vmem:[%s2445 + $0x30] sm:$0xff]
    %v2453 = vld [vmem:[%s2445 + $0x38] sm:$0xff]
    %s2454 = scalar_lea.vmem %s8, 1
    %v2455 = vld [vmem:[%s2454] sm:$0x1]
    %s2456 = scalar_lea.vmem %s9, 8
    %v2457 = vld [vmem:[%s2456] sm:$0x3f]
    %v2458 = vsel %vm161, %v2426, 0.0
    %2459 = vadd.xlane.f32.xlu0 %v2458
    %v2460 = vpop.xlane.xlu0 %2459
    %v2461 = vsel %vm161, %v2427, 0.0
    %2462 = vadd.xlane.f32.xlu0 %v2461
    %v2463 = vpop.xlane.xlu0 %2462
    %v2464 = vmul.f32 %v2460, %v168
    %v2465 = vmul.f32 %v2463, %v168
    %v2466 = vsub.f32 %v2426, %v2464
    %v2467 = vsub.f32 %v2427, %v2465
    %v2468 = vmul.f32 %v2466, %v2466
    %v2469 = vmul.f32 %v2467, %v2467
    %v2470 = vsel %vm161, %v2468, 0.0
    %2471 = vadd.xlane.f32.xlu0 %v2470
    %v2472 = vpop.xlane.xlu0 %2471
    %v2473 = vsel %vm161, %v2469, 0.0
    %2474 = vadd.xlane.f32.xlu0 %v2473
    %v2475 = vpop.xlane.xlu0 %2474
    %v2476 = vmul.f32 %v2472, %v168
    %v2477 = vmul.f32 %v2475, %v168
    %v2478 = vadd.f32 %v2476, 1e-05
    %v2479 = vadd.f32 %v2477, 1e-05
    %v2480 = vrsqrt.pop %v2478
    %v2481 = vrsqrt.pop %v2479
    %v2482 = vmul.f32 %v2466, %v2480
    %v2483 = vmul.f32 %v2467, %v2481
    %v2484 = vlaneseq
    %v2485 = vshrl.u32 %v2484, 7
    %v2486 = vsub.s32 0, %v2485
    %v2487 = vrot.slane %v2457, %v2486
    %v2488 = vmul.f32 %v2482, %v2487
    %v2489 = vmul.f32 %v2483, %v2487
    %v2490 = vlaneseq
    %v2491 = vshrl.u32 %v2490, 7
    %v2492 = vsub.s32 1, %v2491
    %v2493 = vrot.slane %v2457, %v2492
    %v2494 = vadd.f32 %v2488, %v2493
    %v2495 = vadd.f32 %v2489, %v2493
    %v2497 = vlaneseq
    %v2498 = vshrl.u32 %v2497, 7
    %v2499 = vsub.s32 0, %v2498
    %v2500 = vrot.slane %v2434, %v2499
    %v2503 = vsel %vm161, %v2494, 0
    %v2506 = vsel %vm161, %v2495, 0
    %2508 = vmatprep.subr.mxu0 0.0
    %2509 = vmatpush1.msra.mxu0 %v2429
    %2510 = vmatprep.subr.mxu0 0.0
    %2511 = vmatpush1.msra.mxu0 %v2430
    %2512 = vmatprep.subr.mxu0 0.0
    %2513 = vmatpush1.msra.mxu0 %v2431
    %2514 = vmatprep.subr.mxu0 0.0
    %2515 = vmatpush1.msra.mxu0 %v2432
    %2516 = vmatprep.subr.mxu0 0.0
    %2517 = vmatpush1.msra.mxu0 0.0
    %2518 = vmatprep.subr.mxu0 0.0
    %2519 = vmatpush1.msra.mxu0 0.0
    %2520 = vmatprep.subr.mxu0 0.0
    %2521 = vmatpush1.msra.mxu0 0.0
    %2522 = vmatprep.subr.mxu0 0.0
    %2523 = vmatpush1.msra.mxu0 0.0
    %2524 = vmatprep.subr.mxu0 0.0
    %2525 = vmatpush1.msra.mxu0 0.0
    %2526 = vmatprep.subr.mxu0 0.0
    %2527 = vmatpush1.msra.mxu0 0.0
    %2528 = vmatprep.subr.mxu0 0.0
    %2529 = vmatpush1.msra.mxu0 0.0
    %2530 = vmatprep.subr.mxu0 0.0
    %2531 = vmatpush1.msra.mxu0 0.0
    %2532 = vmatprep.subr.mxu0 0.0
    %2533 = vmatpush1.msra.mxu0 0.0
    %2534 = vmatprep.subr.mxu0 0.0
    %2535 = vmatpush1.msra.mxu0 0.0
    %2536 = vmatprep.subr.mxu0 0.0
    %2537 = vmatpush1.msra.mxu0 0.0
    %2538 = vmatprep.subr.mxu0 0.0
    %2539 = vmatpush1.msra.mxu0 0.0
    %2540 = vmatprep.subr.mxu0 0.0
    %2541 = vmatpush1.msra.mxu0 0.0
    %2542 = vmatprep.subr.mxu0 0.0
    %2543 = vmatpush1.msra.mxu0 0.0
    %2544 = vmatprep.subr.mxu0 0.0
    %2545 = vmatpush1.msra.mxu0 0.0
    %2546 = vmatprep.subr.mxu0 0.0
    %2547 = vmatpush1.msra.mxu0 0.0
    %2548 = vmatprep.subr.mxu0 0.0
    %2549 = vmatpush1.msra.mxu0 0.0
    %2550 = vmatprep.subr.mxu0 0.0
    %2551 = vmatpush1.msra.mxu0 0.0
    %2552 = vmatprep.subr.mxu0 0.0
    %2553 = vmatpush1.msra.mxu0 0.0
    %2554 = vmatprep.subr.mxu0 0.0
    %2555 = vmatpush1.msra.mxu0 0.0
    %2556 = vmatprep.subr.mxu0 0.0
    %2557 = vmatpush1.msra.mxu0 0.0
    %2558 = vmatprep.subr.mxu0 0.0
    %2559 = vmatpush1.msra.mxu0 0.0
    %2560 = vmatprep.subr.mxu0 0.0
    %2561 = vmatpush1.msra.mxu0 0.0
    %2562 = vmatprep.subr.mxu0 0.0
    %2563 = vmatpush1.msra.mxu0 0.0
    %2564 = vmatprep.subr.mxu0 0.0
    %2565 = vmatpush1.msra.mxu0 0.0
    %2566 = vmatprep.subr.mxu0 0.0
    %2567 = vmatpush1.msra.mxu0 0.0
    %2568 = vmatprep.subr.mxu0 0.0
    %2569 = vmatpush1.msra.mxu0 0.0
    %2570 = vmatprep.subr.mxu0 0.0
    %2571 = vmatpush1.msra.mxu0 0.0
    %2572 = vmatprep.mubr.f32.mxu0 0.0
    %2573 = vmatmul.mubr.f32.gmra.mrb[0].mxu0 %v2503
    %v2574 = vpop.f32.mrb[0].mxu0
    %v2575 = vadd.f32 %v2500, %v2574
    %v2576 = vpop.f32.mrb[0].mxu0
    %2577 = vmatprep.mubr.f32.mxu0 0.0
    %2578 = vmatmul.mubr.f32.gmra.mrb[0].mxu0 %v2506
    %v2579 = vpop.f32.mrb[0].mxu0
    %v2580 = vadd.f32 %v2500, %v2579
    %v2581 = vpop.f32.mrb[0].mxu0
    %2582 = vdwg.mxu0
    %2584 = vrot.lane.b32.xlu0 %v2575, 96
    %v2585 = vpop.permute.xlu0 %2584
    %v2586 = vsel %vm295, %v2575, 0
    %v2588 = vsel %vm295, %v2585, 0
    %2590 = vmatprep.subr.mxu0 0.0
    %2591 = vmatpush1.xpose.msra.mxu0 %v2588
    %2592 = vmatprep.subr.mxu0 0.0
    %2593 = vmatpush1.xpose.msra.mxu0 0.0
    %2594 = vmatprep.subr.mxu0 0.0
    %2595 = vmatpush1.xpose.msra.mxu0 0.0
    %2596 = vmatprep.subr.mxu0 0.0
    %2597 = vmatpush1.xpose.msra.mxu0 0.0
    %2598 = vmatprep.subr.mxu0 0.0
    %2599 = vmatpush1.xpose.msra.mxu0 0.0
    %2600 = vmatprep.subr.mxu0 0.0
    %2601 = vmatpush1.xpose.msra.mxu0 0.0
    %2602 = vmatprep.subr.mxu0 0.0
    %2603 = vmatpush1.xpose.msra.mxu0 0.0
    %2604 = vmatprep.subr.mxu0 0.0
    %2605 = vmatpush1.xpose.msra.mxu0 0.0
    %2606 = vmatprep.subr.mxu0 0.0
    %2607 = vmatpush1.xpose.msra.mxu0 0.0
    %2608 = vmatprep.subr.mxu0 0.0
    %2609 = vmatpush1.xpose.msra.mxu0 0.0
    %2610 = vmatprep.subr.mxu0 0.0
    %2611 = vmatpush1.xpose.msra.mxu0 0.0
    %2612 = vmatprep.subr.mxu0 0.0
    %2613 = vmatpush1.xpose.msra.mxu0 0.0
    %2614 = vmatprep.subr.mxu0 0.0
    %2615 = vmatpush1.xpose.msra.mxu0 0.0
    %2616 = vmatprep.subr.mxu0 0.0
    %2617 = vmatpush1.xpose.msra.mxu0 0.0
    %2618 = vmatprep.subr.mxu0 0.0
    %2619 = vmatpush1.xpose.msra.mxu0 0.0
    %2620 = vmatprep.subr.mxu0 0.0
    %2621 = vmatpush1.xpose.msra.mxu0 0.0
    %2622 = vmatprep.subr.mxu0 0.0
    %2623 = vmatpush1.xpose.msra.mxu0 0.0
    %2624 = vmatprep.subr.mxu0 0.0
    %2625 = vmatpush1.xpose.msra.mxu0 0.0
    %2626 = vmatprep.subr.mxu0 0.0
    %2627 = vmatpush1.xpose.msra.mxu0 0.0
    %2628 = vmatprep.subr.mxu0 0.0
    %2629 = vmatpush1.xpose.msra.mxu0 0.0
    %2630 = vmatprep.subr.mxu0 0.0
    %2631 = vmatpush1.xpose.msra.mxu0 0.0
    %2632 = vmatprep.subr.mxu0 0.0
    %2633 = vmatpush1.xpose.msra.mxu0 0.0
    %2634 = vmatprep.subr.mxu0 0.0
    %2635 = vmatpush1.xpose.msra.mxu0 0.0
    %2636 = vmatprep.subr.mxu0 0.0
    %2637 = vmatpush1.xpose.msra.mxu0 0.0
    %2638 = vmatprep.subr.mxu0 0.0
    %2639 = vmatpush1.xpose.msra.mxu0 0.0
    %2640 = vmatprep.subr.mxu0 0.0
    %2641 = vmatpush1.xpose.msra.mxu0 0.0
    %2642 = vmatprep.subr.mxu0 0.0
    %2643 = vmatpush1.xpose.msra.mxu0 0.0
    %2644 = vmatprep.subr.mxu0 0.0
    %2645 = vmatpush1.xpose.msra.mxu0 0.0
    %2646 = vmatprep.subr.mxu0 0.0
    %2647 = vmatpush1.xpose.msra.mxu0 0.0
    %2648 = vmatprep.subr.mxu0 0.0
    %2649 = vmatpush1.xpose.msra.mxu0 0.0
    %2650 = vmatprep.subr.mxu0 0.0
    %2651 = vmatpush1.xpose.msra.mxu0 0.0
    %2652 = vmatprep.subr.mxu0 0.0
    %2653 = vmatpush1.xpose.msra.mxu0 0.0
    %2654 = vmatprep.mubr.f32.mxu0 0.0
    %2655 = vmatmul.mubr.f32.gmra.mrb[0].mxu0 %v2586
    %v2656 = vpop.f32.mrb[0].mxu0
    %v2657 = vadd.f32 %v291, %v2656
    %v2658 = vpop.f32.mrb[0].mxu0
    %2659 = vdwg.mxu0
    %v2660 = vsel %vm295, %v2657, -inf
    %2661 = vmax.xlane.f32.xlu0 %v2660
    %v2662 = vpop.xlane.xlu0 %2661
    %v2663 = vsub.f32 %v2657, %v2662
    %v2664 = vmul.f32 %v2663, 1.442695
    %v2665 = vpow.pop %v2664
    %v2666 = vsel %vm295, %v2665, 0.0
    %2667 = vadd.xlane.f32.xlu0 %v2666
    %v2668 = vpop.xlane.xlu0 %2667
    %v2669 = vrcp.pop %v2668
    %v2670 = vmul.f32 %v2665, %v2669
    %2671 = vrot.lane.b32.xlu0 %v2575, 64
    %v2672 = vpop.permute.xlu0 %2671
    %v2675 = vsel %vm295, %v2670, 0
    %2677 = vmatprep.subr.mxu0 0.0
    %2678 = vmatpush1.msra.mxu0 %v2672
    %2679 = vmatprep.subr.mxu0 0.0
    %2680 = vmatpush1.msra.mxu0 0.0
    %2681 = vmatprep.subr.mxu0 0.0
    %2682 = vmatpush1.msra.mxu0 0.0
    %2683 = vmatprep.subr.mxu0 0.0
    %2684 = vmatpush1.msra.mxu0 0.0
    %2685 = vmatprep.subr.mxu0 0.0
    %2686 = vmatpush1.msra.mxu0 0.0
    %2687 = vmatprep.subr.mxu0 0.0
    %2688 = vmatpush1.msra.mxu0 0.0
    %2689 = vmatprep.subr.mxu0 0.0
    %2690 = vmatpush1.msra.mxu0 0.0
    %2691 = vmatprep.subr.mxu0 0.0
    %2692 = vmatpush1.msra.mxu0 0.0
    %2693 = vmatprep.subr.mxu0 0.0
    %2694 = vmatpush1.msra.mxu0 0.0
    %2695 = vmatprep.subr.mxu0 0.0
    %2696 = vmatpush1.msra.mxu0 0.0
    %2697 = vmatprep.subr.mxu0 0.0
    %2698 = vmatpush1.msra.mxu0 0.0
    %2699 = vmatprep.subr.mxu0 0.0
    %2700 = vmatpush1.msra.mxu0 0.0
    %2701 = vmatprep.subr.mxu0 0.0
    %2702 = vmatpush1.msra.mxu0 0.0
    %2703 = vmatprep.subr.mxu0 0.0
    %2704 = vmatpush1.msra.mxu0 0.0
    %2705 = vmatprep.subr.mxu0 0.0
    %2706 = vmatpush1.msra.mxu0 0.0
    %2707 = vmatprep.subr.mxu0 0.0
    %2708 = vmatpush1.msra.mxu0 0.0
    %2709 = vmatprep.subr.mxu0 0.0
    %2710 = vmatpush1.msra.mxu0 0.0
    %2711 = vmatprep.subr.mxu0 0.0
    %2712 = vmatpush1.msra.mxu0 0.0
    %2713 = vmatprep.subr.mxu0 0.0
    %2714 = vmatpush1.msra.mxu0 0.0
    %2715 = vmatprep.subr.mxu0 0.0
    %2716 = vmatpush1.msra.mxu0 0.0
    %2717 = vmatprep.subr.mxu0 0.0
    %2718 = vmatpush1.msra.mxu0 0.0
    %2719 = vmatprep.subr.mxu0 0.0
    %2720 = vmatpush1.msra.mxu0 0.0
    %2721 = vmatprep.subr.mxu0 0.0
    %2722 = vmatpush1.msra.mxu0 0.0
    %2723 = vmatprep.subr.mxu0 0.0
    %2724 = vmatpush1.msra.mxu0 0.0
    %2725 = vmatprep.subr.mxu0 0.0
    %2726 = vmatpush1.msra.mxu0 0.0
    %2727 = vmatprep.subr.mxu0 0.0
    %2728 = vmatpush1.msra.mxu0 0.0
    %2729 = vmatprep.subr.mxu0 0.0
    %2730 = vmatpush1.msra.mxu0 0.0
    %2731 = vmatprep.subr.mxu0 0.0
    %2732 = vmatpush1.msra.mxu0 0.0
    %2733 = vmatprep.subr.mxu0 0.0
    %2734 = vmatpush1.msra.mxu0 0.0
    %2735 = vmatprep.subr.mxu0 0.0
    %2736 = vmatpush1.msra.mxu0 0.0
    %2737 = vmatprep.subr.mxu0 0.0
    %2738 = vmatpush1.msra.mxu0 0.0
    %2739 = vmatprep.subr.mxu0 0.0
    %2740 = vmatpush1.msra.mxu0 0.0
    %2741 = vmatprep.mubr.f32.mxu0 0.0
    %2742 = vmatmul.mubr.f32.gmra.mrb[0].mxu0 %v2675
    %v2743 = vpop.f32.mrb[0].mxu0
    %v2744 = vadd.f32 0.0, %v2743
    %v2745 = vpop.f32.mrb[0].mxu0
    %2746 = vdwg.mxu0
    %2747 = vrot.lane.b32.xlu0 %v2575, 120
    %v2748 = vpop.permute.xlu0 %2747
    %2749 = vrot.lane.b32.xlu0 %v2575, 88
    %v2750 = vpop.permute.xlu0 %2749
    %v2751 = vsel %vm295, %v2748, 0
    %v2753 = vsel %vm295, %v2750, 0
    %2755 = vmatprep.subr.mxu0 0.0
    %2756 = vmatpush1.xpose.msra.mxu0 %v2753
    %2757 = vmatprep.subr.mxu0 0.0
    %2758 = vmatpush1.xpose.msra.mxu0 0.0
    %2759 = vmatprep.subr.mxu0 0.0
    %2760 = vmatpush1.xpose.msra.mxu0 0.0
    %2761 = vmatprep.subr.mxu0 0.0
    %2762 = vmatpush1.xpose.msra.mxu0 0.0
    %2763 = vmatprep.subr.mxu0 0.0
    %2764 = vmatpush1.xpose.msra.mxu0 0.0
    %2765 = vmatprep.subr.mxu0 0.0
    %2766 = vmatpush1.xpose.msra.mxu0 0.0
    %2767 = vmatprep.subr.mxu0 0.0
    %2768 = vmatpush1.xpose.msra.mxu0 0.0
    %2769 = vmatprep.subr.mxu0 0.0
    %2770 = vmatpush1.xpose.msra.mxu0 0.0
    %2771 = vmatprep.subr.mxu0 0.0
    %2772 = vmatpush1.xpose.msra.mxu0 0.0
    %2773 = vmatprep.subr.mxu0 0.0
    %2774 = vmatpush1.xpose.msra.mxu0 0.0
    %2775 = vmatprep.subr.mxu0 0.0
    %2776 = vmatpush1.xpose.msra.mxu0 0.0
    %2777 = vmatprep.subr.mxu0 0.0
    %2778 = vmatpush1.xpose.msra.mxu0 0.0
    %2779 = vmatprep.subr.mxu0 0.0
    %2780 = vmatpush1.xpose.msra.mxu0 0.0
    %2781 = vmatprep.subr.mxu0 0.0
    %2782 = vmatpush1.xpose.msra.mxu0 0.0
    %2783 = vmatprep.subr.mxu0 0.0
    %2784 = vmatpush1.xpose.msra.mxu0 0.0
    %2785 = vmatprep.subr.mxu0 0.0
    %2786 = vmatpush1.xpose.msra.mxu0 0.0
    %2787 = vmatprep.subr.mxu0 0.0
    %2788 = vmatpush1.xpose.msra.mxu0 0.0
    %2789 = vmatprep.subr.mxu0 0.0
    %2790 = vmatpush1.xpose.msra.mxu0 0.0
    %2791 = vmatprep.subr.mxu0 0.0
    %2792 = vmatpush1.xpose.msra.mxu0 0.0
    %2793 = vmatprep.subr.mxu0 0.0
    %2794 = vmatpush1.xpose.msra.mxu0 0.0
    %2795 = vmatprep.subr.mxu0 0.0
    %2796 = vmatpush1.xpose.msra.mxu0 0.0
    %2797 = vmatprep.subr.mxu0 0.0
    %2798 = vmatpush1.xpose.msra.mxu0 0.0
    %2799 = vmatprep.subr.mxu0 0.0
    %2800 = vmatpush1.xpose.msra.mxu0 0.0
    %2801 = vmatprep.subr.mxu0 0.0
    %2802 = vmatpush1.xpose.msra.mxu0 0.0
    %2803 = vmatprep.subr.mxu0 0.0
    %2804 = vmatpush1.xpose.msra.mxu0 0.0
    %2805 = vmatprep.subr.mxu0 0.0
    %2806 = vmatpush1.xpose.msra.mxu0 0.0
    %2807 = vmatprep.subr.mxu0 0.0
    %2808 = vmatpush1.xpose.msra.mxu0 0.0
    %2809 = vmatprep.subr.mxu0 0.0
    %2810 = vmatpush1.xpose.msra.mxu0 0.0
    %2811 = vmatprep.subr.mxu0 0.0
    %2812 = vmatpush1.xpose.msra.mxu0 0.0
    %2813 = vmatprep.subr.mxu0 0.0
    %2814 = vmatpush1.xpose.msra.mxu0 0.0
    %2815 = vmatprep.subr.mxu0 0.0
    %2816 = vmatpush1.xpose.msra.mxu0 0.0
    %2817 = vmatprep.subr.mxu0 0.0
    %2818 = vmatpush1.xpose.msra.mxu0 0.0
    %2819 = vmatprep.mubr.f32.mxu0 0.0
    %2820 = vmatmul.mubr.f32.gmra.mrb[0].mxu0 %v2751
    %v2821 = vpop.f32.mrb[0].mxu0
    %v2822 = vadd.f32 %v291, %v2821
    %v2823 = vpop.f32.mrb[0].mxu0
    %2824 = vdwg.mxu0
    %v2825 = vsel %vm295, %v2822, -inf
    %2826 = vmax.xlane.f32.xlu0 %v2825
    %v2827 = vpop.xlane.xlu0 %2826
    %v2828 = vsub.f32 %v2822, %v2827
    %v2829 = vmul.f32 %v2828, 1.442695
    %v2830 = vpow.pop %v2829
    %v2831 = vsel %vm295, %v2830, 0.0
    %2832 = vadd.xlane.f32.xlu0 %v2831
    %v2833 = vpop.xlane.xlu0 %2832
    %v2834 = vrcp.pop %v2833
    %v2835 = vmul.f32 %v2830, %v2834
    %2836 = vrot.lane.b32.xlu0 %v2575, 56
    %v2837 = vpop.permute.xlu0 %2836
    %v2840 = vsel %vm295, %v2835, 0
    %2842 = vmatprep.subr.mxu0 0.0
    %2843 = vmatpush1.msra.mxu0 %v2837
    %2844 = vmatprep.subr.mxu0 0.0
    %2845 = vmatpush1.msra.mxu0 0.0
    %2846 = vmatprep.subr.mxu0 0.0
    %2847 = vmatpush1.msra.mxu0 0.0
    %2848 = vmatprep.subr.mxu0 0.0
    %2849 = vmatpush1.msra.mxu0 0.0
    %2850 = vmatprep.subr.mxu0 0.0
    %2851 = vmatpush1.msra.mxu0 0.0
    %2852 = vmatprep.subr.mxu0 0.0
    %2853 = vmatpush1.msra.mxu0 0.0
    %2854 = vmatprep.subr.mxu0 0.0
    %2855 = vmatpush1.msra.mxu0 0.0
    %2856 = vmatprep.subr.mxu0 0.0
    %2857 = vmatpush1.msra.mxu0 0.0
    %2858 = vmatprep.subr.mxu0 0.0
    %2859 = vmatpush1.msra.mxu0 0.0
    %2860 = vmatprep.subr.mxu0 0.0
    %2861 = vmatpush1.msra.mxu0 0.0
    %2862 = vmatprep.subr.mxu0 0.0
    %2863 = vmatpush1.msra.mxu0 0.0
    %2864 = vmatprep.subr.mxu0 0.0
    %2865 = vmatpush1.msra.mxu0 0.0
    %2866 = vmatprep.subr.mxu0 0.0
    %2867 = vmatpush1.msra.mxu0 0.0
    %2868 = vmatprep.subr.mxu0 0.0
    %2869 = vmatpush1.msra.mxu0 0.0
    %2870 = vmatprep.subr.mxu0 0.0
    %2871 = vmatpush1.msra.mxu0 0.0
    %2872 = vmatprep.subr.mxu0 0.0
    %2873 = vmatpush1.msra.mxu0 0.0
    %2874 = vmatprep.subr.mxu0 0.0
    %2875 = vmatpush1.msra.mxu0 0.0
    %2876 = vmatprep.subr.mxu0 0.0
    %2877 = vmatpush1.msra.mxu0 0.0
    %2878 = vmatprep.subr.mxu0 0.0
    %2879 = vmatpush1.msra.mxu0 0.0
    %2880 = vmatprep.subr.mxu0 0.0
    %2881 = vmatpush1.msra.mxu0 0.0
    %2882 = vmatprep.subr.mxu0 0.0
    %2883 = vmatpush1.msra.mxu0 0.0
    %2884 = vmatprep.subr.mxu0 0.0
    %2885 = vmatpush1.msra.mxu0 0.0
    %2886 = vmatprep.subr.mxu0 0.0
    %2887 = vmatpush1.msra.mxu0 0.0
    %2888 = vmatprep.subr.mxu0 0.0
    %2889 = vmatpush1.msra.mxu0 0.0
    %2890 = vmatprep.subr.mxu0 0.0
    %2891 = vmatpush1.msra.mxu0 0.0
    %2892 = vmatprep.subr.mxu0 0.0
    %2893 = vmatpush1.msra.mxu0 0.0
    %2894 = vmatprep.subr.mxu0 0.0
    %2895 = vmatpush1.msra.mxu0 0.0
    %2896 = vmatprep.subr.mxu0 0.0
    %2897 = vmatpush1.msra.mxu0 0.0
    %2898 = vmatprep.subr.mxu0 0.0
    %2899 = vmatpush1.msra.mxu0 0.0
    %2900 = vmatprep.subr.mxu0 0.0
    %2901 = vmatpush1.msra.mxu0 0.0
    %2902 = vmatprep.subr.mxu0 0.0
    %2903 = vmatpush1.msra.mxu0 0.0
    %2904 = vmatprep.subr.mxu0 0.0
    %2905 = vmatpush1.msra.mxu0 0.0
    %2906 = vmatprep.mubr.f32.mxu0 0.0
    %2907 = vmatmul.mubr.f32.gmra.mrb[0].mxu0 %v2840
    %v2908 = vpop.f32.mrb[0].mxu0
    %v2909 = vadd.f32 0.0, %v2908
    %v2910 = vpop.f32.mrb[0].mxu0
    %2911 = vdwg.mxu0
    %v2913 = vsel %vm295, %v2909, 0
    %2915 = vmatprep.subr.mxu0 0.0
    %2916 = vmatpush1.msra.mxu0 %v2437
    %2917 = vmatprep.subr.mxu0 0.0
    %2918 = vmatpush1.msra.mxu0 0.0
    %2919 = vmatprep.subr.mxu0 0.0
    %2920 = vmatpush1.msra.mxu0 0.0
    %2921 = vmatprep.subr.mxu0 0.0
    %2922 = vmatpush1.msra.mxu0 0.0
    %2923 = vmatprep.subr.mxu0 0.0
    %2924 = vmatpush1.msra.mxu0 0.0
    %2925 = vmatprep.subr.mxu0 0.0
    %2926 = vmatpush1.msra.mxu0 0.0
    %2927 = vmatprep.subr.mxu0 0.0
    %2928 = vmatpush1.msra.mxu0 0.0
    %2929 = vmatprep.subr.mxu0 0.0
    %2930 = vmatpush1.msra.mxu0 0.0
    %2931 = vmatprep.subr.mxu0 0.0
    %2932 = vmatpush1.msra.mxu0 0.0
    %2933 = vmatprep.subr.mxu0 0.0
    %2934 = vmatpush1.msra.mxu0 0.0
    %2935 = vmatprep.subr.mxu0 0.0
    %2936 = vmatpush1.msra.mxu0 0.0
    %2937 = vmatprep.subr.mxu0 0.0
    %2938 = vmatpush1.msra.mxu0 0.0
    %2939 = vmatprep.subr.mxu0 0.0
    %2940 = vmatpush1.msra.mxu0 0.0
    %2941 = vmatprep.subr.mxu0 0.0
    %2942 = vmatpush1.msra.mxu0 0.0
    %2943 = vmatprep.subr.mxu0 0.0
    %2944 = vmatpush1.msra.mxu0 0.0
    %2945 = vmatprep.subr.mxu0 0.0
    %2946 = vmatpush1.msra.mxu0 0.0
    %2947 = vmatprep.subr.mxu0 0.0
    %2948 = vmatpush1.msra.mxu0 0.0
    %2949 = vmatprep.subr.mxu0 0.0
    %2950 = vmatpush1.msra.mxu0 0.0
    %2951 = vmatprep.subr.mxu0 0.0
    %2952 = vmatpush1.msra.mxu0 0.0
    %2953 = vmatprep.subr.mxu0 0.0
    %2954 = vmatpush1.msra.mxu0 0.0
    %2955 = vmatprep.subr.mxu0 0.0
    %2956 = vmatpush1.msra.mxu0 0.0
    %2957 = vmatprep.subr.mxu0 0.0
    %2958 = vmatpush1.msra.mxu0 0.0
    %2959 = vmatprep.subr.mxu0 0.0
    %2960 = vmatpush1.msra.mxu0 0.0
    %2961 = vmatprep.subr.mxu0 0.0
    %2962 = vmatpush1.msra.mxu0 0.0
    %2963 = vmatprep.subr.mxu0 0.0
    %2964 = vmatpush1.msra.mxu0 0.0
    %2965 = vmatprep.subr.mxu0 0.0
    %2966 = vmatpush1.msra.mxu0 0.0
    %2967 = vmatprep.subr.mxu0 0.0
    %2968 = vmatpush1.msra.mxu0 0.0
    %2969 = vmatprep.subr.mxu0 0.0
    %2970 = vmatpush1.msra.mxu0 0.0
    %2971 = vmatprep.subr.mxu0 0.0
    %2972 = vmatpush1.msra.mxu0 0.0
    %2973 = vmatprep.subr.mxu0 0.0
    %2974 = vmatpush1.msra.mxu0 0.0
    %2975 = vmatprep.subr.mxu0 0.0
    %2976 = vmatpush1.msra.mxu0 0.0
    %2977 = vmatprep.subr.mxu0 0.0
    %2978 = vmatpush1.msra.mxu0 0.0
    %2979 = vmatprep.mubr.f32.mxu0 0.0
    %2980 = vmatmul.mubr.f32.gmra.mrb[0].mxu0 %v2913
    %v2981 = vpop.f32.mrb[0].mxu0
    %v2982 = vadd.f32 0.0, %v2981
    %v2983 = vpop.f32.mrb[0].mxu0
    %2984 = vdwg.mxu0
    %v2986 = vsel %vm295, %v2744, 0
    %2988 = vmatprep.subr.mxu0 0.0
    %2989 = vmatpush1.msra.mxu0 %v2436
    %2990 = vmatprep.subr.mxu0 0.0
    %2991 = vmatpush1.msra.mxu0 0.0
    %2992 = vmatprep.subr.mxu0 0.0
    %2993 = vmatpush1.msra.mxu0 0.0
    %2994 = vmatprep.subr.mxu0 0.0
    %2995 = vmatpush1.msra.mxu0 0.0
    %2996 = vmatprep.subr.mxu0 0.0
    %2997 = vmatpush1.msra.mxu0 0.0
    %2998 = vmatprep.subr.mxu0 0.0
    %2999 = vmatpush1.msra.mxu0 0.0
    %3000 = vmatprep.subr.mxu0 0.0
    %3001 = vmatpush1.msra.mxu0 0.0
    %3002 = vmatprep.subr.mxu0 0.0
    %3003 = vmatpush1.msra.mxu0 0.0
    %3004 = vmatprep.subr.mxu0 0.0
    %3005 = vmatpush1.msra.mxu0 0.0
    %3006 = vmatprep.subr.mxu0 0.0
    %3007 = vmatpush1.msra.mxu0 0.0
    %3008 = vmatprep.subr.mxu0 0.0
    %3009 = vmatpush1.msra.mxu0 0.0
    %3010 = vmatprep.subr.mxu0 0.0
    %3011 = vmatpush1.msra.mxu0 0.0
    %3012 = vmatprep.subr.mxu0 0.0
    %3013 = vmatpush1.msra.mxu0 0.0
    %3014 = vmatprep.subr.mxu0 0.0
    %3015 = vmatpush1.msra.mxu0 0.0
    %3016 = vmatprep.subr.mxu0 0.0
    %3017 = vmatpush1.msra.mxu0 0.0
    %3018 = vmatprep.subr.mxu0 0.0
    %3019 = vmatpush1.msra.mxu0 0.0
    %3020 = vmatprep.subr.mxu0 0.0
    %3021 = vmatpush1.msra.mxu0 0.0
    %3022 = vmatprep.subr.mxu0 0.0
    %3023 = vmatpush1.msra.mxu0 0.0
    %3024 = vmatprep.subr.mxu0 0.0
    %3025 = vmatpush1.msra.mxu0 0.0
    %3026 = vmatprep.subr.mxu0 0.0
    %3027 = vmatpush1.msra.mxu0 0.0
    %3028 = vmatprep.subr.mxu0 0.0
    %3029 = vmatpush1.msra.mxu0 0.0
    %3030 = vmatprep.subr.mxu0 0.0
    %3031 = vmatpush1.msra.mxu0 0.0
    %3032 = vmatprep.subr.mxu0 0.0
    %3033 = vmatpush1.msra.mxu0 0.0
    %3034 = vmatprep.subr.mxu0 0.0
    %3035 = vmatpush1.msra.mxu0 0.0
    %3036 = vmatprep.subr.mxu0 0.0
    %3037 = vmatpush1.msra.mxu0 0.0
    %3038 = vmatprep.subr.mxu0 0.0
    %3039 = vmatpush1.msra.mxu0 0.0
    %3040 = vmatprep.subr.mxu0 0.0
    %3041 = vmatpush1.msra.mxu0 0.0
    %3042 = vmatprep.subr.mxu0 0.0
    %3043 = vmatpush1.msra.mxu0 0.0
    %3044 = vmatprep.subr.mxu0 0.0
    %3045 = vmatpush1.msra.mxu0 0.0
    %3046 = vmatprep.subr.mxu0 0.0
    %3047 = vmatpush1.msra.mxu0 0.0
    %3048 = vmatprep.subr.mxu0 0.0
    %3049 = vmatpush1.msra.mxu0 0.0
    %3050 = vmatprep.subr.mxu0 0.0
    %3051 = vmatpush1.msra.mxu0 0.0
    %3052 = vmatprep.mubr.f32.mxu0 0.0
    %3053 = vmatmul.mubr.f32.gmra.mrb[0].mxu0 %v2986
    %v3054 = vpop.f32.mrb[0].mxu0
    %v3055 = vadd.f32 %v2982, %v3054
    %v3056 = vpop.f32.mrb[0].mxu0
    %3057 = vdwg.mxu0
    %3058 = vrot.lane.b32.xlu0 %v2575, 112
    %v3059 = vpop.permute.xlu0 %3058
    %3060 = vrot.lane.b32.xlu0 %v2575, 80
    %v3061 = vpop.permute.xlu0 %3060
    %v3062 = vsel %vm295, %v3059, 0
    %v3064 = vsel %vm295, %v3061, 0
    %3066 = vmatprep.subr.mxu0 0.0
    %3067 = vmatpush1.xpose.msra.mxu0 %v3064
    %3068 = vmatprep.subr.mxu0 0.0
    %3069 = vmatpush1.xpose.msra.mxu0 0.0
    %3070 = vmatprep.subr.mxu0 0.0
    %3071 = vmatpush1.xpose.msra.mxu0 0.0
    %3072 = vmatprep.subr.mxu0 0.0
    %3073 = vmatpush1.xpose.msra.mxu0 0.0
    %3074 = vmatprep.subr.mxu0 0.0
    %3075 = vmatpush1.xpose.msra.mxu0 0.0
    %3076 = vmatprep.subr.mxu0 0.0
    %3077 = vmatpush1.xpose.msra.mxu0 0.0
    %3078 = vmatprep.subr.mxu0 0.0
    %3079 = vmatpush1.xpose.msra.mxu0 0.0
    %3080 = vmatprep.subr.mxu0 0.0
    %3081 = vmatpush1.xpose.msra.mxu0 0.0
    %3082 = vmatprep.subr.mxu0 0.0
    %3083 = vmatpush1.xpose.msra.mxu0 0.0
    %3084 = vmatprep.subr.mxu0 0.0
    %3085 = vmatpush1.xpose.msra.mxu0 0.0
    %3086 = vmatprep.subr.mxu0 0.0
    %3087 = vmatpush1.xpose.msra.mxu0 0.0
    %3088 = vmatprep.subr.mxu0 0.0
    %3089 = vmatpush1.xpose.msra.mxu0 0.0
    %3090 = vmatprep.subr.mxu0 0.0
    %3091 = vmatpush1.xpose.msra.mxu0 0.0
    %3092 = vmatprep.subr.mxu0 0.0
    %3093 = vmatpush1.xpose.msra.mxu0 0.0
    %3094 = vmatprep.subr.mxu0 0.0
    %3095 = vmatpush1.xpose.msra.mxu0 0.0
    %3096 = vmatprep.subr.mxu0 0.0
    %3097 = vmatpush1.xpose.msra.mxu0 0.0
    %3098 = vmatprep.subr.mxu0 0.0
    %3099 = vmatpush1.xpose.msra.mxu0 0.0
    %3100 = vmatprep.subr.mxu0 0.0
    %3101 = vmatpush1.xpose.msra.mxu0 0.0
    %3102 = vmatprep.subr.mxu0 0.0
    %3103 = vmatpush1.xpose.msra.mxu0 0.0
    %3104 = vmatprep.subr.mxu0 0.0
    %3105 = vmatpush1.xpose.msra.mxu0 0.0
    %3106 = vmatprep.subr.mxu0 0.0
    %3107 = vmatpush1.xpose.msra.mxu0 0.0
    %3108 = vmatprep.subr.mxu0 0.0
    %3109 = vmatpush1.xpose.msra.mxu0 0.0
    %3110 = vmatprep.subr.mxu0 0.0
    %3111 = vmatpush1.xpose.msra.mxu0 0.0
    %3112 = vmatprep.subr.mxu0 0.0
    %3113 = vmatpush1.xpose.msra.mxu0 0.0
    %3114 = vmatprep.subr.mxu0 0.0
    %3115 = vmatpush1.xpose.msra.mxu0 0.0
    %3116 = vmatprep.subr.mxu0 0.0
    %3117 = vmatpush1.xpose.msra.mxu0 0.0
    %3118 = vmatprep.subr.mxu0 0.0
    %3119 = vmatpush1.xpose.msra.mxu0 0.0
    %3120 = vmatprep.subr.mxu0 0.0
    %3121 = vmatpush1.xpose.msra.mxu0 0.0
    %3122 = vmatprep.subr.mxu0 0.0
    %3123 = vmatpush1.xpose.msra.mxu0 0.0
    %3124 = vmatprep.subr.mxu0 0.0
    %3125 = vmatpush1.xpose.msra.mxu0 0.0
    %3126 = vmatprep.subr.mxu0 0.0
    %3127 = vmatpush1.xpose.msra.mxu0 0.0
    %3128 = vmatprep.subr.mxu0 0.0
    %3129 = vmatpush1.xpose.msra.mxu0 0.0
    %3130 = vmatprep.mubr.f32.mxu0 0.0
    %3131 = vmatmul.mubr.f32.gmra.mrb[0].mxu0 %v3062
    %v3132 = vpop.f32.mrb[0].mxu0
    %v3133 = vadd.f32 %v291, %v3132
    %v3134 = vpop.f32.mrb[0].mxu0
    %3135 = vdwg.mxu0
    %v3136 = vsel %vm295, %v3133, -inf
    %3137 = vmax.xlane.f32.xlu0 %v3136
    %v3138 = vpop.xlane.xlu0 %3137
    %v3139 = vsub.f32 %v3133, %v3138
    %v3140 = vmul.f32 %v3139, 1.442695
    %v3141 = vpow.pop %v3140
    %v3142 = vsel %vm295, %v3141, 0.0
    %3143 = vadd.xlane.f32.xlu0 %v3142
    %v3144 = vpop.xlane.xlu0 %3143
    %v3145 = vrcp.pop %v3144
    %v3146 = vmul.f32 %v3141, %v3145
    %3147 = vrot.lane.b32.xlu0 %v2575, 48
    %v3148 = vpop.permute.xlu0 %3147
    %v3151 = vsel %vm295, %v3146, 0
    %3153 = vmatprep.subr.mxu0 0.0
    %3154 = vmatpush1.msra.mxu0 %v3148
    %3155 = vmatprep.subr.mxu0 0.0
    %3156 = vmatpush1.msra.mxu0 0.0
    %3157 = vmatprep.subr.mxu0 0.0
    %3158 = vmatpush1.msra.mxu0 0.0
    %3159 = vmatprep.subr.mxu0 0.0
    %3160 = vmatpush1.msra.mxu0 0.0
    %3161 = vmatprep.subr.mxu0 0.0
    %3162 = vmatpush1.msra.mxu0 0.0
    %3163 = vmatprep.subr.mxu0 0.0
    %3164 = vmatpush1.msra.mxu0 0.0
    %3165 = vmatprep.subr.mxu0 0.0
    %3166 = vmatpush1.msra.mxu0 0.0
    %3167 = vmatprep.subr.mxu0 0.0
    %3168 = vmatpush1.msra.mxu0 0.0
    %3169 = vmatprep.subr.mxu0 0.0
    %3170 = vmatpush1.msra.mxu0 0.0
    %3171 = vmatprep.subr.mxu0 0.0
    %3172 = vmatpush1.msra.mxu0 0.0
    %3173 = vmatprep.subr.mxu0 0.0
    %3174 = vmatpush1.msra.mxu0 0.0
    %3175 = vmatprep.subr.mxu0 0.0
    %3176 = vmatpush1.msra.mxu0 0.0
    %3177 = vmatprep.subr.mxu0 0.0
    %3178 = vmatpush1.msra.mxu0 0.0
    %3179 = vmatprep.subr.mxu0 0.0
    %3180 = vmatpush1.msra.mxu0 0.0
    %3181 = vmatprep.subr.mxu0 0.0
    %3182 = vmatpush1.msra.mxu0 0.0
    %3183 = vmatprep.subr.mxu0 0.0
    %3184 = vmatpush1.msra.mxu0 0.0
    %3185 = vmatprep.subr.mxu0 0.0
    %3186 = vmatpush1.msra.mxu0 0.0
    %3187 = vmatprep.subr.mxu0 0.0
    %3188 = vmatpush1.msra.mxu0 0.0
    %3189 = vmatprep.subr.mxu0 0.0
    %3190 = vmatpush1.msra.mxu0 0.0
    %3191 = vmatprep.subr.mxu0 0.0
    %3192 = vmatpush1.msra.mxu0 0.0
    %3193 = vmatprep.subr.mxu0 0.0
    %3194 = vmatpush1.msra.mxu0 0.0
    %3195 = vmatprep.subr.mxu0 0.0
    %3196 = vmatpush1.msra.mxu0 0.0
    %3197 = vmatprep.subr.mxu0 0.0
    %3198 = vmatpush1.msra.mxu0 0.0
    %3199 = vmatprep.subr.mxu0 0.0
    %3200 = vmatpush1.msra.mxu0 0.0
    %3201 = vmatprep.subr.mxu0 0.0
    %3202 = vmatpush1.msra.mxu0 0.0
    %3203 = vmatprep.subr.mxu0 0.0
    %3204 = vmatpush1.msra.mxu0 0.0
    %3205 = vmatprep.subr.mxu0 0.0
    %3206 = vmatpush1.msra.mxu0 0.0
    %3207 = vmatprep.subr.mxu0 0.0
    %3208 = vmatpush1.msra.mxu0 0.0
    %3209 = vmatprep.subr.mxu0 0.0
    %3210 = vmatpush1.msra.mxu0 0.0
    %3211 = vmatprep.subr.mxu0 0.0
    %3212 = vmatpush1.msra.mxu0 0.0
    %3213 = vmatprep.subr.mxu0 0.0
    %3214 = vmatpush1.msra.mxu0 0.0
    %3215 = vmatprep.subr.mxu0 0.0
    %3216 = vmatpush1.msra.mxu0 0.0
    %3217 = vmatprep.mubr.f32.mxu0 0.0
    %3218 = vmatmul.mubr.f32.gmra.mrb[0].mxu0 %v3151
    %v3219 = vpop.f32.mrb[0].mxu0
    %v3220 = vadd.f32 0.0, %v3219
    %v3221 = vpop.f32.mrb[0].mxu0
    %3222 = vdwg.mxu0
    %v3224 = vsel %vm295, %v3220, 0
    %3226 = vmatprep.subr.mxu0 0.0
    %3227 = vmatpush1.msra.mxu0 %v2438
    %3228 = vmatprep.subr.mxu0 0.0
    %3229 = vmatpush1.msra.mxu0 0.0
    %3230 = vmatprep.subr.mxu0 0.0
    %3231 = vmatpush1.msra.mxu0 0.0
    %3232 = vmatprep.subr.mxu0 0.0
    %3233 = vmatpush1.msra.mxu0 0.0
    %3234 = vmatprep.subr.mxu0 0.0
    %3235 = vmatpush1.msra.mxu0 0.0
    %3236 = vmatprep.subr.mxu0 0.0
    %3237 = vmatpush1.msra.mxu0 0.0
    %3238 = vmatprep.subr.mxu0 0.0
    %3239 = vmatpush1.msra.mxu0 0.0
    %3240 = vmatprep.subr.mxu0 0.0
    %3241 = vmatpush1.msra.mxu0 0.0
    %3242 = vmatprep.subr.mxu0 0.0
    %3243 = vmatpush1.msra.mxu0 0.0
    %3244 = vmatprep.subr.mxu0 0.0
    %3245 = vmatpush1.msra.mxu0 0.0
    %3246 = vmatprep.subr.mxu0 0.0
    %3247 = vmatpush1.msra.mxu0 0.0
    %3248 = vmatprep.subr.mxu0 0.0
    %3249 = vmatpush1.msra.mxu0 0.0
    %3250 = vmatprep.subr.mxu0 0.0
    %3251 = vmatpush1.msra.mxu0 0.0
    %3252 = vmatprep.subr.mxu0 0.0
    %3253 = vmatpush1.msra.mxu0 0.0
    %3254 = vmatprep.subr.mxu0 0.0
    %3255 = vmatpush1.msra.mxu0 0.0
    %3256 = vmatprep.subr.mxu0 0.0
    %3257 = vmatpush1.msra.mxu0 0.0
    %3258 = vmatprep.subr.mxu0 0.0
    %3259 = vmatpush1.msra.mxu0 0.0
    %3260 = vmatprep.subr.mxu0 0.0
    %3261 = vmatpush1.msra.mxu0 0.0
    %3262 = vmatprep.subr.mxu0 0.0
    %3263 = vmatpush1.msra.mxu0 0.0
    %3264 = vmatprep.subr.mxu0 0.0
    %3265 = vmatpush1.msra.mxu0 0.0
    %3266 = vmatprep.subr.mxu0 0.0
    %3267 = vmatpush1.msra.mxu0 0.0
    %3268 = vmatprep.subr.mxu0 0.0
    %3269 = vmatpush1.msra.mxu0 0.0
    %3270 = vmatprep.subr.mxu0 0.0
    %3271 = vmatpush1.msra.mxu0 0.0
    %3272 = vmatprep.subr.mxu0 0.0
    %3273 = vmatpush1.msra.mxu0 0.0
    %3274 = vmatprep.subr.mxu0 0.0
    %3275 = vmatpush1.msra.mxu0 0.0
    %3276 = vmatprep.subr.mxu0 0.0
    %3277 = vmatpush1.msra.mxu0 0.0
    %3278 = vmatprep.subr.mxu0 0.0
    %3279 = vmatpush1.msra.mxu0 0.0
    %3280 = vmatprep.subr.mxu0 0.0
    %3281 = vmatpush1.msra.mxu0 0.0
    %3282 = vmatprep.subr.mxu0 0.0
    %3283 = vmatpush1.msra.mxu0 0.0
    %3284 = vmatprep.subr.mxu0 0.0
    %3285 = vmatpush1.msra.mxu0 0.0
    %3286 = vmatprep.subr.mxu0 0.0
    %3287 = vmatpush1.msra.mxu0 0.0
    %3288 = vmatprep.subr.mxu0 0.0
    %3289 = vmatpush1.msra.mxu0 0.0
    %3290 = vmatprep.mubr.f32.mxu0 0.0
    %3291 = vmatmul.mubr.f32.gmra.mrb[0].mxu0 %v3224
    %v3292 = vpop.f32.mrb[0].mxu0
    %v3293 = vadd.f32 0.0, %v3292
    %v3294 = vpop.f32.mrb[0].mxu0
    %3295 = vdwg.mxu0
    %v3296 = vadd.f32 %v3055, %v3293
    %3297 = vrot.lane.b32.xlu0 %v2575, 104
    %v3298 = vpop.permute.xlu0 %3297
    %3299 = vrot.lane.b32.xlu0 %v2575, 72
    %v3300 = vpop.permute.xlu0 %3299
    %v3301 = vsel %vm295, %v3298, 0
    %v3303 = vsel %vm295, %v3300, 0
    %3305 = vmatprep.subr.mxu0 0.0
    %3306 = vmatpush1.xpose.msra.mxu0 %v3303
    %3307 = vmatprep.subr.mxu0 0.0
    %3308 = vmatpush1.xpose.msra.mxu0 0.0
    %3309 = vmatprep.subr.mxu0 0.0
    %3310 = vmatpush1.xpose.msra.mxu0 0.0
    %3311 = vmatprep.subr.mxu0 0.0
    %3312 = vmatpush1.xpose.msra.mxu0 0.0
    %3313 = vmatprep.subr.mxu0 0.0
    %3314 = vmatpush1.xpose.msra.mxu0 0.0
    %3315 = vmatprep.subr.mxu0 0.0
    %3316 = vmatpush1.xpose.msra.mxu0 0.0
    %3317 = vmatprep.subr.mxu0 0.0
    %3318 = vmatpush1.xpose.msra.mxu0 0.0
    %3319 = vmatprep.subr.mxu0 0.0
    %3320 = vmatpush1.xpose.msra.mxu0 0.0
    %3321 = vmatprep.subr.mxu0 0.0
    %3322 = vmatpush1.xpose.msra.mxu0 0.0
    %3323 = vmatprep.subr.mxu0 0.0
    %3324 = vmatpush1.xpose.msra.mxu0 0.0
    %3325 = vmatprep.subr.mxu0 0.0
    %3326 = vmatpush1.xpose.msra.mxu0 0.0
    %3327 = vmatprep.subr.mxu0 0.0
    %3328 = vmatpush1.xpose.msra.mxu0 0.0
    %3329 = vmatprep.subr.mxu0 0.0
    %3330 = vmatpush1.xpose.msra.mxu0 0.0
    %3331 = vmatprep.subr.mxu0 0.0
    %3332 = vmatpush1.xpose.msra.mxu0 0.0
    %3333 = vmatprep.subr.mxu0 0.0
    %3334 = vmatpush1.xpose.msra.mxu0 0.0
    %3335 = vmatprep.subr.mxu0 0.0
    %3336 = vmatpush1.xpose.msra.mxu0 0.0
    %3337 = vmatprep.subr.mxu0 0.0
    %3338 = vmatpush1.xpose.msra.mxu0 0.0
    %3339 = vmatprep.subr.mxu0 0.0
    %3340 = vmatpush1.xpose.msra.mxu0 0.0
    %3341 = vmatprep.subr.mxu0 0.0
    %3342 = vmatpush1.xpose.msra.mxu0 0.0
    %3343 = vmatprep.subr.mxu0 0.0
    %3344 = vmatpush1.xpose.msra.mxu0 0.0
    %3345 = vmatprep.subr.mxu0 0.0
    %3346 = vmatpush1.xpose.msra.mxu0 0.0
    %3347 = vmatprep.subr.mxu0 0.0
    %3348 = vmatpush1.xpose.msra.mxu0 0.0
    %3349 = vmatprep.subr.mxu0 0.0
    %3350 = vmatpush1.xpose.msra.mxu0 0.0
    %3351 = vmatprep.subr.mxu0 0.0
    %3352 = vmatpush1.xpose.msra.mxu0 0.0
    %3353 = vmatprep.subr.mxu0 0.0
    %3354 = vmatpush1.xpose.msra.mxu0 0.0
    %3355 = vmatprep.subr.mxu0 0.0
    %3356 = vmatpush1.xpose.msra.mxu0 0.0
    %3357 = vmatprep.subr.mxu0 0.0
    %3358 = vmatpush1.xpose.msra.mxu0 0.0
    %3359 = vmatprep.subr.mxu0 0.0
    %3360 = vmatpush1.xpose.msra.mxu0 0.0
    %3361 = vmatprep.subr.mxu0 0.0
    %3362 = vmatpush1.xpose.msra.mxu0 0.0
    %3363 = vmatprep.subr.mxu0 0.0
    %3364 = vmatpush1.xpose.msra.mxu0 0.0
    %3365 = vmatprep.subr.mxu0 0.0
    %3366 = vmatpush1.xpose.msra.mxu0 0.0
    %3367 = vmatprep.subr.mxu0 0.0
    %3368 = vmatpush1.xpose.msra.mxu0 0.0
    %3369 = vmatprep.mubr.f32.mxu0 0.0
    %3370 = vmatmul.mubr.f32.gmra.mrb[0].mxu0 %v3301
    %v3371 = vpop.f32.mrb[0].mxu0
    %v3372 = vadd.f32 %v291, %v3371
    %v3373 = vpop.f32.mrb[0].mxu0
    %3374 = vdwg.mxu0
    %v3375 = vsel %vm295, %v3372, -inf
    %3376 = vmax.xlane.f32.xlu0 %v3375
    %v3377 = vpop.xlane.xlu0 %3376
    %v3378 = vsub.f32 %v3372, %v3377
    %v3379 = vmul.f32 %v3378, 1.442695
    %v3380 = vpow.pop %v3379
    %v3381 = vsel %vm295, %v3380, 0.0
    %3382 = vadd.xlane.f32.xlu0 %v3381
    %v3383 = vpop.xlane.xlu0 %3382
    %v3384 = vrcp.pop %v3383
    %v3385 = vmul.f32 %v3380, %v3384
    %3386 = vrot.lane.b32.xlu0 %v2575, 40
    %v3387 = vpop.permute.xlu0 %3386
    %v3390 = vsel %vm295, %v3385, 0
    %3392 = vmatprep.subr.mxu0 0.0
    %3393 = vmatpush1.msra.mxu0 %v3387
    %3394 = vmatprep.subr.mxu0 0.0
    %3395 = vmatpush1.msra.mxu0 0.0
    %3396 = vmatprep.subr.mxu0 0.0
    %3397 = vmatpush1.msra.mxu0 0.0
    %3398 = vmatprep.subr.mxu0 0.0
    %3399 = vmatpush1.msra.mxu0 0.0
    %3400 = vmatprep.subr.mxu0 0.0
    %3401 = vmatpush1.msra.mxu0 0.0
    %3402 = vmatprep.subr.mxu0 0.0
    %3403 = vmatpush1.msra.mxu0 0.0
    %3404 = vmatprep.subr.mxu0 0.0
    %3405 = vmatpush1.msra.mxu0 0.0
    %3406 = vmatprep.subr.mxu0 0.0
    %3407 = vmatpush1.msra.mxu0 0.0
    %3408 = vmatprep.subr.mxu0 0.0
    %3409 = vmatpush1.msra.mxu0 0.0
    %3410 = vmatprep.subr.mxu0 0.0
    %3411 = vmatpush1.msra.mxu0 0.0
    %3412 = vmatprep.subr.mxu0 0.0
    %3413 = vmatpush1.msra.mxu0 0.0
    %3414 = vmatprep.subr.mxu0 0.0
    %3415 = vmatpush1.msra.mxu0 0.0
    %3416 = vmatprep.subr.mxu0 0.0
    %3417 = vmatpush1.msra.mxu0 0.0
    %3418 = vmatprep.subr.mxu0 0.0
    %3419 = vmatpush1.msra.mxu0 0.0
    %3420 = vmatprep.subr.mxu0 0.0
    %3421 = vmatpush1.msra.mxu0 0.0
    %3422 = vmatprep.subr.mxu0 0.0
    %3423 = vmatpush1.msra.mxu0 0.0
    %3424 = vmatprep.subr.mxu0 0.0
    %3425 = vmatpush1.msra.mxu0 0.0
    %3426 = vmatprep.subr.mxu0 0.0
    %3427 = vmatpush1.msra.mxu0 0.0
    %3428 = vmatprep.subr.mxu0 0.0
    %3429 = vmatpush1.msra.mxu0 0.0
    %3430 = vmatprep.subr.mxu0 0.0
    %3431 = vmatpush1.msra.mxu0 0.0
    %3432 = vmatprep.subr.mxu0 0.0
    %3433 = vmatpush1.msra.mxu0 0.0
    %3434 = vmatprep.subr.mxu0 0.0
    %3435 = vmatpush1.msra.mxu0 0.0
    %3436 = vmatprep.subr.mxu0 0.0
    %3437 = vmatpush1.msra.mxu0 0.0
    %3438 = vmatprep.subr.mxu0 0.0
    %3439 = vmatpush1.msra.mxu0 0.0
    %3440 = vmatprep.subr.mxu0 0.0
    %3441 = vmatpush1.msra.mxu0 0.0
    %3442 = vmatprep.subr.mxu0 0.0
    %3443 = vmatpush1.msra.mxu0 0.0
    %3444 = vmatprep.subr.mxu0 0.0
    %3445 = vmatpush1.msra.mxu0 0.0
    %3446 = vmatprep.subr.mxu0 0.0
    %3447 = vmatpush1.msra.mxu0 0.0
    %3448 = vmatprep.subr.mxu0 0.0
    %3449 = vmatpush1.msra.mxu0 0.0
    %3450 = vmatprep.subr.mxu0 0.0
    %3451 = vmatpush1.msra.mxu0 0.0
    %3452 = vmatprep.subr.mxu0 0.0
    %3453 = vmatpush1.msra.mxu0 0.0
    %3454 = vmatprep.subr.mxu0 0.0
    %3455 = vmatpush1.msra.mxu0 0.0
    %3456 = vmatprep.mubr.f32.mxu0 0.0
    %3457 = vmatmul.mubr.f32.gmra.mrb[0].mxu0 %v3390
    %v3458 = vpop.f32.mrb[0].mxu0
    %v3459 = vadd.f32 0.0, %v3458
    %v3460 = vpop.f32.mrb[0].mxu0
    %3461 = vdwg.mxu0
    %v3463 = vsel %vm295, %v3459, 0
    %3465 = vmatprep.subr.mxu0 0.0
    %3466 = vmatpush1.msra.mxu0 %v2439
    %3467 = vmatprep.subr.mxu0 0.0
    %3468 = vmatpush1.msra.mxu0 0.0
    %3469 = vmatprep.subr.mxu0 0.0
    %3470 = vmatpush1.msra.mxu0 0.0
    %3471 = vmatprep.subr.mxu0 0.0
    %3472 = vmatpush1.msra.mxu0 0.0
    %3473 = vmatprep.subr.mxu0 0.0
    %3474 = vmatpush1.msra.mxu0 0.0
    %3475 = vmatprep.subr.mxu0 0.0
    %3476 = vmatpush1.msra.mxu0 0.0
    %3477 = vmatprep.subr.mxu0 0.0
    %3478 = vmatpush1.msra.mxu0 0.0
    %3479 = vmatprep.subr.mxu0 0.0
    %3480 = vmatpush1.msra.mxu0 0.0
    %3481 = vmatprep.subr.mxu0 0.0
    %3482 = vmatpush1.msra.mxu0 0.0
    %3483 = vmatprep.subr.mxu0 0.0
    %3484 = vmatpush1.msra.mxu0 0.0
    %3485 = vmatprep.subr.mxu0 0.0
    %3486 = vmatpush1.msra.mxu0 0.0
    %3487 = vmatprep.subr.mxu0 0.0
    %3488 = vmatpush1.msra.mxu0 0.0
    %3489 = vmatprep.subr.mxu0 0.0
    %3490 = vmatpush1.msra.mxu0 0.0
    %3491 = vmatprep.subr.mxu0 0.0
    %3492 = vmatpush1.msra.mxu0 0.0
    %3493 = vmatprep.subr.mxu0 0.0
    %3494 = vmatpush1.msra.mxu0 0.0
    %3495 = vmatprep.subr.mxu0 0.0
    %3496 = vmatpush1.msra.mxu0 0.0
    %3497 = vmatprep.subr.mxu0 0.0
    %3498 = vmatpush1.msra.mxu0 0.0
    %3499 = vmatprep.subr.mxu0 0.0
    %3500 = vmatpush1.msra.mxu0 0.0
    %3501 = vmatprep.subr.mxu0 0.0
    %3502 = vmatpush1.msra.mxu0 0.0
    %3503 = vmatprep.subr.mxu0 0.0
    %3504 = vmatpush1.msra.mxu0 0.0
    %3505 = vmatprep.subr.mxu0 0.0
    %3506 = vmatpush1.msra.mxu0 0.0
    %3507 = vmatprep.subr.mxu0 0.0
    %3508 = vmatpush1.msra.mxu0 0.0
    %3509 = vmatprep.subr.mxu0 0.0
    %3510 = vmatpush1.msra.mxu0 0.0
    %3511 = vmatprep.subr.mxu0 0.0
    %3512 = vmatpush1.msra.mxu0 0.0
    %3513 = vmatprep.subr.mxu0 0.0
    %3514 = vmatpush1.msra.mxu0 0.0
    %3515 = vmatprep.subr.mxu0 0.0
    %3516 = vmatpush1.msra.mxu0 0.0
    %3517 = vmatprep.subr.mxu0 0.0
    %3518 = vmatpush1.msra.mxu0 0.0
    %3519 = vmatprep.subr.mxu0 0.0
    %3520 = vmatpush1.msra.mxu0 0.0
    %3521 = vmatprep.subr.mxu0 0.0
    %3522 = vmatpush1.msra.mxu0 0.0
    %3523 = vmatprep.subr.mxu0 0.0
    %3524 = vmatpush1.msra.mxu0 0.0
    %3525 = vmatprep.subr.mxu0 0.0
    %3526 = vmatpush1.msra.mxu0 0.0
    %3527 = vmatprep.subr.mxu0 0.0
    %3528 = vmatpush1.msra.mxu0 0.0
    %3529 = vmatprep.mubr.f32.mxu0 0.0
    %3530 = vmatmul.mubr.f32.gmra.mrb[0].mxu0 %v3463
    %v3531 = vpop.f32.mrb[0].mxu0
    %v3532 = vadd.f32 0.0, %v3531
    %v3533 = vpop.f32.mrb[0].mxu0
    %3534 = vdwg.mxu0
    %v3535 = vadd.f32 %v3296, %v3532
    %3537 = vrot.lane.b32.xlu0 %v2580, 96
    %v3538 = vpop.permute.xlu0 %3537
    %v3539 = vsel %vm295, %v2580, 0
    %v3541 = vsel %vm295, %v3538, 0
    %3543 = vmatprep.subr.mxu0 0.0
    %3544 = vmatpush1.xpose.msra.mxu0 %v3541
    %3545 = vmatprep.subr.mxu0 0.0
    %3546 = vmatpush1.xpose.msra.mxu0 0.0
    %3547 = vmatprep.subr.mxu0 0.0
    %3548 = vmatpush1.xpose.msra.mxu0 0.0
    %3549 = vmatprep.subr.mxu0 0.0
    %3550 = vmatpush1.xpose.msra.mxu0 0.0
    %3551 = vmatprep.subr.mxu0 0.0
    %3552 = vmatpush1.xpose.msra.mxu0 0.0
    %3553 = vmatprep.subr.mxu0 0.0
    %3554 = vmatpush1.xpose.msra.mxu0 0.0
    %3555 = vmatprep.subr.mxu0 0.0
    %3556 = vmatpush1.xpose.msra.mxu0 0.0
    %3557 = vmatprep.subr.mxu0 0.0
    %3558 = vmatpush1.xpose.msra.mxu0 0.0
    %3559 = vmatprep.subr.mxu0 0.0
    %3560 = vmatpush1.xpose.msra.mxu0 0.0
    %3561 = vmatprep.subr.mxu0 0.0
    %3562 = vmatpush1.xpose.msra.mxu0 0.0
    %3563 = vmatprep.subr.mxu0 0.0
    %3564 = vmatpush1.xpose.msra.mxu0 0.0
    %3565 = vmatprep.subr.mxu0 0.0
    %3566 = vmatpush1.xpose.msra.mxu0 0.0
    %3567 = vmatprep.subr.mxu0 0.0
    %3568 = vmatpush1.xpose.msra.mxu0 0.0
    %3569 = vmatprep.subr.mxu0 0.0
    %3570 = vmatpush1.xpose.msra.mxu0 0.0
    %3571 = vmatprep.subr.mxu0 0.0
    %3572 = vmatpush1.xpose.msra.mxu0 0.0
    %3573 = vmatprep.subr.mxu0 0.0
    %3574 = vmatpush1.xpose.msra.mxu0 0.0
    %3575 = vmatprep.subr.mxu0 0.0
    %3576 = vmatpush1.xpose.msra.mxu0 0.0
    %3577 = vmatprep.subr.mxu0 0.0
    %3578 = vmatpush1.xpose.msra.mxu0 0.0
    %3579 = vmatprep.subr.mxu0 0.0
    %3580 = vmatpush1.xpose.msra.mxu0 0.0
    %3581 = vmatprep.subr.mxu0 0.0
    %3582 = vmatpush1.xpose.msra.mxu0 0.0
    %3583 = vmatprep.subr.mxu0 0.0
    %3584 = vmatpush1.xpose.msra.mxu0 0.0
    %3585 = vmatprep.subr.mxu0 0.0
    %3586 = vmatpush1.xpose.msra.mxu0 0.0
    %3587 = vmatprep.subr.mxu0 0.0
    %3588 = vmatpush1.xpose.msra.mxu0 0.0
    %3589 = vmatprep.subr.mxu0 0.0
    %3590 = vmatpush1.xpose.msra.mxu0 0.0
    %3591 = vmatprep.subr.mxu0 0.0
    %3592 = vmatpush1.xpose.msra.mxu0 0.0
    %3593 = vmatprep.subr.mxu0 0.0
    %3594 = vmatpush1.xpose.msra.mxu0 0.0
    %3595 = vmatprep.subr.mxu0 0.0
    %3596 = vmatpush1.xpose.msra.mxu0 0.0
    %3597 = vmatprep.subr.mxu0 0.0
    %3598 = vmatpush1.xpose.msra.mxu0 0.0
    %3599 = vmatprep.subr.mxu0 0.0
    %3600 = vmatpush1.xpose.msra.mxu0 0.0
    %3601 = vmatprep.subr.mxu0 0.0
    %3602 = vmatpush1.xpose.msra.mxu0 0.0
    %3603 = vmatprep.subr.mxu0 0.0
    %3604 = vmatpush1.xpose.msra.mxu0 0.0
    %3605 = vmatprep.subr.mxu0 0.0
    %3606 = vmatpush1.xpose.msra.mxu0 0.0
    %3607 = vmatprep.mubr.f32.mxu0 0.0
    %3608 = vmatmul.mubr.f32.gmra.mrb[0].mxu0 %v3539
    %v3609 = vpop.f32.mrb[0].mxu0
    %v3610 = vadd.f32 %v1249, %v3609
    %v3611 = vpop.f32.mrb[0].mxu0
    %3612 = vdwg.mxu0
    %v3613 = vsel %vm295, %v3610, -inf
    %3614 = vmax.xlane.f32.xlu0 %v3613
    %v3615 = vpop.xlane.xlu0 %3614
    %v3616 = vsub.f32 %v3610, %v3615
    %v3617 = vmul.f32 %v3616, 1.442695
    %v3618 = vpow.pop %v3617
    %v3619 = vsel %vm295, %v3618, 0.0
    %3620 = vadd.xlane.f32.xlu0 %v3619
    %v3621 = vpop.xlane.xlu0 %3620
    %v3622 = vrcp.pop %v3621
    %v3623 = vmul.f32 %v3618, %v3622
    %3624 = vrot.lane.b32.xlu0 %v2580, 64
    %v3625 = vpop.permute.xlu0 %3624
    %v3628 = vsel %vm295, %v3623, 0
    %3630 = vmatprep.subr.mxu0 0.0
    %3631 = vmatpush1.msra.mxu0 %v3625
    %3632 = vmatprep.subr.mxu0 0.0
    %3633 = vmatpush1.msra.mxu0 0.0
    %3634 = vmatprep.subr.mxu0 0.0
    %3635 = vmatpush1.msra.mxu0 0.0
    %3636 = vmatprep.subr.mxu0 0.0
    %3637 = vmatpush1.msra.mxu0 0.0
    %3638 = vmatprep.subr.mxu0 0.0
    %3639 = vmatpush1.msra.mxu0 0.0
    %3640 = vmatprep.subr.mxu0 0.0
    %3641 = vmatpush1.msra.mxu0 0.0
    %3642 = vmatprep.subr.mxu0 0.0
    %3643 = vmatpush1.msra.mxu0 0.0
    %3644 = vmatprep.subr.mxu0 0.0
    %3645 = vmatpush1.msra.mxu0 0.0
    %3646 = vmatprep.subr.mxu0 0.0
    %3647 = vmatpush1.msra.mxu0 0.0
    %3648 = vmatprep.subr.mxu0 0.0
    %3649 = vmatpush1.msra.mxu0 0.0
    %3650 = vmatprep.subr.mxu0 0.0
    %3651 = vmatpush1.msra.mxu0 0.0
    %3652 = vmatprep.subr.mxu0 0.0
    %3653 = vmatpush1.msra.mxu0 0.0
    %3654 = vmatprep.subr.mxu0 0.0
    %3655 = vmatpush1.msra.mxu0 0.0
    %3656 = vmatprep.subr.mxu0 0.0
    %3657 = vmatpush1.msra.mxu0 0.0
    %3658 = vmatprep.subr.mxu0 0.0
    %3659 = vmatpush1.msra.mxu0 0.0
    %3660 = vmatprep.subr.mxu0 0.0
    %3661 = vmatpush1.msra.mxu0 0.0
    %3662 = vmatprep.subr.mxu0 0.0
    %3663 = vmatpush1.msra.mxu0 0.0
    %3664 = vmatprep.subr.mxu0 0.0
    %3665 = vmatpush1.msra.mxu0 0.0
    %3666 = vmatprep.subr.mxu0 0.0
    %3667 = vmatpush1.msra.mxu0 0.0
    %3668 = vmatprep.subr.mxu0 0.0
    %3669 = vmatpush1.msra.mxu0 0.0
    %3670 = vmatprep.subr.mxu0 0.0
    %3671 = vmatpush1.msra.mxu0 0.0
    %3672 = vmatprep.subr.mxu0 0.0
    %3673 = vmatpush1.msra.mxu0 0.0
    %3674 = vmatprep.subr.mxu0 0.0
    %3675 = vmatpush1.msra.mxu0 0.0
    %3676 = vmatprep.subr.mxu0 0.0
    %3677 = vmatpush1.msra.mxu0 0.0
    %3678 = vmatprep.subr.mxu0 0.0
    %3679 = vmatpush1.msra.mxu0 0.0
    %3680 = vmatprep.subr.mxu0 0.0
    %3681 = vmatpush1.msra.mxu0 0.0
    %3682 = vmatprep.subr.mxu0 0.0
    %3683 = vmatpush1.msra.mxu0 0.0
    %3684 = vmatprep.subr.mxu0 0.0
    %3685 = vmatpush1.msra.mxu0 0.0
    %3686 = vmatprep.subr.mxu0 0.0
    %3687 = vmatpush1.msra.mxu0 0.0
    %3688 = vmatprep.subr.mxu0 0.0
    %3689 = vmatpush1.msra.mxu0 0.0
    %3690 = vmatprep.subr.mxu0 0.0
    %3691 = vmatpush1.msra.mxu0 0.0
    %3692 = vmatprep.subr.mxu0 0.0
    %3693 = vmatpush1.msra.mxu0 0.0
    %3694 = vmatprep.mubr.f32.mxu0 0.0
    %3695 = vmatmul.mubr.f32.gmra.mrb[0].mxu0 %v3628
    %v3696 = vpop.f32.mrb[0].mxu0
    %v3697 = vadd.f32 0.0, %v3696
    %v3698 = vpop.f32.mrb[0].mxu0
    %3699 = vdwg.mxu0
    %3700 = vrot.lane.b32.xlu0 %v2580, 120
    %v3701 = vpop.permute.xlu0 %3700
    %3702 = vrot.lane.b32.xlu0 %v2580, 88
    %v3703 = vpop.permute.xlu0 %3702
    %v3704 = vsel %vm295, %v3701, 0
    %v3706 = vsel %vm295, %v3703, 0
    %3708 = vmatprep.subr.mxu0 0.0
    %3709 = vmatpush1.xpose.msra.mxu0 %v3706
    %3710 = vmatprep.subr.mxu0 0.0
    %3711 = vmatpush1.xpose.msra.mxu0 0.0
    %3712 = vmatprep.subr.mxu0 0.0
    %3713 = vmatpush1.xpose.msra.mxu0 0.0
    %3714 = vmatprep.subr.mxu0 0.0
    %3715 = vmatpush1.xpose.msra.mxu0 0.0
    %3716 = vmatprep.subr.mxu0 0.0
    %3717 = vmatpush1.xpose.msra.mxu0 0.0
    %3718 = vmatprep.subr.mxu0 0.0
    %3719 = vmatpush1.xpose.msra.mxu0 0.0
    %3720 = vmatprep.subr.mxu0 0.0
    %3721 = vmatpush1.xpose.msra.mxu0 0.0
    %3722 = vmatprep.subr.mxu0 0.0
    %3723 = vmatpush1.xpose.msra.mxu0 0.0
    %3724 = vmatprep.subr.mxu0 0.0
    %3725 = vmatpush1.xpose.msra.mxu0 0.0
    %3726 = vmatprep.subr.mxu0 0.0
    %3727 = vmatpush1.xpose.msra.mxu0 0.0
    %3728 = vmatprep.subr.mxu0 0.0
    %3729 = vmatpush1.xpose.msra.mxu0 0.0
    %3730 = vmatprep.subr.mxu0 0.0
    %3731 = vmatpush1.xpose.msra.mxu0 0.0
    %3732 = vmatprep.subr.mxu0 0.0
    %3733 = vmatpush1.xpose.msra.mxu0 0.0
    %3734 = vmatprep.subr.mxu0 0.0
    %3735 = vmatpush1.xpose.msra.mxu0 0.0
    %3736 = vmatprep.subr.mxu0 0.0
    %3737 = vmatpush1.xpose.msra.mxu0 0.0
    %3738 = vmatprep.subr.mxu0 0.0
    %3739 = vmatpush1.xpose.msra.mxu0 0.0
    %3740 = vmatprep.subr.mxu0 0.0
    %3741 = vmatpush1.xpose.msra.mxu0 0.0
    %3742 = vmatprep.subr.mxu0 0.0
    %3743 = vmatpush1.xpose.msra.mxu0 0.0
    %3744 = vmatprep.subr.mxu0 0.0
    %3745 = vmatpush1.xpose.msra.mxu0 0.0
    %3746 = vmatprep.subr.mxu0 0.0
    %3747 = vmatpush1.xpose.msra.mxu0 0.0
    %3748 = vmatprep.subr.mxu0 0.0
    %3749 = vmatpush1.xpose.msra.mxu0 0.0
    %3750 = vmatprep.subr.mxu0 0.0
    %3751 = vmatpush1.xpose.msra.mxu0 0.0
    %3752 = vmatprep.subr.mxu0 0.0
    %3753 = vmatpush1.xpose.msra.mxu0 0.0
    %3754 = vmatprep.subr.mxu0 0.0
    %3755 = vmatpush1.xpose.msra.mxu0 0.0
    %3756 = vmatprep.subr.mxu0 0.0
    %3757 = vmatpush1.xpose.msra.mxu0 0.0
    %3758 = vmatprep.subr.mxu0 0.0
    %3759 = vmatpush1.xpose.msra.mxu0 0.0
    %3760 = vmatprep.subr.mxu0 0.0
    %3761 = vmatpush1.xpose.msra.mxu0 0.0
    %3762 = vmatprep.subr.mxu0 0.0
    %3763 = vmatpush1.xpose.msra.mxu0 0.0
    %3764 = vmatprep.subr.mxu0 0.0
    %3765 = vmatpush1.xpose.msra.mxu0 0.0
    %3766 = vmatprep.subr.mxu0 0.0
    %3767 = vmatpush1.xpose.msra.mxu0 0.0
    %3768 = vmatprep.subr.mxu0 0.0
    %3769 = vmatpush1.xpose.msra.mxu0 0.0
    %3770 = vmatprep.subr.mxu0 0.0
    %3771 = vmatpush1.xpose.msra.mxu0 0.0
    %3772 = vmatprep.mubr.f32.mxu0 0.0
    %3773 = vmatmul.mubr.f32.gmra.mrb[0].mxu0 %v3704
    %v3774 = vpop.f32.mrb[0].mxu0
    %v3775 = vadd.f32 %v1249, %v3774
    %v3776 = vpop.f32.mrb[0].mxu0
    %3777 = vdwg.mxu0
    %v3778 = vsel %vm295, %v3775, -inf
    %3779 = vmax.xlane.f32.xlu0 %v3778
    %v3780 = vpop.xlane.xlu0 %3779
    %v3781 = vsub.f32 %v3775, %v3780
    %v3782 = vmul.f32 %v3781, 1.442695
    %v3783 = vpow.pop %v3782
    %v3784 = vsel %vm295, %v3783, 0.0
    %3785 = vadd.xlane.f32.xlu0 %v3784
    %v3786 = vpop.xlane.xlu0 %3785
    %v3787 = vrcp.pop %v3786
    %v3788 = vmul.f32 %v3783, %v3787
    %3789 = vrot.lane.b32.xlu0 %v2580, 56
    %v3790 = vpop.permute.xlu0 %3789
    %v3793 = vsel %vm295, %v3788, 0
    %3795 = vmatprep.subr.mxu0 0.0
    %3796 = vmatpush1.msra.mxu0 %v3790
    %3797 = vmatprep.subr.mxu0 0.0
    %3798 = vmatpush1.msra.mxu0 0.0
    %3799 = vmatprep.subr.mxu0 0.0
    %3800 = vmatpush1.msra.mxu0 0.0
    %3801 = vmatprep.subr.mxu0 0.0
    %3802 = vmatpush1.msra.mxu0 0.0
    %3803 = vmatprep.subr.mxu0 0.0
    %3804 = vmatpush1.msra.mxu0 0.0
    %3805 = vmatprep.subr.mxu0 0.0
    %3806 = vmatpush1.msra.mxu0 0.0
    %3807 = vmatprep.subr.mxu0 0.0
    %3808 = vmatpush1.msra.mxu0 0.0
    %3809 = vmatprep.subr.mxu0 0.0
    %3810 = vmatpush1.msra.mxu0 0.0
    %3811 = vmatprep.subr.mxu0 0.0
    %3812 = vmatpush1.msra.mxu0 0.0
    %3813 = vmatprep.subr.mxu0 0.0
    %3814 = vmatpush1.msra.mxu0 0.0
    %3815 = vmatprep.subr.mxu0 0.0
    %3816 = vmatpush1.msra.mxu0 0.0
    %3817 = vmatprep.subr.mxu0 0.0
    %3818 = vmatpush1.msra.mxu0 0.0
    %3819 = vmatprep.subr.mxu0 0.0
    %3820 = vmatpush1.msra.mxu0 0.0
    %3821 = vmatprep.subr.mxu0 0.0
    %3822 = vmatpush1.msra.mxu0 0.0
    %3823 = vmatprep.subr.mxu0 0.0
    %3824 = vmatpush1.msra.mxu0 0.0
    %3825 = vmatprep.subr.mxu0 0.0
    %3826 = vmatpush1.msra.mxu0 0.0
    %3827 = vmatprep.subr.mxu0 0.0
    %3828 = vmatpush1.msra.mxu0 0.0
    %3829 = vmatprep.subr.mxu0 0.0
    %3830 = vmatpush1.msra.mxu0 0.0
    %3831 = vmatprep.subr.mxu0 0.0
    %3832 = vmatpush1.msra.mxu0 0.0
    %3833 = vmatprep.subr.mxu0 0.0
    %3834 = vmatpush1.msra.mxu0 0.0
    %3835 = vmatprep.subr.mxu0 0.0
    %3836 = vmatpush1.msra.mxu0 0.0
    %3837 = vmatprep.subr.mxu0 0.0
    %3838 = vmatpush1.msra.mxu0 0.0
    %3839 = vmatprep.subr.mxu0 0.0
    %3840 = vmatpush1.msra.mxu0 0.0
    %3841 = vmatprep.subr.mxu0 0.0
    %3842 = vmatpush1.msra.mxu0 0.0
    %3843 = vmatprep.subr.mxu0 0.0
    %3844 = vmatpush1.msra.mxu0 0.0
    %3845 = vmatprep.subr.mxu0 0.0
    %3846 = vmatpush1.msra.mxu0 0.0
    %3847 = vmatprep.subr.mxu0 0.0
    %3848 = vmatpush1.msra.mxu0 0.0
    %3849 = vmatprep.subr.mxu0 0.0
    %3850 = vmatpush1.msra.mxu0 0.0
    %3851 = vmatprep.subr.mxu0 0.0
    %3852 = vmatpush1.msra.mxu0 0.0
    %3853 = vmatprep.subr.mxu0 0.0
    %3854 = vmatpush1.msra.mxu0 0.0
    %3855 = vmatprep.subr.mxu0 0.0
    %3856 = vmatpush1.msra.mxu0 0.0
    %3857 = vmatprep.subr.mxu0 0.0
    %3858 = vmatpush1.msra.mxu0 0.0
    %3859 = vmatprep.mubr.f32.mxu0 0.0
    %3860 = vmatmul.mubr.f32.gmra.mrb[0].mxu0 %v3793
    %v3861 = vpop.f32.mrb[0].mxu0
    %v3862 = vadd.f32 0.0, %v3861
    %v3863 = vpop.f32.mrb[0].mxu0
    %3864 = vdwg.mxu0
    %v3866 = vsel %vm295, %v3862, 0
    %3868 = vmatprep.subr.mxu0 0.0
    %3869 = vmatpush1.msra.mxu0 %v2437
    %3870 = vmatprep.subr.mxu0 0.0
    %3871 = vmatpush1.msra.mxu0 0.0
    %3872 = vmatprep.subr.mxu0 0.0
    %3873 = vmatpush1.msra.mxu0 0.0
    %3874 = vmatprep.subr.mxu0 0.0
    %3875 = vmatpush1.msra.mxu0 0.0
    %3876 = vmatprep.subr.mxu0 0.0
    %3877 = vmatpush1.msra.mxu0 0.0
    %3878 = vmatprep.subr.mxu0 0.0
    %3879 = vmatpush1.msra.mxu0 0.0
    %3880 = vmatprep.subr.mxu0 0.0
    %3881 = vmatpush1.msra.mxu0 0.0
    %3882 = vmatprep.subr.mxu0 0.0
    %3883 = vmatpush1.msra.mxu0 0.0
    %3884 = vmatprep.subr.mxu0 0.0
    %3885 = vmatpush1.msra.mxu0 0.0
    %3886 = vmatprep.subr.mxu0 0.0
    %3887 = vmatpush1.msra.mxu0 0.0
    %3888 = vmatprep.subr.mxu0 0.0
    %3889 = vmatpush1.msra.mxu0 0.0
    %3890 = vmatprep.subr.mxu0 0.0
    %3891 = vmatpush1.msra.mxu0 0.0
    %3892 = vmatprep.subr.mxu0 0.0
    %3893 = vmatpush1.msra.mxu0 0.0
    %3894 = vmatprep.subr.mxu0 0.0
    %3895 = vmatpush1.msra.mxu0 0.0
    %3896 = vmatprep.subr.mxu0 0.0
    %3897 = vmatpush1.msra.mxu0 0.0
    %3898 = vmatprep.subr.mxu0 0.0
    %3899 = vmatpush1.msra.mxu0 0.0
    %3900 = vmatprep.subr.mxu0 0.0
    %3901 = vmatpush1.msra.mxu0 0.0
    %3902 = vmatprep.subr.mxu0 0.0
    %3903 = vmatpush1.msra.mxu0 0.0
    %3904 = vmatprep.subr.mxu0 0.0
    %3905 = vmatpush1.msra.mxu0 0.0
    %3906 = vmatprep.subr.mxu0 0.0
    %3907 = vmatpush1.msra.mxu0 0.0
    %3908 = vmatprep.subr.mxu0 0.0
    %3909 = vmatpush1.msra.mxu0 0.0
    %3910 = vmatprep.subr.mxu0 0.0
    %3911 = vmatpush1.msra.mxu0 0.0
    %3912 = vmatprep.subr.mxu0 0.0
    %3913 = vmatpush1.msra.mxu0 0.0
    %3914 = vmatprep.subr.mxu0 0.0
    %3915 = vmatpush1.msra.mxu0 0.0
    %3916 = vmatprep.subr.mxu0 0.0
    %3917 = vmatpush1.msra.mxu0 0.0
    %3918 = vmatprep.subr.mxu0 0.0
    %3919 = vmatpush1.msra.mxu0 0.0
    %3920 = vmatprep.subr.mxu0 0.0
    %3921 = vmatpush1.msra.mxu0 0.0
    %3922 = vmatprep.subr.mxu0 0.0
    %3923 = vmatpush1.msra.mxu0 0.0
    %3924 = vmatprep.subr.mxu0 0.0
    %3925 = vmatpush1.msra.mxu0 0.0
    %3926 = vmatprep.subr.mxu0 0.0
    %3927 = vmatpush1.msra.mxu0 0.0
    %3928 = vmatprep.subr.mxu0 0.0
    %3929 = vmatpush1.msra.mxu0 0.0
    %3930 = vmatprep.subr.mxu0 0.0
    %3931 = vmatpush1.msra.mxu0 0.0
    %3932 = vmatprep.mubr.f32.mxu0 0.0
    %3933 = vmatmul.mubr.f32.gmra.mrb[0].mxu0 %v3866
    %v3934 = vpop.f32.mrb[0].mxu0
    %v3935 = vadd.f32 0.0, %v3934
    %v3936 = vpop.f32.mrb[0].mxu0
    %3937 = vdwg.mxu0
    %v3939 = vsel %vm295, %v3697, 0
    %3941 = vmatprep.subr.mxu0 0.0
    %3942 = vmatpush1.msra.mxu0 %v2436
    %3943 = vmatprep.subr.mxu0 0.0
    %3944 = vmatpush1.msra.mxu0 0.0
    %3945 = vmatprep.subr.mxu0 0.0
    %3946 = vmatpush1.msra.mxu0 0.0
    %3947 = vmatprep.subr.mxu0 0.0
    %3948 = vmatpush1.msra.mxu0 0.0
    %3949 = vmatprep.subr.mxu0 0.0
    %3950 = vmatpush1.msra.mxu0 0.0
    %3951 = vmatprep.subr.mxu0 0.0
    %3952 = vmatpush1.msra.mxu0 0.0
    %3953 = vmatprep.subr.mxu0 0.0
    %3954 = vmatpush1.msra.mxu0 0.0
    %3955 = vmatprep.subr.mxu0 0.0
    %3956 = vmatpush1.msra.mxu0 0.0
    %3957 = vmatprep.subr.mxu0 0.0
    %3958 = vmatpush1.msra.mxu0 0.0
    %3959 = vmatprep.subr.mxu0 0.0
    %3960 = vmatpush1.msra.mxu0 0.0
    %3961 = vmatprep.subr.mxu0 0.0
    %3962 = vmatpush1.msra.mxu0 0.0
    %3963 = vmatprep.subr.mxu0 0.0
    %3964 = vmatpush1.msra.mxu0 0.0
    %3965 = vmatprep.subr.mxu0 0.0
    %3966 = vmatpush1.msra.mxu0 0.0
    %3967 = vmatprep.subr.mxu0 0.0
    %3968 = vmatpush1.msra.mxu0 0.0
    %3969 = vmatprep.subr.mxu0 0.0
    %3970 = vmatpush1.msra.mxu0 0.0
    %3971 = vmatprep.subr.mxu0 0.0
    %3972 = vmatpush1.msra.mxu0 0.0
    %3973 = vmatprep.subr.mxu0 0.0
    %3974 = vmatpush1.msra.mxu0 0.0
    %3975 = vmatprep.subr.mxu0 0.0
    %3976 = vmatpush1.msra.mxu0 0.0
    %3977 = vmatprep.subr.mxu0 0.0
    %3978 = vmatpush1.msra.mxu0 0.0
    %3979 = vmatprep.subr.mxu0 0.0
    %3980 = vmatpush1.msra.mxu0 0.0
    %3981 = vmatprep.subr.mxu0 0.0
    %3982 = vmatpush1.msra.mxu0 0.0
    %3983 = vmatprep.subr.mxu0 0.0
    %3984 = vmatpush1.msra.mxu0 0.0
    %3985 = vmatprep.subr.mxu0 0.0
    %3986 = vmatpush1.msra.mxu0 0.0
    %3987 = vmatprep.subr.mxu0 0.0
    %3988 = vmatpush1.msra.mxu0 0.0
    %3989 = vmatprep.subr.mxu0 0.0
    %3990 = vmatpush1.msra.mxu0 0.0
    %3991 = vmatprep.subr.mxu0 0.0
    %3992 = vmatpush1.msra.mxu0 0.0
    %3993 = vmatprep.subr.mxu0 0.0
    %3994 = vmatpush1.msra.mxu0 0.0
    %3995 = vmatprep.subr.mxu0 0.0
    %3996 = vmatpush1.msra.mxu0 0.0
    %3997 = vmatprep.subr.mxu0 0.0
    %3998 = vmatpush1.msra.mxu0 0.0
    %3999 = vmatprep.subr.mxu0 0.0
    %4000 = vmatpush1.msra.mxu0 0.0
    %4001 = vmatprep.subr.mxu0 0.0
    %4002 = vmatpush1.msra.mxu0 0.0
    %4003 = vmatprep.subr.mxu0 0.0
    %4004 = vmatpush1.msra.mxu0 0.0
    %4005 = vmatprep.mubr.f32.mxu0 0.0
    %4006 = vmatmul.mubr.f32.gmra.mrb[0].mxu0 %v3939
    %v4007 = vpop.f32.mrb[0].mxu0
    %v4008 = vadd.f32 %v3935, %v4007
    %v4009 = vpop.f32.mrb[0].mxu0
    %4010 = vdwg.mxu0
    %4011 = vrot.lane.b32.xlu0 %v2580, 112
    %v4012 = vpop.permute.xlu0 %4011
    %4013 = vrot.lane.b32.xlu0 %v2580, 80
    %v4014 = vpop.permute.xlu0 %4013
    %v4015 = vsel %vm295, %v4012, 0
    %v4017 = vsel %vm295, %v4014, 0
    %4019 = vmatprep.subr.mxu0 0.0
    %4020 = vmatpush1.xpose.msra.mxu0 %v4017
    %4021 = vmatprep.subr.mxu0 0.0
    %4022 = vmatpush1.xpose.msra.mxu0 0.0
    %4023 = vmatprep.subr.mxu0 0.0
    %4024 = vmatpush1.xpose.msra.mxu0 0.0
    %4025 = vmatprep.subr.mxu0 0.0
    %4026 = vmatpush1.xpose.msra.mxu0 0.0
    %4027 = vmatprep.subr.mxu0 0.0
    %4028 = vmatpush1.xpose.msra.mxu0 0.0
    %4029 = vmatprep.subr.mxu0 0.0
    %4030 = vmatpush1.xpose.msra.mxu0 0.0
    %4031 = vmatprep.subr.mxu0 0.0
    %4032 = vmatpush1.xpose.msra.mxu0 0.0
    %4033 = vmatprep.subr.mxu0 0.0
    %4034 = vmatpush1.xpose.msra.mxu0 0.0
    %4035 = vmatprep.subr.mxu0 0.0
    %4036 = vmatpush1.xpose.msra.mxu0 0.0
    %4037 = vmatprep.subr.mxu0 0.0
    %4038 = vmatpush1.xpose.msra.mxu0 0.0
    %4039 = vmatprep.subr.mxu0 0.0
    %4040 = vmatpush1.xpose.msra.mxu0 0.0
    %4041 = vmatprep.subr.mxu0 0.0
    %4042 = vmatpush1.xpose.msra.mxu0 0.0
    %4043 = vmatprep.subr.mxu0 0.0
    %4044 = vmatpush1.xpose.msra.mxu0 0.0
    %4045 = vmatprep.subr.mxu0 0.0
    %4046 = vmatpush1.xpose.msra.mxu0 0.0
    %4047 = vmatprep.subr.mxu0 0.0
    %4048 = vmatpush1.xpose.msra.mxu0 0.0
    %4049 = vmatprep.subr.mxu0 0.0
    %4050 = vmatpush1.xpose.msra.mxu0 0.0
    %4051 = vmatprep.subr.mxu0 0.0
    %4052 = vmatpush1.xpose.msra.mxu0 0.0
    %4053 = vmatprep.subr.mxu0 0.0
    %4054 = vmatpush1.xpose.msra.mxu0 0.0
    %4055 = vmatprep.subr.mxu0 0.0
    %4056 = vmatpush1.xpose.msra.mxu0 0.0
    %4057 = vmatprep.subr.mxu0 0.0
    %4058 = vmatpush1.xpose.msra.mxu0 0.0
    %4059 = vmatprep.subr.mxu0 0.0
    %4060 = vmatpush1.xpose.msra.mxu0 0.0
    %4061 = vmatprep.subr.mxu0 0.0
    %4062 = vmatpush1.xpose.msra.mxu0 0.0
    %4063 = vmatprep.subr.mxu0 0.0
    %4064 = vmatpush1.xpose.msra.mxu0 0.0
    %4065 = vmatprep.subr.mxu0 0.0
    %4066 = vmatpush1.xpose.msra.mxu0 0.0
    %4067 = vmatprep.subr.mxu0 0.0
    %4068 = vmatpush1.xpose.msra.mxu0 0.0
    %4069 = vmatprep.subr.mxu0 0.0
    %4070 = vmatpush1.xpose.msra.mxu0 0.0
    %4071 = vmatprep.subr.mxu0 0.0
    %4072 = vmatpush1.xpose.msra.mxu0 0.0
    %4073 = vmatprep.subr.mxu0 0.0
    %4074 = vmatpush1.xpose.msra.mxu0 0.0
    %4075 = vmatprep.subr.mxu0 0.0
    %4076 = vmatpush1.xpose.msra.mxu0 0.0
    %4077 = vmatprep.subr.mxu0 0.0
    %4078 = vmatpush1.xpose.msra.mxu0 0.0
    %4079 = vmatprep.subr.mxu0 0.0
    %4080 = vmatpush1.xpose.msra.mxu0 0.0
    %4081 = vmatprep.subr.mxu0 0.0
    %4082 = vmatpush1.xpose.msra.mxu0 0.0
    %4083 = vmatprep.mubr.f32.mxu0 0.0
    %4084 = vmatmul.mubr.f32.gmra.mrb[0].mxu0 %v4015
    %v4085 = vpop.f32.mrb[0].mxu0
    %v4086 = vadd.f32 %v1249, %v4085
    %v4087 = vpop.f32.mrb[0].mxu0
    %4088 = vdwg.mxu0
    %v4089 = vsel %vm295, %v4086, -inf
    %4090 = vmax.xlane.f32.xlu0 %v4089
    %v4091 = vpop.xlane.xlu0 %4090
    %v4092 = vsub.f32 %v4086, %v4091
    %v4093 = vmul.f32 %v4092, 1.442695
    %v4094 = vpow.pop %v4093
    %v4095 = vsel %vm295, %v4094, 0.0
    %4096 = vadd.xlane.f32.xlu0 %v4095
    %v4097 = vpop.xlane.xlu0 %4096
    %v4098 = vrcp.pop %v4097
    %v4099 = vmul.f32 %v4094, %v4098
    %4100 = vrot.lane.b32.xlu0 %v2580, 48
    %v4101 = vpop.permute.xlu0 %4100
    %v4104 = vsel %vm295, %v4099, 0
    %4106 = vmatprep.subr.mxu0 0.0
    %4107 = vmatpush1.msra.mxu0 %v4101
    %4108 = vmatprep.subr.mxu0 0.0
    %4109 = vmatpush1.msra.mxu0 0.0
    %4110 = vmatprep.subr.mxu0 0.0
    %4111 = vmatpush1.msra.mxu0 0.0
    %4112 = vmatprep.subr.mxu0 0.0
    %4113 = vmatpush1.msra.mxu0 0.0
    %4114 = vmatprep.subr.mxu0 0.0
    %4115 = vmatpush1.msra.mxu0 0.0
    %4116 = vmatprep.subr.mxu0 0.0
    %4117 = vmatpush1.msra.mxu0 0.0
    %4118 = vmatprep.subr.mxu0 0.0
    %4119 = vmatpush1.msra.mxu0 0.0
    %4120 = vmatprep.subr.mxu0 0.0
    %4121 = vmatpush1.msra.mxu0 0.0
    %4122 = vmatprep.subr.mxu0 0.0
    %4123 = vmatpush1.msra.mxu0 0.0
    %4124 = vmatprep.subr.mxu0 0.0
    %4125 = vmatpush1.msra.mxu0 0.0
    %4126 = vmatprep.subr.mxu0 0.0
    %4127 = vmatpush1.msra.mxu0 0.0
    %4128 = vmatprep.subr.mxu0 0.0
    %4129 = vmatpush1.msra.mxu0 0.0
    %4130 = vmatprep.subr.mxu0 0.0
    %4131 = vmatpush1.msra.mxu0 0.0
    %4132 = vmatprep.subr.mxu0 0.0
    %4133 = vmatpush1.msra.mxu0 0.0
    %4134 = vmatprep.subr.mxu0 0.0
    %4135 = vmatpush1.msra.mxu0 0.0
    %4136 = vmatprep.subr.mxu0 0.0
    %4137 = vmatpush1.msra.mxu0 0.0
    %4138 = vmatprep.subr.mxu0 0.0
    %4139 = vmatpush1.msra.mxu0 0.0
    %4140 = vmatprep.subr.mxu0 0.0
    %4141 = vmatpush1.msra.mxu0 0.0
    %4142 = vmatprep.subr.mxu0 0.0
    %4143 = vmatpush1.msra.mxu0 0.0
    %4144 = vmatprep.subr.mxu0 0.0
    %4145 = vmatpush1.msra.mxu0 0.0
    %4146 = vmatprep.subr.mxu0 0.0
    %4147 = vmatpush1.msra.mxu0 0.0
    %4148 = vmatprep.subr.mxu0 0.0
    %4149 = vmatpush1.msra.mxu0 0.0
    %4150 = vmatprep.subr.mxu0 0.0
    %4151 = vmatpush1.msra.mxu0 0.0
    %4152 = vmatprep.subr.mxu0 0.0
    %4153 = vmatpush1.msra.mxu0 0.0
    %4154 = vmatprep.subr.mxu0 0.0
    %4155 = vmatpush1.msra.mxu0 0.0
    %4156 = vmatprep.subr.mxu0 0.0
    %4157 = vmatpush1.msra.mxu0 0.0
    %4158 = vmatprep.subr.mxu0 0.0
    %4159 = vmatpush1.msra.mxu0 0.0
    %4160 = vmatprep.subr.mxu0 0.0
    %4161 = vmatpush1.msra.mxu0 0.0
    %4162 = vmatprep.subr.mxu0 0.0
    %4163 = vmatpush1.msra.mxu0 0.0
    %4164 = vmatprep.subr.mxu0 0.0
    %4165 = vmatpush1.msra.mxu0 0.0
    %4166 = vmatprep.subr.mxu0 0.0
    %4167 = vmatpush1.msra.mxu0 0.0
    %4168 = vmatprep.subr.mxu0 0.0
    %4169 = vmatpush1.msra.mxu0 0.0
    %4170 = vmatprep.mubr.f32.mxu0 0.0
    %4171 = vmatmul.mubr.f32.gmra.mrb[0].mxu0 %v4104
    %v4172 = vpop.f32.mrb[0].mxu0
    %v4173 = vadd.f32 0.0, %v4172
    %v4174 = vpop.f32.mrb[0].mxu0
    %4175 = vdwg.mxu0
    %v4177 = vsel %vm295, %v4173, 0
    %4179 = vmatprep.subr.mxu0 0.0
    %4180 = vmatpush1.msra.mxu0 %v2438
    %4181 = vmatprep.subr.mxu0 0.0
    %4182 = vmatpush1.msra.mxu0 0.0
    %4183 = vmatprep.subr.mxu0 0.0
    %4184 = vmatpush1.msra.mxu0 0.0
    %4185 = vmatprep.subr.mxu0 0.0
    %4186 = vmatpush1.msra.mxu0 0.0
    %4187 = vmatprep.subr.mxu0 0.0
    %4188 = vmatpush1.msra.mxu0 0.0
    %4189 = vmatprep.subr.mxu0 0.0
    %4190 = vmatpush1.msra.mxu0 0.0
    %4191 = vmatprep.subr.mxu0 0.0
    %4192 = vmatpush1.msra.mxu0 0.0
    %4193 = vmatprep.subr.mxu0 0.0
    %4194 = vmatpush1.msra.mxu0 0.0
    %4195 = vmatprep.subr.mxu0 0.0
    %4196 = vmatpush1.msra.mxu0 0.0
    %4197 = vmatprep.subr.mxu0 0.0
    %4198 = vmatpush1.msra.mxu0 0.0
    %4199 = vmatprep.subr.mxu0 0.0
    %4200 = vmatpush1.msra.mxu0 0.0
    %4201 = vmatprep.subr.mxu0 0.0
    %4202 = vmatpush1.msra.mxu0 0.0
    %4203 = vmatprep.subr.mxu0 0.0
    %4204 = vmatpush1.msra.mxu0 0.0
    %4205 = vmatprep.subr.mxu0 0.0
    %4206 = vmatpush1.msra.mxu0 0.0
    %4207 = vmatprep.subr.mxu0 0.0
    %4208 = vmatpush1.msra.mxu0 0.0
    %4209 = vmatprep.subr.mxu0 0.0
    %4210 = vmatpush1.msra.mxu0 0.0
    %4211 = vmatprep.subr.mxu0 0.0
    %4212 = vmatpush1.msra.mxu0 0.0
    %4213 = vmatprep.subr.mxu0 0.0
    %4214 = vmatpush1.msra.mxu0 0.0
    %4215 = vmatprep.subr.mxu0 0.0
    %4216 = vmatpush1.msra.mxu0 0.0
    %4217 = vmatprep.subr.mxu0 0.0
    %4218 = vmatpush1.msra.mxu0 0.0
    %4219 = vmatprep.subr.mxu0 0.0
    %4220 = vmatpush1.msra.mxu0 0.0
    %4221 = vmatprep.subr.mxu0 0.0
    %4222 = vmatpush1.msra.mxu0 0.0
    %4223 = vmatprep.subr.mxu0 0.0
    %4224 = vmatpush1.msra.mxu0 0.0
    %4225 = vmatprep.subr.mxu0 0.0
    %4226 = vmatpush1.msra.mxu0 0.0
    %4227 = vmatprep.subr.mxu0 0.0
    %4228 = vmatpush1.msra.mxu0 0.0
    %4229 = vmatprep.subr.mxu0 0.0
    %4230 = vmatpush1.msra.mxu0 0.0
    %4231 = vmatprep.subr.mxu0 0.0
    %4232 = vmatpush1.msra.mxu0 0.0
    %4233 = vmatprep.subr.mxu0 0.0
    %4234 = vmatpush1.msra.mxu0 0.0
    %4235 = vmatprep.subr.mxu0 0.0
    %4236 = vmatpush1.msra.mxu0 0.0
    %4237 = vmatprep.subr.mxu0 0.0
    %4238 = vmatpush1.msra.mxu0 0.0
    %4239 = vmatprep.subr.mxu0 0.0
    %4240 = vmatpush1.msra.mxu0 0.0
    %4241 = vmatprep.subr.mxu0 0.0
    %4242 = vmatpush1.msra.mxu0 0.0
    %4243 = vmatprep.mubr.f32.mxu0 0.0
    %4244 = vmatmul.mubr.f32.gmra.mrb[0].mxu0 %v4177
    %v4245 = vpop.f32.mrb[0].mxu0
    %v4246 = vadd.f32 0.0, %v4245
    %v4247 = vpop.f32.mrb[0].mxu0
    %4248 = vdwg.mxu0
    %v4249 = vadd.f32 %v4008, %v4246
    %4250 = vrot.lane.b32.xlu0 %v2580, 104
    %v4251 = vpop.permute.xlu0 %4250
    %4252 = vrot.lane.b32.xlu0 %v2580, 72
    %v4253 = vpop.permute.xlu0 %4252
    %v4254 = vsel %vm295, %v4251, 0
    %v4256 = vsel %vm295, %v4253, 0
    %4258 = vmatprep.subr.mxu0 0.0
    %4259 = vmatpush1.xpose.msra.mxu0 %v4256
    %4260 = vmatprep.subr.mxu0 0.0
    %4261 = vmatpush1.xpose.msra.mxu0 0.0
    %4262 = vmatprep.subr.mxu0 0.0
    %4263 = vmatpush1.xpose.msra.mxu0 0.0
    %4264 = vmatprep.subr.mxu0 0.0
    %4265 = vmatpush1.xpose.msra.mxu0 0.0
    %4266 = vmatprep.subr.mxu0 0.0
    %4267 = vmatpush1.xpose.msra.mxu0 0.0
    %4268 = vmatprep.subr.mxu0 0.0
    %4269 = vmatpush1.xpose.msra.mxu0 0.0
    %4270 = vmatprep.subr.mxu0 0.0
    %4271 = vmatpush1.xpose.msra.mxu0 0.0
    %4272 = vmatprep.subr.mxu0 0.0
    %4273 = vmatpush1.xpose.msra.mxu0 0.0
    %4274 = vmatprep.subr.mxu0 0.0
    %4275 = vmatpush1.xpose.msra.mxu0 0.0
    %4276 = vmatprep.subr.mxu0 0.0
    %4277 = vmatpush1.xpose.msra.mxu0 0.0
    %4278 = vmatprep.subr.mxu0 0.0
    %4279 = vmatpush1.xpose.msra.mxu0 0.0
    %4280 = vmatprep.subr.mxu0 0.0
    %4281 = vmatpush1.xpose.msra.mxu0 0.0
    %4282 = vmatprep.subr.mxu0 0.0
    %4283 = vmatpush1.xpose.msra.mxu0 0.0
    %4284 = vmatprep.subr.mxu0 0.0
    %4285 = vmatpush1.xpose.msra.mxu0 0.0
    %4286 = vmatprep.subr.mxu0 0.0
    %4287 = vmatpush1.xpose.msra.mxu0 0.0
    %4288 = vmatprep.subr.mxu0 0.0
    %4289 = vmatpush1.xpose.msra.mxu0 0.0
    %4290 = vmatprep.subr.mxu0 0.0
    %4291 = vmatpush1.xpose.msra.mxu0 0.0
    %4292 = vmatprep.subr.mxu0 0.0
    %4293 = vmatpush1.xpose.msra.mxu0 0.0
    %4294 = vmatprep.subr.mxu0 0.0
    %4295 = vmatpush1.xpose.msra.mxu0 0.0
    %4296 = vmatprep.subr.mxu0 0.0
    %4297 = vmatpush1.xpose.msra.mxu0 0.0
    %4298 = vmatprep.subr.mxu0 0.0
    %4299 = vmatpush1.xpose.msra.mxu0 0.0
    %4300 = vmatprep.subr.mxu0 0.0
    %4301 = vmatpush1.xpose.msra.mxu0 0.0
    %4302 = vmatprep.subr.mxu0 0.0
    %4303 = vmatpush1.xpose.msra.mxu0 0.0
    %4304 = vmatprep.subr.mxu0 0.0
    %4305 = vmatpush1.xpose.msra.mxu0 0.0
    %4306 = vmatprep.subr.mxu0 0.0
    %4307 = vmatpush1.xpose.msra.mxu0 0.0
    %4308 = vmatprep.subr.mxu0 0.0
    %4309 = vmatpush1.xpose.msra.mxu0 0.0
    %4310 = vmatprep.subr.mxu0 0.0
    %4311 = vmatpush1.xpose.msra.mxu0 0.0
    %4312 = vmatprep.subr.mxu0 0.0
    %4313 = vmatpush1.xpose.msra.mxu0 0.0
    %4314 = vmatprep.subr.mxu0 0.0
    %4315 = vmatpush1.xpose.msra.mxu0 0.0
    %4316 = vmatprep.subr.mxu0 0.0
    %4317 = vmatpush1.xpose.msra.mxu0 0.0
    %4318 = vmatprep.subr.mxu0 0.0
    %4319 = vmatpush1.xpose.msra.mxu0 0.0
    %4320 = vmatprep.subr.mxu0 0.0
    %4321 = vmatpush1.xpose.msra.mxu0 0.0
    %4322 = vmatprep.mubr.f32.mxu0 0.0
    %4323 = vmatmul.mubr.f32.gmra.mrb[0].mxu0 %v4254
    %v4324 = vpop.f32.mrb[0].mxu0
    %v4325 = vadd.f32 %v1249, %v4324
    %v4326 = vpop.f32.mrb[0].mxu0
    %4327 = vdwg.mxu0
    %v4328 = vsel %vm295, %v4325, -inf
    %4329 = vmax.xlane.f32.xlu0 %v4328
    %v4330 = vpop.xlane.xlu0 %4329
    %v4331 = vsub.f32 %v4325, %v4330
    %v4332 = vmul.f32 %v4331, 1.442695
    %v4333 = vpow.pop %v4332
    %v4334 = vsel %vm295, %v4333, 0.0
    %4335 = vadd.xlane.f32.xlu0 %v4334
    %v4336 = vpop.xlane.xlu0 %4335
    %v4337 = vrcp.pop %v4336
    %v4338 = vmul.f32 %v4333, %v4337
    %4339 = vrot.lane.b32.xlu0 %v2580, 40
    %v4340 = vpop.permute.xlu0 %4339
    %v4343 = vsel %vm295, %v4338, 0
    %4345 = vmatprep.subr.mxu0 0.0
    %4346 = vmatpush1.msra.mxu0 %v4340
    %4347 = vmatprep.subr.mxu0 0.0
    %4348 = vmatpush1.msra.mxu0 0.0
    %4349 = vmatprep.subr.mxu0 0.0
    %4350 = vmatpush1.msra.mxu0 0.0
    %4351 = vmatprep.subr.mxu0 0.0
    %4352 = vmatpush1.msra.mxu0 0.0
    %4353 = vmatprep.subr.mxu0 0.0
    %4354 = vmatpush1.msra.mxu0 0.0
    %4355 = vmatprep.subr.mxu0 0.0
    %4356 = vmatpush1.msra.mxu0 0.0
    %4357 = vmatprep.subr.mxu0 0.0
    %4358 = vmatpush1.msra.mxu0 0.0
    %4359 = vmatprep.subr.mxu0 0.0
    %4360 = vmatpush1.msra.mxu0 0.0
    %4361 = vmatprep.subr.mxu0 0.0
    %4362 = vmatpush1.msra.mxu0 0.0
    %4363 = vmatprep.subr.mxu0 0.0
    %4364 = vmatpush1.msra.mxu0 0.0
    %4365 = vmatprep.subr.mxu0 0.0
    %4366 = vmatpush1.msra.mxu0 0.0
    %4367 = vmatprep.subr.mxu0 0.0
    %4368 = vmatpush1.msra.mxu0 0.0
    %4369 = vmatprep.subr.mxu0 0.0
    %4370 = vmatpush1.msra.mxu0 0.0
    %4371 = vmatprep.subr.mxu0 0.0
    %4372 = vmatpush1.msra.mxu0 0.0
    %4373 = vmatprep.subr.mxu0 0.0
    %4374 = vmatpush1.msra.mxu0 0.0
    %4375 = vmatprep.subr.mxu0 0.0
    %4376 = vmatpush1.msra.mxu0 0.0
    %4377 = vmatprep.subr.mxu0 0.0
    %4378 = vmatpush1.msra.mxu0 0.0
    %4379 = vmatprep.subr.mxu0 0.0
    %4380 = vmatpush1.msra.mxu0 0.0
    %4381 = vmatprep.subr.mxu0 0.0
    %4382 = vmatpush1.msra.mxu0 0.0
    %4383 = vmatprep.subr.mxu0 0.0
    %4384 = vmatpush1.msra.mxu0 0.0
    %4385 = vmatprep.subr.mxu0 0.0
    %4386 = vmatpush1.msra.mxu0 0.0
    %4387 = vmatprep.subr.mxu0 0.0
    %4388 = vmatpush1.msra.mxu0 0.0
    %4389 = vmatprep.subr.mxu0 0.0
    %4390 = vmatpush1.msra.mxu0 0.0
    %4391 = vmatprep.subr.mxu0 0.0
    %4392 = vmatpush1.msra.mxu0 0.0
    %4393 = vmatprep.subr.mxu0 0.0
    %4394 = vmatpush1.msra.mxu0 0.0
    %4395 = vmatprep.subr.mxu0 0.0
    %4396 = vmatpush1.msra.mxu0 0.0
    %4397 = vmatprep.subr.mxu0 0.0
    %4398 = vmatpush1.msra.mxu0 0.0
    %4399 = vmatprep.subr.mxu0 0.0
    %4400 = vmatpush1.msra.mxu0 0.0
    %4401 = vmatprep.subr.mxu0 0.0
    %4402 = vmatpush1.msra.mxu0 0.0
    %4403 = vmatprep.subr.mxu0 0.0
    %4404 = vmatpush1.msra.mxu0 0.0
    %4405 = vmatprep.subr.mxu0 0.0
    %4406 = vmatpush1.msra.mxu0 0.0
    %4407 = vmatprep.subr.mxu0 0.0
    %4408 = vmatpush1.msra.mxu0 0.0
    %4409 = vmatprep.mubr.f32.mxu0 0.0
    %4410 = vmatmul.mubr.f32.gmra.mrb[0].mxu0 %v4343
    %v4411 = vpop.f32.mrb[0].mxu0
    %v4412 = vadd.f32 0.0, %v4411
    %v4413 = vpop.f32.mrb[0].mxu0
    %4414 = vdwg.mxu0
    %v4416 = vsel %vm295, %v4412, 0
    %4418 = vmatprep.subr.mxu0 0.0
    %4419 = vmatpush1.msra.mxu0 %v2439
    %4420 = vmatprep.subr.mxu0 0.0
    %4421 = vmatpush1.msra.mxu0 0.0
    %4422 = vmatprep.subr.mxu0 0.0
    %4423 = vmatpush1.msra.mxu0 0.0
    %4424 = vmatprep.subr.mxu0 0.0
    %4425 = vmatpush1.msra.mxu0 0.0
    %4426 = vmatprep.subr.mxu0 0.0
    %4427 = vmatpush1.msra.mxu0 0.0
    %4428 = vmatprep.subr.mxu0 0.0
    %4429 = vmatpush1.msra.mxu0 0.0
    %4430 = vmatprep.subr.mxu0 0.0
    %4431 = vmatpush1.msra.mxu0 0.0
    %4432 = vmatprep.subr.mxu0 0.0
    %4433 = vmatpush1.msra.mxu0 0.0
    %4434 = vmatprep.subr.mxu0 0.0
    %4435 = vmatpush1.msra.mxu0 0.0
    %4436 = vmatprep.subr.mxu0 0.0
    %4437 = vmatpush1.msra.mxu0 0.0
    %4438 = vmatprep.subr.mxu0 0.0
    %4439 = vmatpush1.msra.mxu0 0.0
    %4440 = vmatprep.subr.mxu0 0.0
    %4441 = vmatpush1.msra.mxu0 0.0
    %4442 = vmatprep.subr.mxu0 0.0
    %4443 = vmatpush1.msra.mxu0 0.0
    %4444 = vmatprep.subr.mxu0 0.0
    %4445 = vmatpush1.msra.mxu0 0.0
    %4446 = vmatprep.subr.mxu0 0.0
    %4447 = vmatpush1.msra.mxu0 0.0
    %4448 = vmatprep.subr.mxu0 0.0
    %4449 = vmatpush1.msra.mxu0 0.0
    %4450 = vmatprep.subr.mxu0 0.0
    %4451 = vmatpush1.msra.mxu0 0.0
    %4452 = vmatprep.subr.mxu0 0.0
    %4453 = vmatpush1.msra.mxu0 0.0
    %4454 = vmatprep.subr.mxu0 0.0
    %4455 = vmatpush1.msra.mxu0 0.0
    %4456 = vmatprep.subr.mxu0 0.0
    %4457 = vmatpush1.msra.mxu0 0.0
    %4458 = vmatprep.subr.mxu0 0.0
    %4459 = vmatpush1.msra.mxu0 0.0
    %4460 = vmatprep.subr.mxu0 0.0
    %4461 = vmatpush1.msra.mxu0 0.0
    %4462 = vmatprep.subr.mxu0 0.0
    %4463 = vmatpush1.msra.mxu0 0.0
    %4464 = vmatprep.subr.mxu0 0.0
    %4465 = vmatpush1.msra.mxu0 0.0
    %4466 = vmatprep.subr.mxu0 0.0
    %4467 = vmatpush1.msra.mxu0 0.0
    %4468 = vmatprep.subr.mxu0 0.0
    %4469 = vmatpush1.msra.mxu0 0.0
    %4470 = vmatprep.subr.mxu0 0.0
    %4471 = vmatpush1.msra.mxu0 0.0
    %4472 = vmatprep.subr.mxu0 0.0
    %4473 = vmatpush1.msra.mxu0 0.0
    %4474 = vmatprep.subr.mxu0 0.0
    %4475 = vmatpush1.msra.mxu0 0.0
    %4476 = vmatprep.subr.mxu0 0.0
    %4477 = vmatpush1.msra.mxu0 0.0
    %4478 = vmatprep.subr.mxu0 0.0
    %4479 = vmatpush1.msra.mxu0 0.0
    %4480 = vmatprep.subr.mxu0 0.0
    %4481 = vmatpush1.msra.mxu0 0.0
    %4482 = vmatprep.mubr.f32.mxu0 0.0
    %4483 = vmatmul.mubr.f32.gmra.mrb[0].mxu0 %v4416
    %v4484 = vpop.f32.mrb[0].mxu0
    %v4485 = vadd.f32 0.0, %v4484
    %v4486 = vpop.f32.mrb[0].mxu0
    %4487 = vdwg.mxu0
    %v4488 = vadd.f32 %v4249, %v4485
    %v4489 = vadd.f32 %v2426, %v3535
    %v4490 = vadd.f32 %v2427, %v4488
    %v4491 = vlaneseq
    %v4492 = vshrl.u32 %v4491, 7
    %v4493 = vsub.s32 2, %v4492
    %v4494 = vrot.slane %v2457, %v4493
    %v4495 = vadd.f32 %v4489, %v4494
    %v4496 = vadd.f32 %v4490, %v4494
    %v4497 = vsel %vm161, %v4495, 0.0
    %4498 = vadd.xlane.f32.xlu0 %v4497
    %v4499 = vpop.xlane.xlu0 %4498
    %v4500 = vsel %vm161, %v4496, 0.0
    %4501 = vadd.xlane.f32.xlu0 %v4500
    %v4502 = vpop.xlane.xlu0 %4501
    %v4503 = vmul.f32 %v4499, %v168
    %v4504 = vmul.f32 %v4502, %v168
    %v4505 = vsub.f32 %v4495, %v4503
    %v4506 = vsub.f32 %v4496, %v4504
    %v4507 = vmul.f32 %v4505, %v4505
    %v4508 = vmul.f32 %v4506, %v4506
    %v4509 = vsel %vm161, %v4507, 0.0
    %4510 = vadd.xlane.f32.xlu0 %v4509
    %v4511 = vpop.xlane.xlu0 %4510
    %v4512 = vsel %vm161, %v4508, 0.0
    %4513 = vadd.xlane.f32.xlu0 %v4512
    %v4514 = vpop.xlane.xlu0 %4513
    %v4515 = vmul.f32 %v4511, %v168
    %v4516 = vmul.f32 %v4514, %v168
    %v4517 = vadd.f32 %v4515, 1e-05
    %v4518 = vadd.f32 %v4516, 1e-05
    %v4519 = vrsqrt.pop %v4517
    %v4520 = vrsqrt.pop %v4518
    %v4521 = vmul.f32 %v4505, %v4519
    %v4522 = vmul.f32 %v4506, %v4520
    %v4523 = vlaneseq
    %v4524 = vshrl.u32 %v4523, 7
    %v4525 = vsub.s32 3, %v4524
    %v4526 = vrot.slane %v2457, %v4525
    %v4527 = vmul.f32 %v4521, %v4526
    %v4528 = vmul.f32 %v4522, %v4526
    %v4529 = vlaneseq
    %v4530 = vshrl.u32 %v4529, 7
    %v4531 = vsub.s32 4, %v4530
    %v4532 = vrot.slane %v2457, %v4531
    %v4533 = vadd.f32 %v4527, %v4532
    %v4534 = vadd.f32 %v4528, %v4532
    %v4536 = vlaneseq
    %v4537 = vshrl.u32 %v4536, 7
    %v4538 = vsub.s32 0, %v4537
    %v4539 = vrot.slane %v2455, %v4538
    %v4542 = vsel %vm161, %v4533, 0
    %v4545 = vsel %vm161, %v4534, 0
    %4547 = vmatprep.subr.mxu0 0.0
    %4548 = vmatpush1.msra.mxu0 %v2441
    %4549 = vmatprep.subr.mxu0 0.0
    %4550 = vmatpush1.msra.mxu0 %v2442
    %4551 = vmatprep.subr.mxu0 0.0
    %4552 = vmatpush1.msra.mxu0 %v2443
    %4553 = vmatprep.subr.mxu0 0.0
    %4554 = vmatpush1.msra.mxu0 %v2444
    %4555 = vmatprep.subr.mxu0 0.0
    %4556 = vmatpush1.msra.mxu0 0.0
    %4557 = vmatprep.subr.mxu0 0.0
    %4558 = vmatpush1.msra.mxu0 0.0
    %4559 = vmatprep.subr.mxu0 0.0
    %4560 = vmatpush1.msra.mxu0 0.0
    %4561 = vmatprep.subr.mxu0 0.0
    %4562 = vmatpush1.msra.mxu0 0.0
    %4563 = vmatprep.subr.mxu0 0.0
    %4564 = vmatpush1.msra.mxu0 0.0
    %4565 = vmatprep.subr.mxu0 0.0
    %4566 = vmatpush1.msra.mxu0 0.0
    %4567 = vmatprep.subr.mxu0 0.0
    %4568 = vmatpush1.msra.mxu0 0.0
    %4569 = vmatprep.subr.mxu0 0.0
    %4570 = vmatpush1.msra.mxu0 0.0
    %4571 = vmatprep.subr.mxu0 0.0
    %4572 = vmatpush1.msra.mxu0 0.0
    %4573 = vmatprep.subr.mxu0 0.0
    %4574 = vmatpush1.msra.mxu0 0.0
    %4575 = vmatprep.subr.mxu0 0.0
    %4576 = vmatpush1.msra.mxu0 0.0
    %4577 = vmatprep.subr.mxu0 0.0
    %4578 = vmatpush1.msra.mxu0 0.0
    %4579 = vmatprep.subr.mxu0 0.0
    %4580 = vmatpush1.msra.mxu0 0.0
    %4581 = vmatprep.subr.mxu0 0.0
    %4582 = vmatpush1.msra.mxu0 0.0
    %4583 = vmatprep.subr.mxu0 0.0
    %4584 = vmatpush1.msra.mxu0 0.0
    %4585 = vmatprep.subr.mxu0 0.0
    %4586 = vmatpush1.msra.mxu0 0.0
    %4587 = vmatprep.subr.mxu0 0.0
    %4588 = vmatpush1.msra.mxu0 0.0
    %4589 = vmatprep.subr.mxu0 0.0
    %4590 = vmatpush1.msra.mxu0 0.0
    %4591 = vmatprep.subr.mxu0 0.0
    %4592 = vmatpush1.msra.mxu0 0.0
    %4593 = vmatprep.subr.mxu0 0.0
    %4594 = vmatpush1.msra.mxu0 0.0
    %4595 = vmatprep.subr.mxu0 0.0
    %4596 = vmatpush1.msra.mxu0 0.0
    %4597 = vmatprep.subr.mxu0 0.0
    %4598 = vmatpush1.msra.mxu0 0.0
    %4599 = vmatprep.subr.mxu0 0.0
    %4600 = vmatpush1.msra.mxu0 0.0
    %4601 = vmatprep.subr.mxu0 0.0
    %4602 = vmatpush1.msra.mxu0 0.0
    %4603 = vmatprep.subr.mxu0 0.0
    %4604 = vmatpush1.msra.mxu0 0.0
    %4605 = vmatprep.subr.mxu0 0.0
    %4606 = vmatpush1.msra.mxu0 0.0
    %4607 = vmatprep.subr.mxu0 0.0
    %4608 = vmatpush1.msra.mxu0 0.0
    %4609 = vmatprep.subr.mxu0 0.0
    %4610 = vmatpush1.msra.mxu0 0.0
    %4611 = vmatprep.mubr.f32.mxu0 0.0
    %4612 = vmatmul.mubr.f32.gmra.mrb[0].mxu0 %v4542
    %v4613 = vpop.f32.mrb[0].mxu0
    %v4614 = vadd.f32 %v4539, %v4613
    %v4615 = vpop.f32.mrb[0].mxu0
    %4616 = vmatprep.mubr.f32.mxu0 0.0
    %4617 = vmatmul.mubr.f32.gmra.mrb[0].mxu0 %v4545
    %v4618 = vpop.f32.mrb[0].mxu0
    %v4619 = vadd.f32 %v4539, %v4618
    %v4620 = vpop.f32.mrb[0].mxu0
    %4621 = vdwg.mxu0
    %v4622 = vmax.f32 %v4614, 0.0
    %v4623 = vmax.f32 %v4619, 0.0
    %v4625 = vsel %vm2338, %v4622, 0
    %v4628 = vsel %vm2338, %v4623, 0
    %4630 = vmatprep.subr.mxu0 0.0
    %4631 = vmatpush1.msra.mxu0 %v2446
    %4632 = vmatprep.subr.mxu0 0.0
    %4633 = vmatpush1.msra.mxu0 %v2447
    %4634 = vmatprep.subr.mxu0 0.0
    %4635 = vmatpush1.msra.mxu0 %v2448
    %4636 = vmatprep.subr.mxu0 0.0
    %4637 = vmatpush1.msra.mxu0 %v2449
    %4638 = vmatprep.subr.mxu0 0.0
    %4639 = vmatpush1.msra.mxu0 %v2450
    %4640 = vmatprep.subr.mxu0 0.0
    %4641 = vmatpush1.msra.mxu0 %v2451
    %4642 = vmatprep.subr.mxu0 0.0
    %4643 = vmatpush1.msra.mxu0 %v2452
    %4644 = vmatprep.subr.mxu0 0.0
    %4645 = vmatpush1.msra.mxu0 %v2453
    %4646 = vmatprep.subr.mxu0 0.0
    %4647 = vmatpush1.msra.mxu0 0.0
    %4648 = vmatprep.subr.mxu0 0.0
    %4649 = vmatpush1.msra.mxu0 0.0
    %4650 = vmatprep.subr.mxu0 0.0
    %4651 = vmatpush1.msra.mxu0 0.0
    %4652 = vmatprep.subr.mxu0 0.0
    %4653 = vmatpush1.msra.mxu0 0.0
    %4654 = vmatprep.subr.mxu0 0.0
    %4655 = vmatpush1.msra.mxu0 0.0
    %4656 = vmatprep.subr.mxu0 0.0
    %4657 = vmatpush1.msra.mxu0 0.0
    %4658 = vmatprep.subr.mxu0 0.0
    %4659 = vmatpush1.msra.mxu0 0.0
    %4660 = vmatprep.subr.mxu0 0.0
    %4661 = vmatpush1.msra.mxu0 0.0
    %4662 = vmatprep.subr.mxu0 0.0
    %4663 = vmatpush1.msra.mxu0 0.0
    %4664 = vmatprep.subr.mxu0 0.0
    %4665 = vmatpush1.msra.mxu0 0.0
    %4666 = vmatprep.subr.mxu0 0.0
    %4667 = vmatpush1.msra.mxu0 0.0
    %4668 = vmatprep.subr.mxu0 0.0
    %4669 = vmatpush1.msra.mxu0 0.0
    %4670 = vmatprep.subr.mxu0 0.0
    %4671 = vmatpush1.msra.mxu0 0.0
    %4672 = vmatprep.subr.mxu0 0.0
    %4673 = vmatpush1.msra.mxu0 0.0
    %4674 = vmatprep.subr.mxu0 0.0
    %4675 = vmatpush1.msra.mxu0 0.0
    %4676 = vmatprep.subr.mxu0 0.0
    %4677 = vmatpush1.msra.mxu0 0.0
    %4678 = vmatprep.subr.mxu0 0.0
    %4679 = vmatpush1.msra.mxu0 0.0
    %4680 = vmatprep.subr.mxu0 0.0
    %4681 = vmatpush1.msra.mxu0 0.0
    %4682 = vmatprep.subr.mxu0 0.0
    %4683 = vmatpush1.msra.mxu0 0.0
    %4684 = vmatprep.subr.mxu0 0.0
    %4685 = vmatpush1.msra.mxu0 0.0
    %4686 = vmatprep.subr.mxu0 0.0
    %4687 = vmatpush1.msra.mxu0 0.0
    %4688 = vmatprep.subr.mxu0 0.0
    %4689 = vmatpush1.msra.mxu0 0.0
    %4690 = vmatprep.subr.mxu0 0.0
    %4691 = vmatpush1.msra.mxu0 0.0
    %4692 = vmatprep.subr.mxu0 0.0
    %4693 = vmatpush1.msra.mxu0 0.0
    %4694 = vmatprep.mubr.f32.mxu0 0.0
    %4695 = vmatmul.mubr.f32.gmra.mrb[0].mxu0 %v4625
    %v4696 = vpop.f32.mrb[0].mxu0
    %v4697 = vadd.f32 0.0, %v4696
    %v4698 = vpop.f32.mrb[0].mxu0
    %4699 = vmatprep.mubr.f32.mxu0 0.0
    %4700 = vmatmul.mubr.f32.gmra.mrb[0].mxu0 %v4628
    %v4701 = vpop.f32.mrb[0].mxu0
    %v4702 = vadd.f32 0.0, %v4701
    %v4703 = vpop.f32.mrb[0].mxu0
    %4704 = vdwg.mxu0
    %v4705 = vadd.f32 %v4495, %v4697
    %v4706 = vadd.f32 %v4496, %v4702
    %v4707 = vlaneseq
    %v4708 = vshrl.u32 %v4707, 7
    %v4709 = vsub.s32 5, %v4708
    %v4710 = vrot.slane %v2457, %v4709
    %v4711 = vadd.f32 %v4705, %v4710
    %v4712 = vadd.f32 %v4706, %v4710
    %v4713 = vld [vmem:[%s10] sm:$0x1]
    %v4714 = vld [vmem:[%s11] sm:$0x1]
    %v4715 = vsel %vm161, %v4711, 0.0
    %4716 = vadd.xlane.f32.xlu0 %v4715
    %v4717 = vpop.xlane.xlu0 %4716
    %v4718 = vsel %vm161, %v4712, 0.0
    %4719 = vadd.xlane.f32.xlu0 %v4718
    %v4720 = vpop.xlane.xlu0 %4719
    %v4721 = vmul.f32 %v4717, %v168
    %v4722 = vmul.f32 %v4720, %v168
    %v4723 = vsub.f32 %v4711, %v4721
    %v4724 = vsub.f32 %v4712, %v4722
    %v4725 = vmul.f32 %v4723, %v4723
    %v4726 = vmul.f32 %v4724, %v4724
    %v4727 = vsel %vm161, %v4725, 0.0
    %4728 = vadd.xlane.f32.xlu0 %v4727
    %v4729 = vpop.xlane.xlu0 %4728
    %v4730 = vsel %vm161, %v4726, 0.0
    %4731 = vadd.xlane.f32.xlu0 %v4730
    %v4732 = vpop.xlane.xlu0 %4731
    %v4733 = vmul.f32 %v4729, %v168
    %v4734 = vmul.f32 %v4732, %v168
    %v4735 = vadd.f32 %v4733, 1e-05
    %v4736 = vadd.f32 %v4734, 1e-05
    %v4737 = vrsqrt.pop %v4735
    %v4738 = vrsqrt.pop %v4736
    %v4739 = vmul.f32 %v4723, %v4737
    %v4740 = vmul.f32 %v4724, %v4738
    %v4742 = vlaneseq
    %v4743 = vshrl.u32 %v4742, 7
    %v4744 = vsub.s32 0, %v4743
    %v4745 = vrot.slane %v4713, %v4744
    %v4747 = vmul.f32 %v4739, %v4745
    %v4748 = vmul.f32 %v4740, %v4745
    %v4750 = vlaneseq
    %v4751 = vshrl.u32 %v4750, 7
    %v4752 = vsub.s32 0, %v4751
    %v4753 = vrot.slane %v4714, %v4752
    %v4755 = vadd.f32 %v4747, %v4753
    %v4756 = vadd.f32 %v4748, %v4753
    %4757 = vst.msk [vmem:[#allocation2] sm:$0xff] %vm161, %v4755
    %s4758 = scalar_lea.vmem [#allocation2], 8
    %4759 = vst.msk [vmem:[%s4758] sm:$0xff] %vm161, %v4756
    // Predicated region
    $region50: #{tpu_custom_call.1} parent=1 // pred_check
      _
    $region51: #{tpu_custom_call.1} parent=1 // pred_check_branch
      %4761 = sbr.rel (0) target = $region53
    $region52: #{tpu_custom_call.1} parent=1 // pred_region
      %s4763 = ssub.s32 256, 256
      %4764 = vsyncadd [#allocation3], %s4763
      %s4765 = sshll.u32 [#allocation2], 4
      %s4766 = int_to_ptr.vmem [resolvable:$true] %s4765
      %4771 = dma.vmem_to_hbm [thread:$0]  %s4766, 256, %s12, [#allocation3], 128, 128, 8
    $region53: #{tpu_custom_call.1} parent=1 // pred_fallthru
      _
    // Predicated region
    $region54: #{tpu_custom_call.1} parent=1 // pred_check
      _
    $region55: #{tpu_custom_call.1} parent=1 // pred_check_branch
      %4773 = sbr.rel (0) target = $region57
    $region56: #{tpu_custom_call.1} parent=1 // pred_region
      %4774 = dma.done [#allocation3], 256
    $region57: #{tpu_custom_call.1} parent=1 // pred_fallthru
      _
    %4775 = vsyncpa [#allocation3], 1

</llo_original>
